<compile_context>
chip_gen: v6e
topology: v6e:2x2x1
jax: 0.10.0
libtpu: 0.0.40
codegen_flags: <defaults>
</compile_context>

<pallas_src>
import functools

import jax
import jax.numpy as jnp
from jax.experimental import pallas as pl
from jax.experimental.pallas import tpu as pltpu


NUM_CLASSES = 6       # object-category one-hot
FEAT_DIM = 128        # per-point feature produced by FaceRecon fuse stack
FEATURES_DIM = 6      # rgb-ish per-point input features
FACE_C = 30           # 18 normals + 6 dis + 6 face_f
HEAD_H1 = 256         # head conv1 width
HEAD_H2 = 128         # head conv2/conv3 width

_VMEM_LIMIT = 32 * 1024 * 1024            # safe on v5e/v6e/v7x


def _pick_tile(n):
    # cap at 512 (v7x 64 MiB VMEM safe); fall back to n for odd sizes.
    for t in (512, 256, 128, 64, 32, 16, 8):
        if n % t == 0:
            return t
    return n


def _w_spec(shape):
    """Replicated (grid-invariant) weight BlockSpec."""
    nd = len(shape)
    return pl.BlockSpec(shape, lambda b, t, _nd=nd: (0,) * _nd)


# ----------------------------------------------------------------------------
# Kernel 1: FaceRecon per-point MLP (fr1 -> fr2) + fused global max pool.
# Only the pooled (B,1,128) global feature leaves the kernel; h2 is recomputed
# in kernel 2 (cheaper than the HBM round trip).
# grid = (B, N//tn); batch "parallel", tile axis "arbitrary" (pool reduction).
# ----------------------------------------------------------------------------
def face_point_kernel(x_ref, w1_ref, t1_ref, w2_ref, t2_ref, g_ref):
    t = pl.program_id(1)
    bf = jnp.bfloat16

    @pl.when(t == 0)
    def _():
        g_ref[...] = jnp.zeros_like(g_ref)        # ReLU output => 0 is -inf

    x = x_ref[0].astype(bf)                                    # (tn, 3)
    h1 = jnp.dot(x, w1_ref[...], preferred_element_type=jnp.float32)
    h1 = jnp.maximum(h1 + t1_ref[...], 0.0)                    # (tn, 64)
    h2 = jnp.dot(h1.astype(bf), w2_ref[...],
                 preferred_element_type=jnp.float32)
    h2 = jnp.maximum(h2 + t2_ref[...], 0.0)                    # (tn, 128)

    g_ref[0] = jnp.maximum(g_ref[0], jnp.max(h2, axis=0, keepdims=True))


def face_point_stage(pk, pts_c):
    B, N, _ = pts_c.shape
    tn = _pick_tile(N)
    return pl.pallas_call(
        face_point_kernel,
        out_shape=jax.ShapeDtypeStruct((B, 1, FEAT_DIM), jnp.float32),
        grid_spec=pltpu.PrefetchScalarGridSpec(
            num_scalar_prefetch=0,
            grid=(B, N // tn),
            in_specs=[
                pl.BlockSpec((1, tn, 3), lambda b, t: (b, t, 0)),
                _w_spec((3, 64)),
                _w_spec((1, 64)),
                _w_spec((64, FEAT_DIM)),
                _w_spec((1, FEAT_DIM)),
            ],
            out_specs=pl.BlockSpec((1, 1, FEAT_DIM), lambda b, t: (b, 0, 0)),
        ),
        compiler_params=pltpu.CompilerParams(
            dimension_semantics=("parallel", "arbitrary"),
            vmem_limit_bytes=_VMEM_LIMIT),
    )(pts_c, pk["fr1_w"], pk["fr1_t"], pk["fr2_w"], pk["fr2_t"])


# ----------------------------------------------------------------------------
# Kernel 2 (fused): recompute fr1->fr2, FaceRecon fuse stack (frc1 -> frc2),
# merged recon/face heads, and the three rot/ts per-point conv stacks with the
# point-axis max pool folded in.  f2 stays on-chip the whole time.
#   * frc1 global-feature / one-hot contribution arrives as a per-batch bias
#     (split-K computed in jnp) -> no (B,N,262) concat.
#   * recon (3ch) + face (30ch) share one lane-dense bf16 128-wide slab via a
#     block-diagonal merged weight (sliced in the wrapper).
#   * heads first layer runs per head (no (tn,768) intermediate), features and
#     pts_c contribute via separate small-K dots (no (B,N,9) concat).
#   * pooled (B,1,384) slab accumulated directly in the resident output block.
# ----------------------------------------------------------------------------
def fused_kernel(pts_ref, feat_ref, b1_ref,
                 fr1w_ref, fr1t_ref, fr2w_ref, fr2t_ref,
                 c1w_ref, c2w_ref, c2t_ref,
                 rf_hw_ref, rf_ht_ref, rf_ow_ref, rf_ot_ref,
                 h1wa_ref, h1wf_ref, h1wp_ref, h1t_ref,
                 h2w_ref, h2t_ref, h3w_ref, h3t_ref,
                 rf_ref, pool_ref):
    t = pl.program_id(1)
    bf = jnp.bfloat16

    @pl.when(t == 0)
    def _():
        pool_ref[...] = jnp.zeros_like(pool_ref)   # ReLU output => 0 is -inf

    pts = pts_ref[0].astype(bf)                                # (tn, 3)
    feat = feat_ref[0].astype(bf)                              # (tn, 6)

    # --- recompute FaceRecon per-point MLP (fr1 -> fr2); no h2 HBM round trip
    h1 = jnp.dot(pts, fr1w_ref[...], preferred_element_type=jnp.float32)
    h1 = jnp.maximum(h1 + fr1t_ref[...], 0.0)                  # (tn, 64)
    h2 = jnp.dot(h1.astype(bf), fr2w_ref[...],
                 preferred_element_type=jnp.float32)
    h2 = jnp.maximum(h2 + fr2t_ref[...], 0.0)                  # (tn, 128)

    # --- fuse stack: frc1 (per-point slice + per-batch bias) -> frc2
    f1 = jnp.dot(h2.astype(bf), c1w_ref[...],
                 preferred_element_type=jnp.float32)
    f1 = jnp.maximum(f1 + b1_ref[0], 0.0)                      # (tn, 256)
    f2 = jnp.dot(f1.astype(bf), c2w_ref[...],
                 preferred_element_type=jnp.float32)
    f2 = jnp.maximum(f2 + c2t_ref[...], 0.0)                   # (tn, 128)
    f2b = f2.astype(bf)

    # --- merged recon/face heads -> lane-dense bf16 output slab
    hh = jnp.dot(f2b, rf_hw_ref[...], preferred_element_type=jnp.float32)
    hh = jnp.maximum(hh + rf_ht_ref[...], 0.0)                 # (tn, 128)
    rf = jnp.dot(hh.astype(bf), rf_ow_ref[...],
                 preferred_element_type=jnp.float32) + rf_ot_ref[...]
    rf_ref[0] = rf.astype(rf_ref.dtype)                        # (tn, 128) bf16

    # --- rot_green / rot_red / Pose_Ts chains (per head) + fused max pool
    maxes = []
    for i in range(3):                                         # rg, rr, ts
        hi = jnp.dot(f2b, h1wa_ref[i], preferred_element_type=jnp.float32)
        hi = hi + jnp.dot(feat, h1wf_ref[i],
                          preferred_element_type=jnp.float32)
        if i == 2:  # only Pose_Ts sees pts_c
            hi = hi + jnp.dot(pts, h1wp_ref[...],
                              preferred_element_type=jnp.float32)
        hi = jnp.maximum(hi + h1t_ref[i:i + 1, :], 0.0)        # (tn, 256)
        h2i = jnp.dot(hi.astype(bf), h2w_ref[i],
                      preferred_element_type=jnp.float32)
        h2i = jnp.maximum(h2i + h2t_ref[i:i + 1, :], 0.0)      # (tn, 128)
        h3i = jnp.dot(h2i.astype(bf), h3w_ref[i],
                      preferred_element_type=jnp.float32)
        h3i = jnp.maximum(h3i + h3t_ref[i:i + 1, :], 0.0)      # (tn, 128)
        maxes.append(jnp.max(h3i, axis=0, keepdims=True))      # (1, 128)

    tile_max = jnp.concatenate(maxes, axis=-1)                 # (1, 384)
    pool_ref[0] = jnp.maximum(pool_ref[0], tile_max)


def fused_stage(pk, pts_c, features, bias1):
    B, N, _ = pts_c.shape
    tn = _pick_tile(N)
    return pl.pallas_call(
        fused_kernel,
        out_shape=(jax.ShapeDtypeStruct((B, N, 128), jnp.bfloat16),
                   jax.ShapeDtypeStruct((B, 1, 3 * HEAD_H2), jnp.float32)),
        grid_spec=pltpu.PrefetchScalarGridSpec(
            num_scalar_prefetch=0,
            grid=(B, N // tn),
            in_specs=[
                pl.BlockSpec((1, tn, 3), lambda b, t: (b, t, 0)),
                pl.BlockSpec((1, tn, FEATURES_DIM), lambda b, t: (b, t, 0)),
                pl.BlockSpec((1, 1, 256), lambda b, t: (b, 0, 0)),
                _w_spec((3, 64)), _w_spec((1, 64)),
                _w_spec((64, FEAT_DIM)), _w_spec((1, FEAT_DIM)),
                _w_spec((FEAT_DIM, 256)),
                _w_spec((256, FEAT_DIM)), _w_spec((1, FEAT_DIM)),
                _w_spec((FEAT_DIM, 128)), _w_spec((1, 128)),
                _w_spec((128, 128)), _w_spec((1, 128)),
                _w_spec((3, FEAT_DIM, HEAD_H1)),
                _w_spec((3, FEATURES_DIM, HEAD_H1)),
                _w_spec((3, HEAD_H1)),
                _w_spec((3, HEAD_H1)),
                _w_spec((3, HEAD_H1, HEAD_H2)), _w_spec((3, HEAD_H2)),
                _w_spec((3, HEAD_H2, HEAD_H2)), _w_spec((3, HEAD_H2)),
            ],
            out_specs=[
                pl.BlockSpec((1, tn, 128), lambda b, t: (b, t, 0)),
                pl.BlockSpec((1, 1, 3 * HEAD_H2), lambda b, t: (b, 0, 0)),
            ],
        ),
        compiler_params=pltpu.CompilerParams(
            dimension_semantics=("parallel", "arbitrary"),
            vmem_limit_bytes=_VMEM_LIMIT),
    )(pts_c, features, bias1,
      pk["fr1_w"], pk["fr1_t"], pk["fr2_w"], pk["fr2_t"],
      pk["frc1_wa"], pk["frc2_w"], pk["frc2_t"],
      pk["rf_h_w"], pk["rf_h_t"], pk["rf_o_w"], pk["rf_o_t"],
      pk["hd1_wa"], pk["hd1_wf"], pk["hd1_wp"], pk["hd1_t"],
      pk["hd2_w"], pk["hd2_t"], pk["hd3_w"], pk["hd3_t"])


# ----------------------------------------------------------------------------
# Deterministic parameter construction (Conv1d 1x1 + BatchNorm folded; the BN
# scale is folded into W so kernels only add a shift).
# ----------------------------------------------------------------------------
def make_layer(key, cin, cout, bn=True):
    k1, k2, k3, k4, k5, k6 = jax.random.split(key, 6)
    w = jax.random.normal(k1, (cin, cout), jnp.float32) / jnp.sqrt(float(cin))
    b = 0.01 * jax.random.normal(k2, (cout,), jnp.float32)
    if bn:
        gamma = 1.0 + 0.1 * jax.random.normal(k3, (cout,), jnp.float32)
        beta = 0.1 * jax.random.normal(k4, (cout,), jnp.float32)
        mean = 0.05 * jax.random.normal(k5, (cout,), jnp.float32)
        var = jnp.abs(1.0 + 0.1 * jax.random.normal(k6, (cout,), jnp.float32))
        scale = gamma / jnp.sqrt(var + 1e-5)
        shift = (b - mean) * scale + beta
    else:
        scale = jnp.ones((cout,), jnp.float32)
        shift = b
    # fold BN scale into the weights: (x@W)*s + t == x@(W*s) + t
    return dict(w=(w * scale[None, :]).astype(jnp.float32),
                shift=shift.reshape(1, cout).astype(jnp.float32))


def build_params(key):
    keys = iter(jax.random.split(key, 64))

    def L(cin, cout, bn=True):
        return make_layer(next(keys), cin, cout, bn)

    P = {}
    # FaceRecon (simplified, structurally analogous)
    P["fr1"] = L(3, 64)
    P["fr2"] = L(64, FEAT_DIM)
    P["frc1"] = L(FEAT_DIM + FEAT_DIM + NUM_CLASSES, 256)
    P["frc2"] = L(256, FEAT_DIM)
    P["frr1"] = L(FEAT_DIM, 64)
    P["frr2"] = L(64, 3, bn=False)
    P["frf1"] = L(FEAT_DIM, 64)
    P["frf2"] = L(64, FACE_C, bn=False)
    # Rot_green / Rot_red heads (input 128 + 6)
    for name in ("rg", "rr"):
        P[name + "1"] = L(FEAT_DIM + FEATURES_DIM, HEAD_H1)
        P[name + "2"] = L(HEAD_H1, HEAD_H2)
        P[name + "3"] = L(HEAD_H2, HEAD_H2)
        P[name + "4"] = L(HEAD_H2, 4, bn=False)
    # Pose_Ts head (input 128 + 6 + 3)
    P["ts1"] = L(FEAT_DIM + FEATURES_DIM + 3, HEAD_H1)
    P["ts2"] = L(HEAD_H1, HEAD_H2)
    P["ts3"] = L(HEAD_H2, HEAD_H2)
    P["ts4"] = L(HEAD_H2, 6, bn=False)
    return P


def pack_params(P):
    """Build the fused / stacked weight tensors consumed by the 2 kernels."""
    bf = jnp.bfloat16
    pk = {}
    # fr1 -> fr2 (used by both kernels)
    pk["fr1_w"] = P["fr1"]["w"].astype(bf)                     # (3,64)
    pk["fr1_t"] = P["fr1"]["shift"]
    pk["fr2_w"] = P["fr2"]["w"].astype(bf)                     # (64,128)
    pk["fr2_t"] = P["fr2"]["shift"]

    # frc1 split-K (per-point slice vs per-batch bias slices)
    w = P["frc1"]["w"]                                         # (262,256)
    pk["frc1_wa"] = w[:FEAT_DIM].astype(bf)                    # h2 slice (128,256)
    pk["frc1_wg"] = w[FEAT_DIM:2 * FEAT_DIM]                   # global-feat slice
    pk["frc1_wc"] = w[2 * FEAT_DIM:]                           # one-hot slice
    pk["frc1_t"] = P["frc1"]["shift"]                          # (1,256)
    pk["frc2_w"] = P["frc2"]["w"].astype(bf)                   # (256,128)
    pk["frc2_t"] = P["frc2"]["shift"]

    # merged recon/face hidden layer (frr1 | frf1): (128,128)
    pk["rf_h_w"] = jnp.concatenate([P["frr1"]["w"], P["frf1"]["w"]],
                                   axis=1).astype(bf)
    pk["rf_h_t"] = jnp.concatenate([P["frr1"]["shift"], P["frf1"]["shift"]],
                                   axis=1)
    # merged block-diagonal, lane-padded output (cols 0:3 recon, 3:33 face)
    wo = jnp.zeros((128, 128), jnp.float32)
    wo = wo.at[:64, 0:3].set(P["frr2"]["w"])
    wo = wo.at[64:, 3:3 + FACE_C].set(P["frf2"]["w"])
    to = jnp.zeros((1, 128), jnp.float32)
    to = to.at[:, 0:3].set(P["frr2"]["shift"])
    to = to.at[:, 3:3 + FACE_C].set(P["frf2"]["shift"])
    pk["rf_o_w"] = wo.astype(bf)
    pk["rf_o_t"] = to

    # rg / rr / ts first layers, split-K and stacked along the head axis
    wg1, wr1, wt1 = P["rg1"]["w"], P["rr1"]["w"], P["ts1"]["w"]
    pk["hd1_wa"] = jnp.stack(
        [wg1[:FEAT_DIM], wr1[:FEAT_DIM], wt1[:FEAT_DIM]]).astype(bf)   # (3,128,256)
    pk["hd1_wf"] = jnp.stack(
        [wg1[FEAT_DIM:FEAT_DIM + FEATURES_DIM],
         wr1[FEAT_DIM:FEAT_DIM + FEATURES_DIM],
         wt1[FEAT_DIM:FEAT_DIM + FEATURES_DIM]]).astype(bf)            # (3,6,256)
    pk["hd1_wp"] = wt1[FEAT_DIM + FEATURES_DIM:].astype(bf)            # (3,256)
    pk["hd1_t"] = jnp.concatenate(
        [P["rg1"]["shift"], P["rr1"]["shift"], P["ts1"]["shift"]],
        axis=0)                                                        # (3,256)
    pk["hd2_w"] = jnp.stack([P["rg2"]["w"], P["rr2"]["w"],
                             P["ts2"]["w"]]).astype(bf)                # (3,256,128)
    pk["hd2_t"] = jnp.concatenate([P["rg2"]["shift"], P["rr2"]["shift"],
                                   P["ts2"]["shift"]], axis=0)         # (3,128)
    pk["hd3_w"] = jnp.stack([P["rg3"]["w"], P["rr3"]["w"],
                             P["ts3"]["w"]]).astype(bf)                # (3,128,128)
    pk["hd3_t"] = jnp.concatenate([P["rg3"]["shift"], P["rr3"]["shift"],
                                   P["ts3"]["shift"]], axis=0)
    # tiny pooled conv4 heads (plain jnp on (B, 128) vectors)
    pk["rg4_w"], pk["rg4_t"] = P["rg4"]["w"], P["rg4"]["shift"]
    pk["rr4_w"], pk["rr4_t"] = P["rr4"]["w"], P["rr4"]["shift"]
    pk["ts4_w"], pk["ts4_t"] = P["ts4"]["w"], P["ts4"]["shift"]
    return pk


# ----------------------------------------------------------------------------
# Forward pass (PoseNet9D semantics)
# ----------------------------------------------------------------------------
def posenet9d_forward(pk, points, features, obj_id, train=True):
    B, N, _ = points.shape

    # tiny per-batch reductions: plain jnp (XLA fuses these)
    pts_mean = jnp.mean(points, axis=1, keepdims=True)          # (B,1,3)
    pts_c = points - pts_mean                                   # (B,N,3)

    # kernel 1: per-point MLP + fused global max pool -> only g leaves HBM
    g = face_point_stage(pk, pts_c)                             # (B,1,128) f32

    # per-batch bias of the fuse layer (split-K; replaces concat+broadcast)
    one_hot = jax.nn.one_hot(obj_id, NUM_CLASSES, dtype=jnp.float32)
    bias1 = (g[:, 0, :] @ pk["frc1_wg"] + one_hot @ pk["frc1_wc"]
             + pk["frc1_t"])                                    # (B,256)
    bias1 = bias1[:, None, :]

    # kernel 2 (fused): fuse stack + recon/face heads + rot/ts heads + pool
    rf, pooled = fused_stage(pk, pts_c, features, bias1)
    recon = rf[:, :, 0:3].astype(jnp.float32)
    face = rf[:, :, 3:3 + FACE_C].astype(jnp.float32)

    if train:
        recon = recon + pts_mean
        face_normal = face[:, :, :18].reshape(B, N, 6, 3)
        norm = jnp.linalg.norm(face_normal, axis=-1, keepdims=True)
        # tiny floor only guards against an exactly-zero predicted normal
        face_normal = face_normal / jnp.maximum(norm, 1e-12)
        face_dis = face[:, :, 18:24]
        face_f = jax.nn.sigmoid(face[:, :, 24:30])
    else:
        face_normal = face_dis = face_f = recon = None

    pooled = pooled[:, 0, :]                                    # (B,384)
    g_pool = pooled[:, 0:HEAD_H2]
    r_pool = pooled[:, HEAD_H2:2 * HEAD_H2]
    t_pool = pooled[:, 2 * HEAD_H2:3 * HEAD_H2]

    # Dropout(0.2) -> identity (eval); conv4 heads are tiny -> plain jnp
    green_R_vec = g_pool @ pk["rg4_w"] + pk["rg4_t"]            # (B,4)
    red_R_vec = r_pool @ pk["rr4_w"] + pk["rr4_t"]              # (B,4)
    ts = t_pool @ pk["ts4_w"] + pk["ts4_t"]                     # (B,6)

    p_green_R = green_R_vec[:, 1:] / (
        jnp.linalg.norm(green_R_vec[:, 1:], axis=1, keepdims=True) + 1e-6)
    p_red_R = red_R_vec[:, 1:] / (
        jnp.linalg.norm(red_R_vec[:, 1:], axis=1, keepdims=True) + 1e-6)
    f_green_R = jax.nn.sigmoid(green_R_vec[:, 0])
    f_red_R = jax.nn.sigmoid(red_R_vec[:, 0])

    T, s = ts[:, 0:3], ts[:, 3:6]
    Pred_T = T + pts_mean[:, 0, :]
    Pred_s = s

    return (recon, face_normal, face_dis, face_f,
            p_green_R, p_red_R, f_green_R, f_red_R, Pred_T, Pred_s)


# ----------------------------------------------------------------------------
if __name__ == "__main__":
    key = jax.random.PRNGKey(0)
    kp, kf = jax.random.split(key)

    B, N = 2, 128
    points = jax.random.normal(kp, (B, N, 3), jnp.float32)
    features = jax.random.normal(kf, (B, N, FEATURES_DIM), jnp.float32)
    obj_id = jnp.array([0, 3], dtype=jnp.int32)

    params = build_params(jax.random.PRNGKey(1234))
    packed = pack_params(params)

    fwd = jax.jit(functools.partial(posenet9d_forward, train=True))
    outs = fwd(packed, points, features, obj_id)
    outs = jax.block_until_ready(outs)

    # sanity on shapes
    recon, fn, fd, ff, pg, pr, fg, fr, T, S = outs
    assert recon.shape == (B, N, 3)
    assert fn.shape == (B, N, 6, 3)
    assert fd.shape == (B, N, 6) and ff.shape == (B, N, 6)
    assert pg.shape == (B, 3) and pr.shape == (B, 3)
    assert fg.shape == (B,) and fr.shape == (B,)
    assert T.shape == (B, 3) and S.shape == (B, 3)

    print("KERNEL_OK")
</pallas_src>

<mosaic_0001>
module attributes {stable_mosaic.version = 11 : i64} {
  func.func @face_point_kernel(%arg0: i32, %arg1: i32, %arg2: memref<1x128x3xf32, #tpu.memory_space<vmem>>, %arg3: memref<3x64xbf16, #tpu.memory_space<vmem>>, %arg4: memref<1x64xf32, #tpu.memory_space<vmem>>, %arg5: memref<64x128xbf16, #tpu.memory_space<vmem>>, %arg6: memref<1x128xf32, #tpu.memory_space<vmem>>, %arg7: memref<1x1x128xf32, #tpu.memory_space<vmem>>) attributes {dimension_semantics = [#tpu.dimension_semantics<parallel>, #tpu.dimension_semantics<arbitrary>], iteration_bounds = array<i64: 2, 1>, scalar_prefetch = 0 : i64, scratch_operands = 0 : i64, tpu.core_type = #tpu.core_type<tc>, window_params = [{transform_indices = @transform_0, window_bounds = array<i64: 1, 128, 3>}, {pipeline_mode = #tpu.pipeline_mode<synchronous>, transform_indices = @transform_1, window_bounds = array<i64: 3, 64>}, {pipeline_mode = #tpu.pipeline_mode<synchronous>, transform_indices = @transform_2, window_bounds = array<i64: 1, 64>}, {pipeline_mode = #tpu.pipeline_mode<synchronous>, transform_indices = @transform_3, window_bounds = array<i64: 64, 128>}, {pipeline_mode = #tpu.pipeline_mode<synchronous>, transform_indices = @transform_4, window_bounds = array<i64: 1, 128>}, {transform_indices = @transform_5, window_bounds = array<i64: 1, 1, 128>}]} {
    %c0_i32 = arith.constant 0 : i32
    %0 = arith.cmpi eq, %arg1, %c0_i32 : i32
    %1 = arith.extui %0 : i1 to i32
    %c0_i32_0 = arith.constant 0 : i32
    %2 = arith.cmpi ne, %1, %c0_i32_0 : i32
    scf.if %2 {
      %cst_21 = arith.constant 0.000000e+00 : f32
      %29 = vector.broadcast %cst_21 : f32 to vector<1x1x128xf32>
      %c0_22 = arith.constant 0 : index
      %c0_23 = arith.constant 0 : index
      %c0_24 = arith.constant 0 : index
      %30 = vector.load %arg7[%c0_22, %c0_23, %c0_24] : memref<1x1x128xf32, #tpu.memory_space<vmem>>, vector<1x1x128xf32>
      tpu.vector_store %arg7[%c0_22, %c0_23, %c0_24], %29 {strides = array<i32>} : memref<1x1x128xf32, #tpu.memory_space<vmem>>, vector<1x1x128xf32>,
    } else {
    }
    %c0 = arith.constant 0 : index
    %c0_1 = arith.constant 0 : index
    %c0_2 = arith.constant 0 : index
    %3 = vector.load %arg2[%c0, %c0_1, %c0_2] : memref<1x128x3xf32, #tpu.memory_space<vmem>>, vector<1x128x3xf32>
    %4 = vector.shape_cast %3 : vector<1x128x3xf32> to vector<128x3xf32>
    %5 = arith.truncf %4 : vector<128x3xf32> to vector<128x3xbf16>
    %c0_3 = arith.constant 0 : index
    %c0_4 = arith.constant 0 : index
    %6 = vector.load %arg3[%c0_3, %c0_4] : memref<3x64xbf16, #tpu.memory_space<vmem>>, vector<3x64xbf16>
    %cst = arith.constant dense<0.000000e+00> : vector<128x64xf32>
    %7 = tpu.matmul %5, %6, %cst {dimension_numbers = #tpu.dot_dimension_numbers<[1], [0], [0], [1], [0, 0, 1, 1], [], []>} : vector<128x3xbf16>, vector<3x64xbf16>, vector<128x64xf32> -> vector<128x64xf32>
    %c0_5 = arith.constant 0 : index
    %c0_6 = arith.constant 0 : index
    %8 = vector.load %arg4[%c0_5, %c0_6] : memref<1x64xf32, #tpu.memory_space<vmem>>, vector<1x64xf32>
    %9 = vector.broadcast %8 : vector<1x64xf32> to vector<128x64xf32>
    %10 = arith.addf %7, %9 : vector<128x64xf32>
    %cst_7 = arith.constant 0.000000e+00 : f32
    %11 = vector.broadcast %cst_7 : f32 to vector<128x64xf32>
    %12 = arith.maximumf %10, %11 : vector<128x64xf32>
    %13 = arith.truncf %12 : vector<128x64xf32> to vector<128x64xbf16>
    %c0_8 = arith.constant 0 : index
    %c0_9 = arith.constant 0 : index
    %14 = vector.load %arg5[%c0_8, %c0_9] : memref<64x128xbf16, #tpu.memory_space<vmem>>, vector<64x128xbf16>
    %cst_10 = arith.constant dense<0.000000e+00> : vector<128x128xf32>
    %15 = tpu.matmul %13, %14, %cst_10 {dimension_numbers = #tpu.dot_dimension_numbers<[1], [0], [0], [1], [0, 0, 1, 1], [], []>} : vector<128x64xbf16>, vector<64x128xbf16>, vector<128x128xf32> -> vector<128x128xf32>
    %c0_11 = arith.constant 0 : index
    %c0_12 = arith.constant 0 : index
    %16 = vector.load %arg6[%c0_11, %c0_12] : memref<1x128xf32, #tpu.memory_space<vmem>>, vector<1x128xf32>
    %17 = vector.broadcast %16 : vector<1x128xf32> to vector<128x128xf32>
    %18 = arith.addf %15, %17 : vector<128x128xf32>
    %cst_13 = arith.constant 0.000000e+00 : f32
    %19 = vector.broadcast %cst_13 : f32 to vector<128x128xf32>
    %20 = arith.maximumf %18, %19 : vector<128x128xf32>
    %c0_14 = arith.constant 0 : index
    %c0_15 = arith.constant 0 : index
    %c0_16 = arith.constant 0 : index
    %21 = vector.load %arg7[%c0_14, %c0_15, %c0_16] : memref<1x1x128xf32, #tpu.memory_space<vmem>>, vector<1x1x128xf32>
    %22 = vector.shape_cast %21 : vector<1x1x128xf32> to vector<1x128xf32>
    %cst_17 = arith.constant dense<0xFF800000> : vector<128xf32>
    %23 = vector.multi_reduction <maximumf>, %20, %cst_17 [0] : vector<128x128xf32> to vector<128xf32>
    %24 = vector.shape_cast %23 : vector<128xf32> to vector<1x128xf32>
    %25 = arith.maximumf %22, %24 : vector<1x128xf32>
    %c0_18 = arith.constant 0 : index
    %c0_19 = arith.constant 0 : index
    %c0_20 = arith.constant 0 : index
    %26 = vector.load %arg7[%c0_18, %c0_19, %c0_20] : memref<1x1x128xf32, #tpu.memory_space<vmem>>, vector<1x1x128xf32>
    %27 = vector.shape_cast %26 : vector<1x1x128xf32> to vector<1x128xf32>
    %28 = vector.shape_cast %25 : vector<1x128xf32> to vector<1x1x128xf32>
    tpu.vector_store %arg7[%c0_18, %c0_19, %c0_20], %28 {strides = array<i32>} : memref<1x1x128xf32, #tpu.memory_space<vmem>>, vector<1x1x128xf32>,
    return
  }
  func.func @transform_0(%arg0: i32, %arg1: i32) -> (i32, i32, i32) {
    %c0_i32 = arith.constant 0 : i32
    %c0_i32_0 = arith.constant 0 : i32
    return %arg0, %arg1, %c0_i32 : i32, i32, i32
  }
  func.func @transform_1(%arg0: i32, %arg1: i32) -> (i32, i32) {
    %c0_i32 = arith.constant 0 : i32
    %c0_i32_0 = arith.constant 0 : i32
    %c0_i32_1 = arith.constant 0 : i32
    return %c0_i32, %c0_i32_0 : i32, i32
  }
  func.func @transform_2(%arg0: i32, %arg1: i32) -> (i32, i32) {
    %c0_i32 = arith.constant 0 : i32
    %c0_i32_0 = arith.constant 0 : i32
    %c0_i32_1 = arith.constant 0 : i32
    return %c0_i32, %c0_i32_0 : i32, i32
  }
  func.func @transform_3(%arg0: i32, %arg1: i32) -> (i32, i32) {
    %c0_i32 = arith.constant 0 : i32
    %c0_i32_0 = arith.constant 0 : i32
    %c0_i32_1 = arith.constant 0 : i32
    return %c0_i32, %c0_i32_0 : i32, i32
  }
  func.func @transform_4(%arg0: i32, %arg1: i32) -> (i32, i32) {
    %c0_i32 = arith.constant 0 : i32
    %c0_i32_0 = arith.constant 0 : i32
    %c0_i32_1 = arith.constant 0 : i32
    return %c0_i32, %c0_i32_0 : i32, i32
  }
  func.func @transform_5(%arg0: i32, %arg1: i32) -> (i32, i32, i32) {
    %c0_i32 = arith.constant 0 : i32
    %c0_i32_0 = arith.constant 0 : i32
    %c0_i32_1 = arith.constant 0 : i32
    return %arg0, %c0_i32, %c0_i32_0 : i32, i32, i32
  }
}

module attributes {stable_mosaic.version = 11 : i64} {
  func.func @fused_kernel(%arg0: i32, %arg1: i32, %arg2: memref<1x128x3xf32, #tpu.memory_space<vmem>>, %arg3: memref<1x128x6xf32, #tpu.memory_space<vmem>>, %arg4: memref<1x1x256xf32, #tpu.memory_space<vmem>>, %arg5: memref<3x64xbf16, #tpu.memory_space<vmem>>, %arg6: memref<1x64xf32, #tpu.memory_space<vmem>>, %arg7: memref<64x128xbf16, #tpu.memory_space<vmem>>, %arg8: memref<1x128xf32, #tpu.memory_space<vmem>>, %arg9: memref<128x256xbf16, #tpu.memory_space<vmem>>, %arg10: memref<256x128xbf16, #tpu.memory_space<vmem>>, %arg11: memref<1x128xf32, #tpu.memory_space<vmem>>, %arg12: memref<128x128xbf16, #tpu.memory_space<vmem>>, %arg13: memref<1x128xf32, #tpu.memory_space<vmem>>, %arg14: memref<128x128xbf16, #tpu.memory_space<vmem>>, %arg15: memref<1x128xf32, #tpu.memory_space<vmem>>, %arg16: memref<3x128x256xbf16, #tpu.memory_space<vmem>>, %arg17: memref<3x6x256xbf16, #tpu.memory_space<vmem>>, %arg18: memref<3x256xbf16, #tpu.memory_space<vmem>>, %arg19: memref<3x256xf32, #tpu.memory_space<vmem>>, %arg20: memref<3x256x128xbf16, #tpu.memory_space<vmem>>, %arg21: memref<3x128xf32, #tpu.memory_space<vmem>>, %arg22: memref<3x128x128xbf16, #tpu.memory_space<vmem>>, %arg23: memref<3x128xf32, #tpu.memory_space<vmem>>, %arg24: memref<1x128x128xbf16, #tpu.memory_space<vmem>>, %arg25: memref<1x1x384xf32, #tpu.memory_space<vmem>>) attributes {dimension_semantics = [#tpu.dimension_semantics<parallel>, #tpu.dimension_semantics<arbitrary>], iteration_bounds = array<i64: 2, 1>, scalar_prefetch = 0 : i64, scratch_operands = 0 : i64, tpu.core_type = #tpu.core_type<tc>, window_params = [{transform_indices = @transform_0, window_bounds = array<i64: 1, 128, 3>}, {transform_indices = @transform_1, window_bounds = array<i64: 1, 128, 6>}, {transform_indices = @transform_2, window_bounds = array<i64: 1, 1, 256>}, {pipeline_mode = #tpu.pipeline_mode<synchronous>, transform_indices = @transform_3, window_bounds = array<i64: 3, 64>}, {pipeline_mode = #tpu.pipeline_mode<synchronous>, transform_indices = @transform_4, window_bounds = array<i64: 1, 64>}, {pipeline_mode = #tpu.pipeline_mode<synchronous>, transform_indices = @transform_5, window_bounds = array<i64: 64, 128>}, {pipeline_mode = #tpu.pipeline_mode<synchronous>, transform_indices = @transform_6, window_bounds = array<i64: 1, 128>}, {pipeline_mode = #tpu.pipeline_mode<synchronous>, transform_indices = @transform_7, window_bounds = array<i64: 128, 256>}, {pipeline_mode = #tpu.pipeline_mode<synchronous>, transform_indices = @transform_8, window_bounds = array<i64: 256, 128>}, {pipeline_mode = #tpu.pipeline_mode<synchronous>, transform_indices = @transform_9, window_bounds = array<i64: 1, 128>}, {pipeline_mode = #tpu.pipeline_mode<synchronous>, transform_indices = @transform_10, window_bounds = array<i64: 128, 128>}, {pipeline_mode = #tpu.pipeline_mode<synchronous>, transform_indices = @transform_11, window_bounds = array<i64: 1, 128>}, {pipeline_mode = #tpu.pipeline_mode<synchronous>, transform_indices = @transform_12, window_bounds = array<i64: 128, 128>}, {pipeline_mode = #tpu.pipeline_mode<synchronous>, transform_indices = @transform_13, window_bounds = array<i64: 1, 128>}, {pipeline_mode = #tpu.pipeline_mode<synchronous>, transform_indices = @transform_14, window_bounds = array<i64: 3, 128, 256>}, {pipeline_mode = #tpu.pipeline_mode<synchronous>, transform_indices = @transform_15, window_bounds = array<i64: 3, 6, 256>}, {pipeline_mode = #tpu.pipeline_mode<synchronous>, transform_indices = @transform_16, window_bounds = array<i64: 3, 256>}, {pipeline_mode = #tpu.pipeline_mode<synchronous>, transform_indices = @transform_17, window_bounds = array<i64: 3, 256>}, {pipeline_mode = #tpu.pipeline_mode<synchronous>, transform_indices = @transform_18, window_bounds = array<i64: 3, 256, 128>}, {pipeline_mode = #tpu.pipeline_mode<synchronous>, transform_indices = @transform_19, window_bounds = array<i64: 3, 128>}, {pipeline_mode = #tpu.pipeline_mode<synchronous>, transform_indices = @transform_20, window_bounds = array<i64: 3, 128, 128>}, {pipeline_mode = #tpu.pipeline_mode<synchronous>, transform_indices = @transform_21, window_bounds = array<i64: 3, 128>}, {transform_indices = @transform_22, window_bounds = array<i64: 1, 128, 128>}, {transform_indices = @transform_23, window_bounds = array<i64: 1, 1, 384>}]} {
    %c0_i32 = arith.constant 0 : i32
    %0 = arith.cmpi eq, %arg1, %c0_i32 : i32
    %1 = arith.extui %0 : i1 to i32
    %c0_i32_0 = arith.constant 0 : i32
    %2 = arith.cmpi ne, %1, %c0_i32_0 : i32
    scf.if %2 {
      %cst_129 = arith.constant 0.000000e+00 : f32
      %165 = vector.broadcast %cst_129 : f32 to vector<1x1x384xf32>
      %c0_130 = arith.constant 0 : index
      %c0_131 = arith.constant 0 : index
      %c0_132 = arith.constant 0 : index
      %166 = vector.load %arg25[%c0_130, %c0_131, %c0_132] : memref<1x1x384xf32, #tpu.memory_space<vmem>>, vector<1x1x384xf32>
      tpu.vector_store %arg25[%c0_130, %c0_131, %c0_132], %165 {strides = array<i32>} : memref<1x1x384xf32, #tpu.memory_space<vmem>>, vector<1x1x384xf32>,
    } else {
    }
    %c0 = arith.constant 0 : index
    %c0_1 = arith.constant 0 : index
    %c0_2 = arith.constant 0 : index
    %3 = vector.load %arg2[%c0, %c0_1, %c0_2] : memref<1x128x3xf32, #tpu.memory_space<vmem>>, vector<1x128x3xf32>
    %4 = vector.shape_cast %3 : vector<1x128x3xf32> to vector<128x3xf32>
    %5 = arith.truncf %4 : vector<128x3xf32> to vector<128x3xbf16>
    %c0_3 = arith.constant 0 : index
    %c0_4 = arith.constant 0 : index
    %c0_5 = arith.constant 0 : index
    %6 = vector.load %arg3[%c0_3, %c0_4, %c0_5] : memref<1x128x6xf32, #tpu.memory_space<vmem>>, vector<1x128x6xf32>
    %7 = vector.shape_cast %6 : vector<1x128x6xf32> to vector<128x6xf32>
    %8 = arith.truncf %7 : vector<128x6xf32> to vector<128x6xbf16>
    %c0_6 = arith.constant 0 : index
    %c0_7 = arith.constant 0 : index
    %9 = vector.load %arg5[%c0_6, %c0_7] : memref<3x64xbf16, #tpu.memory_space<vmem>>, vector<3x64xbf16>
    %cst = arith.constant dense<0.000000e+00> : vector<128x64xf32>
    %10 = tpu.matmul %5, %9, %cst {dimension_numbers = #tpu.dot_dimension_numbers<[1], [0], [0], [1], [0, 0, 1, 1], [], []>} : vector<128x3xbf16>, vector<3x64xbf16>, vector<128x64xf32> -> vector<128x64xf32>
    %c0_8 = arith.constant 0 : index
    %c0_9 = arith.constant 0 : index
    %11 = vector.load %arg6[%c0_8, %c0_9] : memref<1x64xf32, #tpu.memory_space<vmem>>, vector<1x64xf32>
    %12 = vector.broadcast %11 : vector<1x64xf32> to vector<128x64xf32>
    %13 = arith.addf %10, %12 : vector<128x64xf32>
    %cst_10 = arith.constant 0.000000e+00 : f32
    %14 = vector.broadcast %cst_10 : f32 to vector<128x64xf32>
    %15 = arith.maximumf %13, %14 : vector<128x64xf32>
    %16 = arith.truncf %15 : vector<128x64xf32> to vector<128x64xbf16>
    %c0_11 = arith.constant 0 : index
    %c0_12 = arith.constant 0 : index
    %17 = vector.load %arg7[%c0_11, %c0_12] : memref<64x128xbf16, #tpu.memory_space<vmem>>, vector<64x128xbf16>
    %cst_13 = arith.constant dense<0.000000e+00> : vector<128x128xf32>
    %18 = tpu.matmul %16, %17, %cst_13 {dimension_numbers = #tpu.dot_dimension_numbers<[1], [0], [0], [1], [0, 0, 1, 1], [], []>} : vector<128x64xbf16>, vector<64x128xbf16>, vector<128x128xf32> -> vector<128x128xf32>
    %c0_14 = arith.constant 0 : index
    %c0_15 = arith.constant 0 : index
    %19 = vector.load %arg8[%c0_14, %c0_15] : memref<1x128xf32, #tpu.memory_space<vmem>>, vector<1x128xf32>
    %20 = vector.broadcast %19 : vector<1x128xf32> to vector<128x128xf32>
    %21 = arith.addf %18, %20 : vector<128x128xf32>
    %cst_16 = arith.constant 0.000000e+00 : f32
    %22 = vector.broadcast %cst_16 : f32 to vector<128x128xf32>
    %23 = arith.maximumf %21, %22 : vector<128x128xf32>
    %24 = arith.truncf %23 : vector<128x128xf32> to vector<128x128xbf16>
    %c0_17 = arith.constant 0 : index
    %c0_18 = arith.constant 0 : index
    %25 = vector.load %arg9[%c0_17, %c0_18] : memref<128x256xbf16, #tpu.memory_space<vmem>>, vector<128x256xbf16>
    %cst_19 = arith.constant dense<0.000000e+00> : vector<128x256xf32>
    %26 = tpu.matmul %24, %25, %cst_19 {dimension_numbers = #tpu.dot_dimension_numbers<[1], [0], [0], [1], [0, 0, 1, 1], [], []>} : vector<128x128xbf16>, vector<128x256xbf16>, vector<128x256xf32> -> vector<128x256xf32>
    %c0_20 = arith.constant 0 : index
    %c0_21 = arith.constant 0 : index
    %c0_22 = arith.constant 0 : index
    %27 = vector.load %arg4[%c0_20, %c0_21, %c0_22] : memref<1x1x256xf32, #tpu.memory_space<vmem>>, vector<1x1x256xf32>
    %28 = vector.shape_cast %27 : vector<1x1x256xf32> to vector<1x256xf32>
    %29 = vector.broadcast %28 : vector<1x256xf32> to vector<128x256xf32>
    %30 = arith.addf %26, %29 : vector<128x256xf32>
    %cst_23 = arith.constant 0.000000e+00 : f32
    %31 = vector.broadcast %cst_23 : f32 to vector<128x256xf32>
    %32 = arith.maximumf %30, %31 : vector<128x256xf32>
    %33 = arith.truncf %32 : vector<128x256xf32> to vector<128x256xbf16>
    %c0_24 = arith.constant 0 : index
    %c0_25 = arith.constant 0 : index
    %34 = vector.load %arg10[%c0_24, %c0_25] : memref<256x128xbf16, #tpu.memory_space<vmem>>, vector<256x128xbf16>
    %cst_26 = arith.constant dense<0.000000e+00> : vector<128x128xf32>
    %35 = tpu.matmul %33, %34, %cst_26 {dimension_numbers = #tpu.dot_dimension_numbers<[1], [0], [0], [1], [0, 0, 1, 1], [], []>} : vector<128x256xbf16>, vector<256x128xbf16>, vector<128x128xf32> -> vector<128x128xf32>
    %c0_27 = arith.constant 0 : index
    %c0_28 = arith.constant 0 : index
    %36 = vector.load %arg11[%c0_27, %c0_28] : memref<1x128xf32, #tpu.memory_space<vmem>>, vector<1x128xf32>
    %37 = vector.broadcast %36 : vector<1x128xf32> to vector<128x128xf32>
    %38 = arith.addf %35, %37 : vector<128x128xf32>
    %cst_29 = arith.constant 0.000000e+00 : f32
    %39 = vector.broadcast %cst_29 : f32 to vector<128x128xf32>
    %40 = arith.maximumf %38, %39 : vector<128x128xf32>
    %41 = arith.truncf %40 : vector<128x128xf32> to vector<128x128xbf16>
    %c0_30 = arith.constant 0 : index
    %c0_31 = arith.constant 0 : index
    %42 = vector.load %arg12[%c0_30, %c0_31] : memref<128x128xbf16, #tpu.memory_space<vmem>>, vector<128x128xbf16>
    %cst_32 = arith.constant dense<0.000000e+00> : vector<128x128xf32>
    %43 = tpu.matmul %41, %42, %cst_32 {dimension_numbers = #tpu.dot_dimension_numbers<[1], [0], [0], [1], [0, 0, 1, 1], [], []>} : vector<128x128xbf16>, vector<128x128xbf16>, vector<128x128xf32> -> vector<128x128xf32>
    %c0_33 = arith.constant 0 : index
    %c0_34 = arith.constant 0 : index
    %44 = vector.load %arg13[%c0_33, %c0_34] : memref<1x128xf32, #tpu.memory_space<vmem>>, vector<1x128xf32>
    %45 = vector.broadcast %44 : vector<1x128xf32> to vector<128x128xf32>
    %46 = arith.addf %43, %45 : vector<128x128xf32>
    %cst_35 = arith.constant 0.000000e+00 : f32
    %47 = vector.broadcast %cst_35 : f32 to vector<128x128xf32>
    %48 = arith.maximumf %46, %47 : vector<128x128xf32>
    %49 = arith.truncf %48 : vector<128x128xf32> to vector<128x128xbf16>
    %c0_36 = arith.constant 0 : index
    %c0_37 = arith.constant 0 : index
    %50 = vector.load %arg14[%c0_36, %c0_37] : memref<128x128xbf16, #tpu.memory_space<vmem>>, vector<128x128xbf16>
    %cst_38 = arith.constant dense<0.000000e+00> : vector<128x128xf32>
    %51 = tpu.matmul %49, %50, %cst_38 {dimension_numbers = #tpu.dot_dimension_numbers<[1], [0], [0], [1], [0, 0, 1, 1], [], []>} : vector<128x128xbf16>, vector<128x128xbf16>, vector<128x128xf32> -> vector<128x128xf32>
    %c0_39 = arith.constant 0 : index
    %c0_40 = arith.constant 0 : index
    %52 = vector.load %arg15[%c0_39, %c0_40] : memref<1x128xf32, #tpu.memory_space<vmem>>, vector<1x128xf32>
    %53 = vector.broadcast %52 : vector<1x128xf32> to vector<128x128xf32>
    %54 = arith.addf %51, %53 : vector<128x128xf32>
    %55 = arith.truncf %54 : vector<128x128xf32> to vector<128x128xbf16>
    %c0_41 = arith.constant 0 : index
    %c0_42 = arith.constant 0 : index
    %c0_43 = arith.constant 0 : index
    %56 = vector.load %arg24[%c0_41, %c0_42, %c0_43] : memref<1x128x128xbf16, #tpu.memory_space<vmem>>, vector<1x128x128xbf16>
    %57 = vector.shape_cast %56 : vector<1x128x128xbf16> to vector<128x128xbf16>
    %58 = vector.shape_cast %55 : vector<128x128xbf16> to vector<1x128x128xbf16>
    tpu.vector_store %arg24[%c0_41, %c0_42, %c0_43], %58 {strides = array<i32>} : memref<1x128x128xbf16, #tpu.memory_space<vmem>>, vector<1x128x128xbf16>,
    %c0_44 = arith.constant 0 : index
    %c0_45 = arith.constant 0 : index
    %c0_46 = arith.constant 0 : index
    %59 = vector.load %arg16[%c0_44, %c0_45, %c0_46] : memref<3x128x256xbf16, #tpu.memory_space<vmem>>, vector<1x128x256xbf16>
    %60 = vector.shape_cast %59 : vector<1x128x256xbf16> to vector<128x256xbf16>
    %cst_47 = arith.constant dense<0.000000e+00> : vector<128x256xf32>
    %61 = tpu.matmul %41, %60, %cst_47 {dimension_numbers = #tpu.dot_dimension_numbers<[1], [0], [0], [1], [0, 0, 1, 1], [], []>} : vector<128x128xbf16>, vector<128x256xbf16>, vector<128x256xf32> -> vector<128x256xf32>
    %c0_48 = arith.constant 0 : index
    %c0_49 = arith.constant 0 : index
    %c0_50 = arith.constant 0 : index
    %62 = vector.load %arg17[%c0_48, %c0_49, %c0_50] : memref<3x6x256xbf16, #tpu.memory_space<vmem>>, vector<1x6x256xbf16>
    %63 = vector.shape_cast %62 : vector<1x6x256xbf16> to vector<6x256xbf16>
    %cst_51 = arith.constant dense<0.000000e+00> : vector<128x256xf32>
    %64 = tpu.matmul %8, %63, %cst_51 {dimension_numbers = #tpu.dot_dimension_numbers<[1], [0], [0], [1], [0, 0, 1, 1], [], []>} : vector<128x6xbf16>, vector<6x256xbf16>, vector<128x256xf32> -> vector<128x256xf32>
    %65 = arith.addf %61, %64 : vector<128x256xf32>
    %c0_52 = arith.constant 0 : index
    %c0_53 = arith.constant 0 : index
    %66 = vector.load %arg19[%c0_52, %c0_53] : memref<3x256xf32, #tpu.memory_space<vmem>>, vector<1x256xf32>
    %67 = vector.broadcast %66 : vector<1x256xf32> to vector<128x256xf32>
    %68 = arith.addf %65, %67 : vector<128x256xf32>
    %cst_54 = arith.constant 0.000000e+00 : f32
    %69 = vector.broadcast %cst_54 : f32 to vector<128x256xf32>
    %70 = arith.maximumf %68, %69 : vector<128x256xf32>
    %71 = arith.truncf %70 : vector<128x256xf32> to vector<128x256xbf16>
    %c0_55 = arith.constant 0 : index
    %c0_56 = arith.constant 0 : index
    %c0_57 = arith.constant 0 : index
    %72 = vector.load %arg20[%c0_55, %c0_56, %c0_57] : memref<3x256x128xbf16, #tpu.memory_space<vmem>>, vector<1x256x128xbf16>
    %73 = vector.shape_cast %72 : vector<1x256x128xbf16> to vector<256x128xbf16>
    %cst_58 = arith.constant dense<0.000000e+00> : vector<128x128xf32>
    %74 = tpu.matmul %71, %73, %cst_58 {dimension_numbers = #tpu.dot_dimension_numbers<[1], [0], [0], [1], [0, 0, 1, 1], [], []>} : vector<128x256xbf16>, vector<256x128xbf16>, vector<128x128xf32> -> vector<128x128xf32>
    %c0_59 = arith.constant 0 : index
    %c0_60 = arith.constant 0 : index
    %75 = vector.load %arg21[%c0_59, %c0_60] : memref<3x128xf32, #tpu.memory_space<vmem>>, vector<1x128xf32>
    %76 = vector.broadcast %75 : vector<1x128xf32> to vector<128x128xf32>
    %77 = arith.addf %74, %76 : vector<128x128xf32>
    %cst_61 = arith.constant 0.000000e+00 : f32
    %78 = vector.broadcast %cst_61 : f32 to vector<128x128xf32>
    %79 = arith.maximumf %77, %78 : vector<128x128xf32>
    %80 = arith.truncf %79 : vector<128x128xf32> to vector<128x128xbf16>
    %c0_62 = arith.constant 0 : index
    %c0_63 = arith.constant 0 : index
    %c0_64 = arith.constant 0 : index
    %81 = vector.load %arg22[%c0_62, %c0_63, %c0_64] : memref<3x128x128xbf16, #tpu.memory_space<vmem>>, vector<1x128x128xbf16>
    %82 = vector.shape_cast %81 : vector<1x128x128xbf16> to vector<128x128xbf16>
    %cst_65 = arith.constant dense<0.000000e+00> : vector<128x128xf32>
    %83 = tpu.matmul %80, %82, %cst_65 {dimension_numbers = #tpu.dot_dimension_numbers<[1], [0], [0], [1], [0, 0, 1, 1], [], []>} : vector<128x128xbf16>, vector<128x128xbf16>, vector<128x128xf32> -> vector<128x128xf32>
    %c0_66 = arith.constant 0 : index
    %c0_67 = arith.constant 0 : index
    %84 = vector.load %arg23[%c0_66, %c0_67] : memref<3x128xf32, #tpu.memory_space<vmem>>, vector<1x128xf32>
    %85 = vector.broadcast %84 : vector<1x128xf32> to vector<128x128xf32>
    %86 = arith.addf %83, %85 : vector<128x128xf32>
    %cst_68 = arith.constant 0.000000e+00 : f32
    %87 = vector.broadcast %cst_68 : f32 to vector<128x128xf32>
    %88 = arith.maximumf %86, %87 : vector<128x128xf32>
    %cst_69 = arith.constant dense<0xFF800000> : vector<128xf32>
    %89 = vector.multi_reduction <maximumf>, %88, %cst_69 [0] : vector<128x128xf32> to vector<128xf32>
    %90 = vector.shape_cast %89 : vector<128xf32> to vector<1x128xf32>
    %c1 = arith.constant 1 : index
    %c0_70 = arith.constant 0 : index
    %c0_71 = arith.constant 0 : index
    %91 = vector.load %arg16[%c1, %c0_70, %c0_71] : memref<3x128x256xbf16, #tpu.memory_space<vmem>>, vector<1x128x256xbf16>
    %92 = vector.shape_cast %91 : vector<1x128x256xbf16> to vector<128x256xbf16>
    %cst_72 = arith.constant dense<0.000000e+00> : vector<128x256xf32>
    %93 = tpu.matmul %41, %92, %cst_72 {dimension_numbers = #tpu.dot_dimension_numbers<[1], [0], [0], [1], [0, 0, 1, 1], [], []>} : vector<128x128xbf16>, vector<128x256xbf16>, vector<128x256xf32> -> vector<128x256xf32>
    %c1_73 = arith.constant 1 : index
    %c0_74 = arith.constant 0 : index
    %c0_75 = arith.constant 0 : index
    %94 = vector.load %arg17[%c1_73, %c0_74, %c0_75] : memref<3x6x256xbf16, #tpu.memory_space<vmem>>, vector<1x6x256xbf16>
    %95 = vector.shape_cast %94 : vector<1x6x256xbf16> to vector<6x256xbf16>
    %cst_76 = arith.constant dense<0.000000e+00> : vector<128x256xf32>
    %96 = tpu.matmul %8, %95, %cst_76 {dimension_numbers = #tpu.dot_dimension_numbers<[1], [0], [0], [1], [0, 0, 1, 1], [], []>} : vector<128x6xbf16>, vector<6x256xbf16>, vector<128x256xf32> -> vector<128x256xf32>
    %97 = arith.addf %93, %96 : vector<128x256xf32>
    %c1_77 = arith.constant 1 : index
    %c0_78 = arith.constant 0 : index
    %98 = vector.load %arg19[%c1_77, %c0_78] : memref<3x256xf32, #tpu.memory_space<vmem>>, vector<1x256xf32>
    %99 = vector.broadcast %98 : vector<1x256xf32> to vector<128x256xf32>
    %100 = arith.addf %97, %99 : vector<128x256xf32>
    %cst_79 = arith.constant 0.000000e+00 : f32
    %101 = vector.broadcast %cst_79 : f32 to vector<128x256xf32>
    %102 = arith.maximumf %100, %101 : vector<128x256xf32>
    %103 = arith.truncf %102 : vector<128x256xf32> to vector<128x256xbf16>
    %c1_80 = arith.constant 1 : index
    %c0_81 = arith.constant 0 : index
    %c0_82 = arith.constant 0 : index
    %104 = vector.load %arg20[%c1_80, %c0_81, %c0_82] : memref<3x256x128xbf16, #tpu.memory_space<vmem>>, vector<1x256x128xbf16>
    %105 = vector.shape_cast %104 : vector<1x256x128xbf16> to vector<256x128xbf16>
    %cst_83 = arith.constant dense<0.000000e+00> : vector<128x128xf32>
    %106 = tpu.matmul %103, %105, %cst_83 {dimension_numbers = #tpu.dot_dimension_numbers<[1], [0], [0], [1], [0, 0, 1, 1], [], []>} : vector<128x256xbf16>, vector<256x128xbf16>, vector<128x128xf32> -> vector<128x128xf32>
    %c1_84 = arith.constant 1 : index
    %c0_85 = arith.constant 0 : index
    %107 = vector.load %arg21[%c1_84, %c0_85] : memref<3x128xf32, #tpu.memory_space<vmem>>, vector<1x128xf32>
    %108 = vector.broadcast %107 : vector<1x128xf32> to vector<128x128xf32>
    %109 = arith.addf %106, %108 : vector<128x128xf32>
    %cst_86 = arith.constant 0.000000e+00 : f32
    %110 = vector.broadcast %cst_86 : f32 to vector<128x128xf32>
    %111 = arith.maximumf %109, %110 : vector<128x128xf32>
    %112 = arith.truncf %111 : vector<128x128xf32> to vector<128x128xbf16>
    %c1_87 = arith.constant 1 : index
    %c0_88 = arith.constant 0 : index
    %c0_89 = arith.constant 0 : index
    %113 = vector.load %arg22[%c1_87, %c0_88, %c0_89] : memref<3x128x128xbf16, #tpu.memory_space<vmem>>, vector<1x128x128xbf16>
    %114 = vector.shape_cast %113 : vector<1x128x128xbf16> to vector<128x128xbf16>
    %cst_90 = arith.constant dense<0.000000e+00> : vector<128x128xf32>
    %115 = tpu.matmul %112, %114, %cst_90 {dimension_numbers = #tpu.dot_dimension_numbers<[1], [0], [0], [1], [0, 0, 1, 1], [], []>} : vector<128x128xbf16>, vector<128x128xbf16>, vector<128x128xf32> -> vector<128x128xf32>
    %c1_91 = arith.constant 1 : index
    %c0_92 = arith.constant 0 : index
    %116 = vector.load %arg23[%c1_91, %c0_92] : memref<3x128xf32, #tpu.memory_space<vmem>>, vector<1x128xf32>
    %117 = vector.broadcast %116 : vector<1x128xf32> to vector<128x128xf32>
    %118 = arith.addf %115, %117 : vector<128x128xf32>
    %cst_93 = arith.constant 0.000000e+00 : f32
    %119 = vector.broadcast %cst_93 : f32 to vector<128x128xf32>
    %120 = arith.maximumf %118, %119 : vector<128x128xf32>
    %cst_94 = arith.constant dense<0xFF800000> : vector<128xf32>
    %121 = vector.multi_reduction <maximumf>, %120, %cst_94 [0] : vector<128x128xf32> to vector<128xf32>
    %122 = vector.shape_cast %121 : vector<128xf32> to vector<1x128xf32>
    %c2 = arith.constant 2 : index
    %c0_95 = arith.constant 0 : index
    %c0_96 = arith.constant 0 : index
    %123 = vector.load %arg16[%c2, %c0_95, %c0_96] : memref<3x128x256xbf16, #tpu.memory_space<vmem>>, vector<1x128x256xbf16>
    %124 = vector.shape_cast %123 : vector<1x128x256xbf16> to vector<128x256xbf16>
    %cst_97 = arith.constant dense<0.000000e+00> : vector<128x256xf32>
    %125 = tpu.matmul %41, %124, %cst_97 {dimension_numbers = #tpu.dot_dimension_numbers<[1], [0], [0], [1], [0, 0, 1, 1], [], []>} : vector<128x128xbf16>, vector<128x256xbf16>, vector<128x256xf32> -> vector<128x256xf32>
    %c2_98 = arith.constant 2 : index
    %c0_99 = arith.constant 0 : index
    %c0_100 = arith.constant 0 : index
    %126 = vector.load %arg17[%c2_98, %c0_99, %c0_100] : memref<3x6x256xbf16, #tpu.memory_space<vmem>>, vector<1x6x256xbf16>
    %127 = vector.shape_cast %126 : vector<1x6x256xbf16> to vector<6x256xbf16>
    %cst_101 = arith.constant dense<0.000000e+00> : vector<128x256xf32>
    %128 = tpu.matmul %8, %127, %cst_101 {dimension_numbers = #tpu.dot_dimension_numbers<[1], [0], [0], [1], [0, 0, 1, 1], [], []>} : vector<128x6xbf16>, vector<6x256xbf16>, vector<128x256xf32> -> vector<128x256xf32>
    %129 = arith.addf %125, %128 : vector<128x256xf32>
    %c0_102 = arith.constant 0 : index
    %c0_103 = arith.constant 0 : index
    %130 = vector.load %arg18[%c0_102, %c0_103] : memref<3x256xbf16, #tpu.memory_space<vmem>>, vector<3x256xbf16>
    %cst_104 = arith.constant dense<0.000000e+00> : vector<128x256xf32>
    %131 = tpu.matmul %5, %130, %cst_104 {dimension_numbers = #tpu.dot_dimension_numbers<[1], [0], [0], [1], [0, 0, 1, 1], [], []>} : vector<128x3xbf16>, vector<3x256xbf16>, vector<128x256xf32> -> vector<128x256xf32>
    %132 = arith.addf %129, %131 : vector<128x256xf32>
    %c2_105 = arith.constant 2 : index
    %c0_106 = arith.constant 0 : index
    %133 = vector.load %arg19[%c2_105, %c0_106] : memref<3x256xf32, #tpu.memory_space<vmem>>, vector<1x256xf32>
    %134 = vector.broadcast %133 : vector<1x256xf32> to vector<128x256xf32>
    %135 = arith.addf %132, %134 : vector<128x256xf32>
    %cst_107 = arith.constant 0.000000e+00 : f32
    %136 = vector.broadcast %cst_107 : f32 to vector<128x256xf32>
    %137 = arith.maximumf %135, %136 : vector<128x256xf32>
    %138 = arith.truncf %137 : vector<128x256xf32> to vector<128x256xbf16>
    %c2_108 = arith.constant 2 : index
    %c0_109 = arith.constant 0 : index
    %c0_110 = arith.constant 0 : index
    %139 = vector.load %arg20[%c2_108, %c0_109, %c0_110] : memref<3x256x128xbf16, #tpu.memory_space<vmem>>, vector<1x256x128xbf16>
    %140 = vector.shape_cast %139 : vector<1x256x128xbf16> to vector<256x128xbf16>
    %cst_111 = arith.constant dense<0.000000e+00> : vector<128x128xf32>
    %141 = tpu.matmul %138, %140, %cst_111 {dimension_numbers = #tpu.dot_dimension_numbers<[1], [0], [0], [1], [0, 0, 1, 1], [], []>} : vector<128x256xbf16>, vector<256x128xbf16>, vector<128x128xf32> -> vector<128x128xf32>
    %c2_112 = arith.constant 2 : index
    %c0_113 = arith.constant 0 : index
    %142 = vector.load %arg21[%c2_112, %c0_113] : memref<3x128xf32, #tpu.memory_space<vmem>>, vector<1x128xf32>
    %143 = vector.broadcast %142 : vector<1x128xf32> to vector<128x128xf32>
    %144 = arith.addf %141, %143 : vector<128x128xf32>
    %cst_114 = arith.constant 0.000000e+00 : f32
    %145 = vector.broadcast %cst_114 : f32 to vector<128x128xf32>
    %146 = arith.maximumf %144, %145 : vector<128x128xf32>
    %147 = arith.truncf %146 : vector<128x128xf32> to vector<128x128xbf16>
    %c2_115 = arith.constant 2 : index
    %c0_116 = arith.constant 0 : index
    %c0_117 = arith.constant 0 : index
    %148 = vector.load %arg22[%c2_115, %c0_116, %c0_117] : memref<3x128x128xbf16, #tpu.memory_space<vmem>>, vector<1x128x128xbf16>
    %149 = vector.shape_cast %148 : vector<1x128x128xbf16> to vector<128x128xbf16>
    %cst_118 = arith.constant dense<0.000000e+00> : vector<128x128xf32>
    %150 = tpu.matmul %147, %149, %cst_118 {dimension_numbers = #tpu.dot_dimension_numbers<[1], [0], [0], [1], [0, 0, 1, 1], [], []>} : vector<128x128xbf16>, vector<128x128xbf16>, vector<128x128xf32> -> vector<128x128xf32>
    %c2_119 = arith.constant 2 : index
    %c0_120 = arith.constant 0 : index
    %151 = vector.load %arg23[%c2_119, %c0_120] : memref<3x128xf32, #tpu.memory_space<vmem>>, vector<1x128xf32>
    %152 = vector.broadcast %151 : vector<1x128xf32> to vector<128x128xf32>
    %153 = arith.addf %150, %152 : vector<128x128xf32>
    %cst_121 = arith.constant 0.000000e+00 : f32
    %154 = vector.broadcast %cst_121 : f32 to vector<128x128xf32>
    %155 = arith.maximumf %153, %154 : vector<128x128xf32>
    %cst_122 = arith.constant dense<0xFF800000> : vector<128xf32>
    %156 = vector.multi_reduction <maximumf>, %155, %cst_122 [0] : vector<128x128xf32> to vector<128xf32>
    %157 = vector.shape_cast %156 : vector<128xf32> to vector<1x128xf32>
    %158 = tpu.concatenate %90, %122, %157 in 1 : vector<1x128xf32>, vector<1x128xf32>, vector<1x128xf32> -> vector<1x384xf32>
    %c0_123 = arith.constant 0 : index
    %c0_124 = arith.constant 0 : index
    %c0_125 = arith.constant 0 : index
    %159 = vector.load %arg25[%c0_123, %c0_124, %c0_125] : memref<1x1x384xf32, #tpu.memory_space<vmem>>, vector<1x1x384xf32>
    %160 = vector.shape_cast %159 : vector<1x1x384xf32> to vector<1x384xf32>
    %161 = arith.maximumf %160, %158 : vector<1x384xf32>
    %c0_126 = arith.constant 0 : index
    %c0_127 = arith.constant 0 : index
    %c0_128 = arith.constant 0 : index
    %162 = vector.load %arg25[%c0_126, %c0_127, %c0_128] : memref<1x1x384xf32, #tpu.memory_space<vmem>>, vector<1x1x384xf32>
    %163 = vector.shape_cast %162 : vector<1x1x384xf32> to vector<1x384xf32>
    %164 = vector.shape_cast %161 : vector<1x384xf32> to vector<1x1x384xf32>
    tpu.vector_store %arg25[%c0_126, %c0_127, %c0_128], %164 {strides = array<i32>} : memref<1x1x384xf32, #tpu.memory_space<vmem>>, vector<1x1x384xf32>,
    return
  }
  func.func @transform_0(%arg0: i32, %arg1: i32) -> (i32, i32, i32) {
    %c0_i32 = arith.constant 0 : i32
    %c0_i32_0 = arith.constant 0 : i32
    return %arg0, %arg1, %c0_i32 : i32, i32, i32
  }
  func.func @transform_1(%arg0: i32, %arg1: i32) -> (i32, i32, i32) {
    %c0_i32 = arith.constant 0 : i32
    %c0_i32_0 = arith.constant 0 : i32
    return %arg0, %arg1, %c0_i32 : i32, i32, i32
  }
  func.func @transform_2(%arg0: i32, %arg1: i32) -> (i32, i32, i32) {
    %c0_i32 = arith.constant 0 : i32
    %c0_i32_0 = arith.constant 0 : i32
    %c0_i32_1 = arith.constant 0 : i32
    return %arg0, %c0_i32, %c0_i32_0 : i32, i32, i32
  }
  func.func @transform_3(%arg0: i32, %arg1: i32) -> (i32, i32) {
    %c0_i32 = arith.constant 0 : i32
    %c0_i32_0 = arith.constant 0 : i32
    %c0_i32_1 = arith.constant 0 : i32
    return %c0_i32, %c0_i32_0 : i32, i32
  }
  func.func @transform_4(%arg0: i32, %arg1: i32) -> (i32, i32) {
    %c0_i32 = arith.constant 0 : i32
    %c0_i32_0 = arith.constant 0 : i32
    %c0_i32_1 = arith.constant 0 : i32
    return %c0_i32, %c0_i32_0 : i32, i32
  }
  func.func @transform_5(%arg0: i32, %arg1: i32) -> (i32, i32) {
    %c0_i32 = arith.constant 0 : i32
    %c0_i32_0 = arith.constant 0 : i32
    %c0_i32_1 = arith.constant 0 : i32
    return %c0_i32, %c0_i32_0 : i32, i32
  }
  func.func @transform_6(%arg0: i32, %arg1: i32) -> (i32, i32) {
    %c0_i32 = arith.constant 0 : i32
    %c0_i32_0 = arith.constant 0 : i32
    %c0_i32_1 = arith.constant 0 : i32
    return %c0_i32, %c0_i32_0 : i32, i32
  }
  func.func @transform_7(%arg0: i32, %arg1: i32) -> (i32, i32) {
    %c0_i32 = arith.constant 0 : i32
    %c0_i32_0 = arith.constant 0 : i32
    %c0_i32_1 = arith.constant 0 : i32
    return %c0_i32, %c0_i32_0 : i32, i32
  }
  func.func @transform_8(%arg0: i32, %arg1: i32) -> (i32, i32) {
    %c0_i32 = arith.constant 0 : i32
    %c0_i32_0 = arith.constant 0 : i32
    %c0_i32_1 = arith.constant 0 : i32
    return %c0_i32, %c0_i32_0 : i32, i32
  }
  func.func @transform_9(%arg0: i32, %arg1: i32) -> (i32, i32) {
    %c0_i32 = arith.constant 0 : i32
    %c0_i32_0 = arith.constant 0 : i32
    %c0_i32_1 = arith.constant 0 : i32
    return %c0_i32, %c0_i32_0 : i32, i32
  }
  func.func @transform_10(%arg0: i32, %arg1: i32) -> (i32, i32) {
    %c0_i32 = arith.constant 0 : i32
    %c0_i32_0 = arith.constant 0 : i32
    %c0_i32_1 = arith.constant 0 : i32
    return %c0_i32, %c0_i32_0 : i32, i32
  }
  func.func @transform_11(%arg0: i32, %arg1: i32) -> (i32, i32) {
    %c0_i32 = arith.constant 0 : i32
    %c0_i32_0 = arith.constant 0 : i32
    %c0_i32_1 = arith.constant 0 : i32
    return %c0_i32, %c0_i32_0 : i32, i32
  }
  func.func @transform_12(%arg0: i32, %arg1: i32) -> (i32, i32) {
    %c0_i32 = arith.constant 0 : i32
    %c0_i32_0 = arith.constant 0 : i32
    %c0_i32_1 = arith.constant 0 : i32
    return %c0_i32, %c0_i32_0 : i32, i32
  }
  func.func @transform_13(%arg0: i32, %arg1: i32) -> (i32, i32) {
    %c0_i32 = arith.constant 0 : i32
    %c0_i32_0 = arith.constant 0 : i32
    %c0_i32_1 = arith.constant 0 : i32
    return %c0_i32, %c0_i32_0 : i32, i32
  }
  func.func @transform_14(%arg0: i32, %arg1: i32) -> (i32, i32, i32) {
    %c0_i32 = arith.constant 0 : i32
    %c0_i32_0 = arith.constant 0 : i32
    %c0_i32_1 = arith.constant 0 : i32
    %c0_i32_2 = arith.constant 0 : i32
    return %c0_i32, %c0_i32_0, %c0_i32_1 : i32, i32, i32
  }
  func.func @transform_15(%arg0: i32, %arg1: i32) -> (i32, i32, i32) {
    %c0_i32 = arith.constant 0 : i32
    %c0_i32_0 = arith.constant 0 : i32
    %c0_i32_1 = arith.constant 0 : i32
    %c0_i32_2 = arith.constant 0 : i32
    return %c0_i32, %c0_i32_0, %c0_i32_1 : i32, i32, i32
  }
  func.func @transform_16(%arg0: i32, %arg1: i32) -> (i32, i32) {
    %c0_i32 = arith.constant 0 : i32
    %c0_i32_0 = arith.constant 0 : i32
    %c0_i32_1 = arith.constant 0 : i32
    return %c0_i32, %c0_i32_0 : i32, i32
  }
  func.func @transform_17(%arg0: i32, %arg1: i32) -> (i32, i32) {
    %c0_i32 = arith.constant 0 : i32
    %c0_i32_0 = arith.constant 0 : i32
    %c0_i32_1 = arith.constant 0 : i32
    return %c0_i32, %c0_i32_0 : i32, i32
  }
  func.func @transform_18(%arg0: i32, %arg1: i32) -> (i32, i32, i32) {
    %c0_i32 = arith.constant 0 : i32
    %c0_i32_0 = arith.constant 0 : i32
    %c0_i32_1 = arith.constant 0 : i32
    %c0_i32_2 = arith.constant 0 : i32
    return %c0_i32, %c0_i32_0, %c0_i32_1 : i32, i32, i32
  }
  func.func @transform_19(%arg0: i32, %arg1: i32) -> (i32, i32) {
    %c0_i32 = arith.constant 0 : i32
    %c0_i32_0 = arith.constant 0 : i32
    %c0_i32_1 = arith.constant 0 : i32
    return %c0_i32, %c0_i32_0 : i32, i32
  }
  func.func @transform_20(%arg0: i32, %arg1: i32) -> (i32, i32, i32) {
    %c0_i32 = arith.constant 0 : i32
    %c0_i32_0 = arith.constant 0 : i32
    %c0_i32_1 = arith.constant 0 : i32
    %c0_i32_2 = arith.constant 0 : i32
    return %c0_i32, %c0_i32_0, %c0_i32_1 : i32, i32, i32
  }
  func.func @transform_21(%arg0: i32, %arg1: i32) -> (i32, i32) {
    %c0_i32 = arith.constant 0 : i32
    %c0_i32_0 = arith.constant 0 : i32
    %c0_i32_1 = arith.constant 0 : i32
    return %c0_i32, %c0_i32_0 : i32, i32
  }
  func.func @transform_22(%arg0: i32, %arg1: i32) -> (i32, i32, i32) {
    %c0_i32 = arith.constant 0 : i32
    %c0_i32_0 = arith.constant 0 : i32
    return %arg0, %arg1, %c0_i32 : i32, i32, i32
  }
  func.func @transform_23(%arg0: i32, %arg1: i32) -> (i32, i32, i32) {
    %c0_i32 = arith.constant 0 : i32
    %c0_i32_0 = arith.constant 0 : i32
    %c0_i32_1 = arith.constant 0 : i32
    return %arg0, %c0_i32, %c0_i32_0 : i32, i32, i32
  }
}

</mosaic_0001>

<llo_original>
// kernel: posenet9d_forward.2
$region0: #{posenet9d_forward.2}
  #allocation0 [shape = 'u32[]', space=smem, size = 0x4, offset = 0x4, fixed_abs, tag = 'smem constant byte address 0x4 - core index']
  #allocation1 [shape = 'u32[144,128]{1,0:T(1,128)}', space=vmem, size = 0x12000, scoped, tag = 'internal scratch']
  %s0 = inlined_call_operand.vmem [shape: f32[2,128,3], index: 0, kind: input, shape index: {}]
  %s1 = inlined_call_operand.vmem [shape: bf16[3,64], index: 1, kind: input, shape index: {}]
  %s2 = inlined_call_operand.vmem [shape: f32[1,64], index: 2, kind: input, shape index: {}]
  %s3 = inlined_call_operand.vmem [shape: bf16[64,128], index: 3, kind: input, shape index: {}]
  %s4 = inlined_call_operand.vmem [shape: f32[1,128], index: 4, kind: input, shape index: {}]
  %s5 = inlined_call_operand.vmem [shape: f32[2,1,128], index: 5, kind: output, shape index: {}]
  %s6 = sld [smem:[#allocation0]]
  $region57: #{posenet9d_forward.2} parent=0
    _
  %s8 = ssub.s32 1, %s6
  %s9 = scalar_select 0, %s8, %s6
  loop: start=0, step=1, limit=4
  $region2: #{posenet9d_forward.2} parent=0 // loop_pre_header
    _
  $region3: #{posenet9d_forward.2} parent=0 // loop_header
    %s11 = sphi 0, %s15
    %p12 = scmp.ge.s32.totalorder %s11, 4
    %s18 = sphi 0, %s30
    %s19 = sphi 0, %s26
    %s20 = sphi 0, %s18
    %s21 = sphi 0, %s19
    %s22 = sphi 0, %s20
    %s23 = sphi 0, %s21
    %s35 = sphi 0, %s37
    %s38 = sphi 0, %s35
    %s39 = sphi 0, %s38
    %s55 = sphi 0, %s39
    %s59 = sphi 0, %s59
    %s61 = sphi 0, %s59
    %s62 = sphi 0, %s61
    %s76 = sphi 0, %s62
    %s80 = sphi 0, %s80
    %s82 = sphi 0, %s80
    %s83 = sphi 0, %s82
    %s97 = sphi 0, %s83
    %s101 = sphi 0, %s101
    %s103 = sphi 0, %s101
    %s104 = sphi 0, %s103
    %s118 = sphi 0, %s104
    %s122 = sphi 0, %s122
    %s124 = sphi 0, %s122
    %s125 = sphi 0, %s124
    %s139 = sphi 0, %s125
    %s145 = sphi 0, %s147
    %s148 = sphi 0, %s145
    %s149 = sphi 0, %s148
    %s165 = sphi 0, %s149
  $region4: #{posenet9d_forward.2} parent=0 // loop_header_branch
    %14 = sbr.rel (%p12) target = $region8
  $region5: #{posenet9d_forward.2} parent=0 // loop_body
    %s16 = ssub.s32 %s11, 1
    %s17 = ssub.s32 %s11, 2
    %s24 = sadd.s32 1, %s19
    %p25 = scmp.ge.s32.totalorder %s24, 1
    %s26 = scalar_select %p25, 0, %s24
    %s27 = sadd.s32 1, %s18
    %s28 = scalar_select %p25, %s27, %s18
    %p29 = scmp.ge.s32.totalorder %s28, 2
    %s30 = scalar_select %p29, 0, %s28
    %s31 = ssub.s32 %s18, %s30
    %s32 = ssub.s32 %s19, %s26
    %s33 = sor.u32 %s31, %s32
    %p34 = scmp.eq.s32.totalorder %s33, 0
    %s36 = sadd.s32 %s35, 1
    %s37 = scalar_select %p34, %s35, %s36
    %p40 = pneg %p34
    %p41 = scmp.eq.s32.totalorder %s11, 1
    %p42 = por %p40, %p41
    %p43 = scmp.ne.s32.totalorder %s35, %s38
    %p44 = scmp.eq.s32.totalorder %s11, 0
    %p45 = por %p43, %p44
    %p46 = scmp.ne.s32.totalorder %s35, %s38
    %p47 = scmp.eq.s32.totalorder %s16, 1
    %p48 = por %p46, %p47
    %p49 = scmp.ne.s32.totalorder %s38, %s39
    %p50 = scmp.eq.s32.totalorder %s16, 0
    %p51 = por %p49, %p50
    %p52 = scmp.ne.s32.totalorder %s38, %s39
    %p53 = scmp.eq.s32.totalorder %s17, 1
    %p54 = por %p52, %p53
    %p56 = scmp.ne.s32.totalorder %s39, %s55
    %p57 = scmp.eq.s32.totalorder %s17, 0
    %p58 = por %p56, %p57
    %s60 = sadd.s32 %s59, 1
    %p63 = scmp.eq.s32.totalorder %s11, 1
    %p64 = scmp.ne.s32.totalorder %s59, %s61
    %p65 = scmp.eq.s32.totalorder %s11, 0
    %p66 = por %p64, %p65
    %p67 = scmp.ne.s32.totalorder %s59, %s61
    %p68 = scmp.eq.s32.totalorder %s16, 1
    %p69 = por %p67, %p68
    %p70 = scmp.ne.s32.totalorder %s61, %s62
    %p71 = scmp.eq.s32.totalorder %s16, 0
    %p72 = por %p70, %p71
    %p73 = scmp.ne.s32.totalorder %s61, %s62
    %p74 = scmp.eq.s32.totalorder %s17, 1
    %p75 = por %p73, %p74
    %p77 = scmp.ne.s32.totalorder %s62, %s76
    %p78 = scmp.eq.s32.totalorder %s17, 0
    %p79 = por %p77, %p78
    %s81 = sadd.s32 %s80, 1
    %p84 = scmp.eq.s32.totalorder %s11, 1
    %p85 = scmp.ne.s32.totalorder %s80, %s82
    %p86 = scmp.eq.s32.totalorder %s11, 0
    %p87 = por %p85, %p86
    %p88 = scmp.ne.s32.totalorder %s80, %s82
    %p89 = scmp.eq.s32.totalorder %s16, 1
    %p90 = por %p88, %p89
    %p91 = scmp.ne.s32.totalorder %s82, %s83
    %p92 = scmp.eq.s32.totalorder %s16, 0
    %p93 = por %p91, %p92
    %p94 = scmp.ne.s32.totalorder %s82, %s83
    %p95 = scmp.eq.s32.totalorder %s17, 1
    %p96 = por %p94, %p95
    %p98 = scmp.ne.s32.totalorder %s83, %s97
    %p99 = scmp.eq.s32.totalorder %s17, 0
    %p100 = por %p98, %p99
    %s102 = sadd.s32 %s101, 1
    %p105 = scmp.eq.s32.totalorder %s11, 1
    %p106 = scmp.ne.s32.totalorder %s101, %s103
    %p107 = scmp.eq.s32.totalorder %s11, 0
    %p108 = por %p106, %p107
    %p109 = scmp.ne.s32.totalorder %s101, %s103
    %p110 = scmp.eq.s32.totalorder %s16, 1
    %p111 = por %p109, %p110
    %p112 = scmp.ne.s32.totalorder %s103, %s104
    %p113 = scmp.eq.s32.totalorder %s16, 0
    %p114 = por %p112, %p113
    %p115 = scmp.ne.s32.totalorder %s103, %s104
    %p116 = scmp.eq.s32.totalorder %s17, 1
    %p117 = por %p115, %p116
    %p119 = scmp.ne.s32.totalorder %s104, %s118
    %p120 = scmp.eq.s32.totalorder %s17, 0
    %p121 = por %p119, %p120
    %s123 = sadd.s32 %s122, 1
    %p126 = scmp.eq.s32.totalorder %s11, 1
    %p127 = scmp.ne.s32.totalorder %s122, %s124
    %p128 = scmp.eq.s32.totalorder %s11, 0
    %p129 = por %p127, %p128
    %p130 = scmp.ne.s32.totalorder %s122, %s124
    %p131 = scmp.eq.s32.totalorder %s16, 1
    %p132 = por %p130, %p131
    %p133 = scmp.ne.s32.totalorder %s124, %s125
    %p134 = scmp.eq.s32.totalorder %s16, 0
    %p135 = por %p133, %p134
    %p136 = scmp.ne.s32.totalorder %s124, %s125
    %p137 = scmp.eq.s32.totalorder %s17, 1
    %p138 = por %p136, %p137
    %p140 = scmp.ne.s32.totalorder %s125, %s139
    %p141 = scmp.eq.s32.totalorder %s17, 0
    %p142 = por %p140, %p141
    %s143 = ssub.s32 %s18, %s30
    %p144 = scmp.eq.s32.totalorder %s143, 0
    %s146 = sadd.s32 %s145, 1
    %s147 = scalar_select %p144, %s145, %s146
    %p150 = pneg %p144
    %p151 = scmp.eq.s32.totalorder %s11, 1
    %p152 = por %p150, %p151
    %p153 = scmp.ne.s32.totalorder %s145, %s148
    %p154 = scmp.eq.s32.totalorder %s11, 0
    %p155 = por %p153, %p154
    %p156 = scmp.ne.s32.totalorder %s145, %s148
    %p157 = scmp.eq.s32.totalorder %s16, 1
    %p158 = por %p156, %p157
    %p159 = scmp.ne.s32.totalorder %s148, %s149
    %p160 = scmp.eq.s32.totalorder %s16, 0
    %p161 = por %p159, %p160
    %p162 = scmp.ne.s32.totalorder %s148, %s149
    %p163 = scmp.eq.s32.totalorder %s17, 1
    %p164 = por %p162, %p163
    %p166 = scmp.ne.s32.totalorder %s149, %s165
    %p167 = scmp.eq.s32.totalorder %s17, 0
    %p168 = por %p166, %p167
    %p169 = scmp.le.s32.totalorder 1, %s11
    %p170 = scmp.lt.s32.totalorder %s11, 3
    %p171 = pnand %p169, %p170
    %p172 = pneg %p171
    // Predicated region
    $region9: #{posenet9d_forward.2} parent=5 // pred_check
      _
    $region10: #{posenet9d_forward.2} parent=5 // pred_check_branch
      %174 = sbr.rel (%p171) target = $region12
    $region11: #{posenet9d_forward.2} parent=5 // pred_region
      %s175 = ssub.s32 %s11, 1
      // Predicated region
      $region13: #{posenet9d_forward.2} parent=11 // pred_check
        %p176 = pneg %p72
      $region14: #{posenet9d_forward.2} parent=11 // pred_check_branch
        %178 = sbr.rel (%p176) target = $region16
      $region15: #{posenet9d_forward.2} parent=11 // pred_region
        _
      $region16: #{posenet9d_forward.2} parent=11 // pred_fallthru
        _
      // Predicated region
      $region17: #{posenet9d_forward.2} parent=11 // pred_check
        %p179 = pneg %p93
      $region18: #{posenet9d_forward.2} parent=11 // pred_check_branch
        %181 = sbr.rel (%p179) target = $region20
      $region19: #{posenet9d_forward.2} parent=11 // pred_region
        _
      $region20: #{posenet9d_forward.2} parent=11 // pred_fallthru
        _
      // Predicated region
      $region21: #{posenet9d_forward.2} parent=11 // pred_check
        %p182 = pneg %p114
      $region22: #{posenet9d_forward.2} parent=11 // pred_check_branch
        %184 = sbr.rel (%p182) target = $region24
      $region23: #{posenet9d_forward.2} parent=11 // pred_region
        _
      $region24: #{posenet9d_forward.2} parent=11 // pred_fallthru
        _
      // Predicated region
      $region25: #{posenet9d_forward.2} parent=11 // pred_check
        %p185 = pneg %p135
      $region26: #{posenet9d_forward.2} parent=11 // pred_check_branch
        %187 = sbr.rel (%p185) target = $region28
      $region27: #{posenet9d_forward.2} parent=11 // pred_region
        _
      $region28: #{posenet9d_forward.2} parent=11 // pred_fallthru
        _
    $region12: #{posenet9d_forward.2} parent=5 // pred_fallthru
      _
    %p188 = scmp.lt.s32.totalorder %s11, 2
    // Predicated region
    $region29: #{posenet9d_forward.2} parent=5 // pred_check
      %p189 = pneg %p188
    $region30: #{posenet9d_forward.2} parent=5 // pred_check_branch
      %191 = sbr.rel (%p189) target = $region32
    $region31: #{posenet9d_forward.2} parent=5 // pred_region
      // Predicated region
      $region33: #{posenet9d_forward.2} parent=31 // pred_check
        %p192 = pneg %p45
      $region34: #{posenet9d_forward.2} parent=31 // pred_check_branch
        %194 = sbr.rel (%p192) target = $region36
      $region35: #{posenet9d_forward.2} parent=31 // pred_region
        %s195 = smul.u32 16, %s19
        %p196 = scmp.lt.s32.totalorder %s18, 1
        %s197 = scalar_select %p196, %s18, 1
        %p198 = scmp.lt.s32.totalorder %s195, 15
        %s199 = scalar_select %p198, %s195, 15
        %s200 = smul.addr %s197, 16
        %s201 = sadd.s32 %s199, %s200
        %s202 = smul.addr %s201, 8
        %s203 = scalar_lea.vmem %s0, %s202
        %s204 = smul.u32 16, %s19
      $region36: #{posenet9d_forward.2} parent=31 // pred_fallthru
        _
    $region32: #{posenet9d_forward.2} parent=5 // pred_fallthru
      _
    %p205 = scmp.le.s32.totalorder 1, %s11
    %p206 = scmp.lt.s32.totalorder %s11, 3
    %p207 = pnand %p205, %p206
    %p208 = pneg %p207
    // Predicated region
    $region37: #{posenet9d_forward.2} parent=5 // pred_check
      _
    $region38: #{posenet9d_forward.2} parent=5 // pred_check_branch
      %210 = sbr.rel (%p207) target = $region40
    $region39: #{posenet9d_forward.2} parent=5 // pred_region
      %s211 = ssub.s32 %s11, 1
      %s212 = smul.u32 16, %s21
      %p213 = scmp.lt.s32.totalorder %s20, 1
      %s214 = scalar_select %p213, %s20, 1
      %p215 = scmp.lt.s32.totalorder %s212, 15
      %s216 = scalar_select %p215, %s212, 15
      %s217 = smul.addr %s214, 16
      %s218 = sadd.s32 %s216, %s217
      %s219 = smul.addr %s218, 8
      %s220 = scalar_lea.vmem %s0, %s219
      %p221 = pneg %p51
      %p222 = pneg %p48
      %p223 = pneg %p72
      %p224 = pneg %p69
      %p225 = pneg %p93
      %p226 = pneg %p90
      %p227 = pneg %p114
      %p228 = pneg %p111
      %p229 = pneg %p135
      %p230 = pneg %p132
      %p231 = pneg %p161
      %p232 = pneg %p158
      %p233 = scmp.lt.s32.totalorder %s20, 1
      %s234 = scalar_select %p233, %s20, 1
      %s235 = scalar_lea.vmem %s5, %s234
      %s236 = smul.u32 16, %s21
      %p237 = scmp.lt.s32.totalorder %s20, 1
      %s238 = scalar_select %p237, %s20, 1
      %p239 = scmp.lt.s32.totalorder %s236, 15
      %s240 = scalar_select %p239, %s236, 15
      %s241 = smul.addr %s238, 16
      %s242 = sadd.s32 %s240, %s241
      %s243 = smul.addr %s242, 8
      %s244 = scalar_lea.vmem %s0, %s243
      %s245 = smul.u32 16, %s21
      %p246 = scmp.lt.s32.totalorder %s20, 1
      %s247 = scalar_select %p246, %s20, 1
      %s248 = scalar_lea.vmem %s5, %s247
      %p250 = scmp.eq.s32.totalorder %s21, 0
      // Predicated region
      $region41: #{posenet9d_forward.2} parent=39 // pred_check
        %p251 = pneg %p250
      $region42: #{posenet9d_forward.2} parent=39 // pred_check_branch
        %253 = sbr.rel (%p251) target = $region44
      $region43: #{posenet9d_forward.2} parent=39 // pred_region
        %254 = vst [vmem:[%s248] sm:$0x1] 0.0
      $region44: #{posenet9d_forward.2} parent=39 // pred_fallthru
        _
      %v255 = vld [vmem:[%s244] sm:$0xff]
      %v256 = vld [vmem:[%s244 + $0x8] sm:$0xff]
      %v257 = vld [vmem:[%s244 + $0x10] sm:$0xff]
      %v258 = vld [vmem:[%s244 + $0x18] sm:$0xff]
      %v259 = vld [vmem:[%s244 + $0x20] sm:$0xff]
      %v260 = vld [vmem:[%s244 + $0x28] sm:$0xff]
      %v261 = vld [vmem:[%s244 + $0x30] sm:$0xff]
      %v262 = vld [vmem:[%s244 + $0x38] sm:$0xff]
      %v263 = vld [vmem:[%s244 + $0x40] sm:$0xff]
      %v264 = vld [vmem:[%s244 + $0x48] sm:$0xff]
      %v265 = vld [vmem:[%s244 + $0x50] sm:$0xff]
      %v266 = vld [vmem:[%s244 + $0x58] sm:$0xff]
      %v267 = vld [vmem:[%s244 + $0x60] sm:$0xff]
      %v268 = vld [vmem:[%s244 + $0x68] sm:$0xff]
      %v269 = vld [vmem:[%s244 + $0x70] sm:$0xff]
      %v270 = vld [vmem:[%s244 + $0x78] sm:$0xff]
      %v271 = vpack.c.bf16 %v256, %v255
      %v272 = vpack.c.bf16 %v258, %v257
      %v273 = vpack.c.bf16 %v260, %v259
      %v274 = vpack.c.bf16 %v262, %v261
      %v275 = vpack.c.bf16 %v264, %v263
      %v276 = vpack.c.bf16 %v266, %v265
      %v277 = vpack.c.bf16 %v268, %v267
      %v278 = vpack.c.bf16 %v270, %v269
      %v279 = vld [vmem:[%s1] sm:$0x3]
      %v280 = vld [vmem:[%s2] sm:$0x1]
      %v282 = vlaneseq
      %v283 = vshrl.u32 %v282, 7
      %v284 = vsub.s32 0, %v283
      %v285 = vrot.slane %v280, %v284
      %vm287 = vcmask 23552
      %v289 = vsel %vm287, %v271, 0
      %v292 = vsel %vm287, %v272, 0
      %v295 = vsel %vm287, %v273, 0
      %v298 = vsel %vm287, %v274, 0
      %v301 = vsel %vm287, %v275, 0
      %v304 = vsel %vm287, %v276, 0
      %v307 = vsel %vm287, %v277, 0
      %v310 = vsel %vm287, %v278, 0
      %vm312 = vcmask 1040384
      %vm313 = vcmask 1041408
      %v314 = vsel %vm312, 4294967295, 65535
      %v315 = vsel %vm313, %v314, 0
      %v317 = vand.u32 %v279, %v315
      %319 = vmatprep.subr.bf16.mxu0 0
      %320 = vmatpush1.bf16.msra.mxu0 0
      %321 = vmatprep.subr.bf16.mxu0 0
      %322 = vmatpush1.bf16.msra.mxu0 0
      %323 = vmatprep.subr.bf16.mxu0 0
      %324 = vmatpush1.bf16.msra.mxu0 0
      %325 = vmatprep.subr.bf16.mxu0 0
      %326 = vmatpush1.bf16.msra.mxu0 0
      %327 = vmatprep.subr.bf16.mxu0 0
      %328 = vmatpush1.bf16.msra.mxu0 0
      %329 = vmatprep.subr.bf16.mxu0 0
      %330 = vmatpush1.bf16.msra.mxu0 0
      %331 = vmatprep.subr.bf16.mxu0 0
      %332 = vmatpush1.bf16.msra.mxu0 0
      %333 = vmatprep.subr.bf16.mxu0 0
      %334 = vmatpush1.bf16.msra.mxu0 %v317
      %335 = vmatprep.subr.bf16.mxu0 0
      %336 = vmatpush2.bf16.msra.mxu0 0
      %337 = vmatprep.subr.bf16.mxu0 0
      %338 = vmatpush2.bf16.msra.mxu0 0
      %339 = vmatprep.subr.bf16.mxu0 0
      %340 = vmatpush2.bf16.msra.mxu0 0
      %341 = vmatprep.subr.bf16.mxu0 0
      %342 = vmatpush2.bf16.msra.mxu0 0
      %343 = vmatprep.subr.bf16.mxu0 0
      %344 = vmatpush2.bf16.msra.mxu0 0
      %345 = vmatprep.subr.bf16.mxu0 0
      %346 = vmatpush2.bf16.msra.mxu0 0
      %347 = vmatprep.subr.bf16.mxu0 0
      %348 = vmatpush2.bf16.msra.mxu0 0
      %349 = vmatprep.subr.bf16.mxu0 0
      %350 = vmatpush2.bf16.msra.mxu0 0
      %351 = vmatprep.mubr.bf16.mxu0 0
      %352 = vmatmul.mubr.bf16.gmra.mxu0 %v289
      %v353 = vpop.f32.mrf.mxu0
      %v354 = vadd.f32 %v285, %v353
      %v355 = vpop.f32.mrf.mxu0
      %v356 = vpop.f32.mrf.mxu0
      %v357 = vadd.f32 %v285, %v356
      %v358 = vpop.f32.mrf.mxu0
      %359 = vmatprep.mubr.bf16.mxu0 0
      %360 = vmatmul.mubr.bf16.gmra.mxu0 %v292
      %v361 = vpop.f32.mrf.mxu0
      %v362 = vadd.f32 %v285, %v361
      %v363 = vpop.f32.mrf.mxu0
      %v364 = vpop.f32.mrf.mxu0
      %v365 = vadd.f32 %v285, %v364
      %v366 = vpop.f32.mrf.mxu0
      %367 = vmatprep.mubr.bf16.mxu0 0
      %368 = vmatmul.mubr.bf16.gmra.mxu0 %v295
      %v369 = vpop.f32.mrf.mxu0
      %v370 = vadd.f32 %v285, %v369
      %v371 = vpop.f32.mrf.mxu0
      %v372 = vpop.f32.mrf.mxu0
      %v373 = vadd.f32 %v285, %v372
      %v374 = vpop.f32.mrf.mxu0
      %375 = vmatprep.mubr.bf16.mxu0 0
      %376 = vmatmul.mubr.bf16.gmra.mxu0 %v298
      %v377 = vpop.f32.mrf.mxu0
      %v378 = vadd.f32 %v285, %v377
      %v379 = vpop.f32.mrf.mxu0
      %v380 = vpop.f32.mrf.mxu0
      %v381 = vadd.f32 %v285, %v380
      %v382 = vpop.f32.mrf.mxu0
      %383 = vmatprep.mubr.bf16.mxu0 0
      %384 = vmatmul.mubr.bf16.gmra.mxu0 %v301
      %v385 = vpop.f32.mrf.mxu0
      %v386 = vadd.f32 %v285, %v385
      %v387 = vpop.f32.mrf.mxu0
      %v388 = vpop.f32.mrf.mxu0
      %v389 = vadd.f32 %v285, %v388
      %v390 = vpop.f32.mrf.mxu0
      %391 = vmatprep.mubr.bf16.mxu0 0
      %392 = vmatmul.mubr.bf16.gmra.mxu0 %v304
      %v393 = vpop.f32.mrf.mxu0
      %v394 = vadd.f32 %v285, %v393
      %v395 = vpop.f32.mrf.mxu0
      %v396 = vpop.f32.mrf.mxu0
      %v397 = vadd.f32 %v285, %v396
      %v398 = vpop.f32.mrf.mxu0
      %399 = vmatprep.mubr.bf16.mxu0 0
      %400 = vmatmul.mubr.bf16.gmra.mxu0 %v307
      %v401 = vpop.f32.mrf.mxu0
      %v402 = vadd.f32 %v285, %v401
      %v403 = vpop.f32.mrf.mxu0
      %v404 = vpop.f32.mrf.mxu0
      %v405 = vadd.f32 %v285, %v404
      %v406 = vpop.f32.mrf.mxu0
      %407 = vmatprep.mubr.bf16.mxu0 0
      %408 = vmatmul.mubr.bf16.gmra.mxu0 %v310
      %v409 = vpop.f32.mrf.mxu0
      %v410 = vadd.f32 %v285, %v409
      %v411 = vpop.f32.mrf.mxu0
      %v412 = vpop.f32.mrf.mxu0
      %v413 = vadd.f32 %v285, %v412
      %v414 = vpop.f32.mrf.mxu0
      %415 = vdwg.mxu0
      %v416 = vmax.f32 %v354, 0.0
      %v417 = vmax.f32 %v357, 0.0
      %v418 = vmax.f32 %v362, 0.0
      %v419 = vmax.f32 %v365, 0.0
      %v420 = vmax.f32 %v370, 0.0
      %v421 = vmax.f32 %v373, 0.0
      %v422 = vmax.f32 %v378, 0.0
      %v423 = vmax.f32 %v381, 0.0
      %v424 = vmax.f32 %v386, 0.0
      %v425 = vmax.f32 %v389, 0.0
      %v426 = vmax.f32 %v394, 0.0
      %v427 = vmax.f32 %v397, 0.0
      %v428 = vmax.f32 %v402, 0.0
      %v429 = vmax.f32 %v405, 0.0
      %v430 = vmax.f32 %v410, 0.0
      %v431 = vmax.f32 %v413, 0.0
      %v432 = vpack.c.bf16 %v417, %v416
      %v433 = vpack.c.bf16 %v419, %v418
      %v434 = vpack.c.bf16 %v421, %v420
      %v435 = vpack.c.bf16 %v423, %v422
      %v436 = vpack.c.bf16 %v425, %v424
      %v437 = vpack.c.bf16 %v427, %v426
      %v438 = vpack.c.bf16 %v429, %v428
      %v439 = vpack.c.bf16 %v431, %v430
      %v440 = vld [vmem:[%s3] sm:$0xf]
      %v441 = vld [vmem:[%s3 + $0x4] sm:$0xf]
      %v442 = vld [vmem:[%s3 + $0x8] sm:$0xf]
      %v443 = vld [vmem:[%s3 + $0xc] sm:$0xf]
      %v444 = vld [vmem:[%s3 + $0x10] sm:$0xf]
      %v445 = vld [vmem:[%s3 + $0x14] sm:$0xf]
      %v446 = vld [vmem:[%s3 + $0x18] sm:$0xf]
      %v447 = vld [vmem:[%s3 + $0x1c] sm:$0xf]
      %v448 = vld [vmem:[%s4] sm:$0x1]
      %v450 = vlaneseq
      %v451 = vshrl.u32 %v450, 7
      %v452 = vsub.s32 0, %v451
      %v453 = vrot.slane %v448, %v452
      %v463 = vunpack.c.l.b16 %v440
      %v464 = vunpack.c.l.b16 %v441
      %v465 = vunpack.c.l.b16 %v442
      %v466 = vunpack.c.l.b16 %v443
      %v467 = vunpack.c.l.b16 %v444
      %v468 = vunpack.c.l.b16 %v445
      %v469 = vunpack.c.l.b16 %v446
      %v470 = vunpack.c.l.b16 %v447
      %v471 = vpack.c.b16 %v464, %v463
      %v472 = vpack.c.b16 %v466, %v465
      %v473 = vpack.c.b16 %v468, %v467
      %v474 = vpack.c.b16 %v470, %v469
      %vm479 = vcmask 523264
      %v481 = vsel %vm479, %v432, 0
      %v484 = vsel %vm479, %v433, 0
      %v487 = vsel %vm479, %v434, 0
      %v490 = vsel %vm479, %v435, 0
      %v493 = vsel %vm479, %v436, 0
      %v496 = vsel %vm479, %v437, 0
      %v499 = vsel %vm479, %v438, 0
      %v502 = vsel %vm479, %v439, 0
      %504 = vmatprep.subr.bf16.mxu0 0
      %505 = vmatpush1.bf16.msra.mxu0 0
      %506 = vmatprep.subr.bf16.mxu0 0
      %507 = vmatpush1.bf16.msra.mxu0 0
      %508 = vmatprep.subr.bf16.mxu0 0
      %509 = vmatpush1.bf16.msra.mxu0 0
      %510 = vmatprep.subr.bf16.mxu0 0
      %511 = vmatpush1.bf16.msra.mxu0 0
      %512 = vmatprep.subr.bf16.mxu0 0
      %513 = vmatpush1.bf16.msra.mxu0 %v474
      %514 = vmatprep.subr.bf16.mxu0 0
      %515 = vmatpush1.bf16.msra.mxu0 %v473
      %516 = vmatprep.subr.bf16.mxu0 0
      %517 = vmatpush1.bf16.msra.mxu0 %v472
      %518 = vmatprep.subr.bf16.mxu0 0
      %519 = vmatpush1.bf16.msra.mxu0 %v471
      %520 = vmatprep.subr.bf16.mxu0 0
      %521 = vmatpush2.bf16.msra.mxu0 0
      %522 = vmatprep.subr.bf16.mxu0 0
      %523 = vmatpush2.bf16.msra.mxu0 0
      %524 = vmatprep.subr.bf16.mxu0 0
      %525 = vmatpush2.bf16.msra.mxu0 0
      %526 = vmatprep.subr.bf16.mxu0 0
      %527 = vmatpush2.bf16.msra.mxu0 0
      %528 = vmatprep.subr.bf16.mxu0 0
      %529 = vmatpush2.bf16.msra.mxu0 0
      %530 = vmatprep.subr.bf16.mxu0 0
      %531 = vmatpush2.bf16.msra.mxu0 0
      %532 = vmatprep.subr.bf16.mxu0 0
      %533 = vmatpush2.bf16.msra.mxu0 0
      %534 = vmatprep.subr.bf16.mxu0 0
      %535 = vmatpush2.bf16.msra.mxu0 0
      %536 = vmatprep.mubr.bf16.mxu0 0
      %537 = vmatmul.mubr.bf16.gmra.mxu0 %v481
      %v538 = vpop.f32.mrf.mxu0
      %v539 = vadd.f32 %v453, %v538
      %v540 = vpop.f32.mrf.mxu0
      %v541 = vpop.f32.mrf.mxu0
      %v542 = vadd.f32 %v453, %v541
      %v543 = vpop.f32.mrf.mxu0
      %544 = vmatprep.mubr.bf16.mxu0 0
      %545 = vmatmul.mubr.bf16.gmra.mxu0 %v484
      %v546 = vpop.f32.mrf.mxu0
      %v547 = vadd.f32 %v453, %v546
      %v548 = vpop.f32.mrf.mxu0
      %v549 = vpop.f32.mrf.mxu0
      %v550 = vadd.f32 %v453, %v549
      %v551 = vpop.f32.mrf.mxu0
      %552 = vmatprep.mubr.bf16.mxu0 0
      %553 = vmatmul.mubr.bf16.gmra.mxu0 %v487
      %v554 = vpop.f32.mrf.mxu0
      %v555 = vadd.f32 %v453, %v554
      %v556 = vpop.f32.mrf.mxu0
      %v557 = vpop.f32.mrf.mxu0
      %v558 = vadd.f32 %v453, %v557
      %v559 = vpop.f32.mrf.mxu0
      %560 = vmatprep.mubr.bf16.mxu0 0
      %561 = vmatmul.mubr.bf16.gmra.mxu0 %v490
      %v562 = vpop.f32.mrf.mxu0
      %v563 = vadd.f32 %v453, %v562
      %v564 = vpop.f32.mrf.mxu0
      %v565 = vpop.f32.mrf.mxu0
      %v566 = vadd.f32 %v453, %v565
      %v567 = vpop.f32.mrf.mxu0
      %568 = vmatprep.mubr.bf16.mxu0 0
      %569 = vmatmul.mubr.bf16.gmra.mxu0 %v493
      %v570 = vpop.f32.mrf.mxu0
      %v571 = vadd.f32 %v453, %v570
      %v572 = vpop.f32.mrf.mxu0
      %v573 = vpop.f32.mrf.mxu0
      %v574 = vadd.f32 %v453, %v573
      %v575 = vpop.f32.mrf.mxu0
      %576 = vmatprep.mubr.bf16.mxu0 0
      %577 = vmatmul.mubr.bf16.gmra.mxu0 %v496
      %v578 = vpop.f32.mrf.mxu0
      %v579 = vadd.f32 %v453, %v578
      %v580 = vpop.f32.mrf.mxu0
      %v581 = vpop.f32.mrf.mxu0
      %v582 = vadd.f32 %v453, %v581
      %v583 = vpop.f32.mrf.mxu0
      %584 = vmatprep.mubr.bf16.mxu0 0
      %585 = vmatmul.mubr.bf16.gmra.mxu0 %v499
      %v586 = vpop.f32.mrf.mxu0
      %v587 = vadd.f32 %v453, %v586
      %v588 = vpop.f32.mrf.mxu0
      %v589 = vpop.f32.mrf.mxu0
      %v590 = vadd.f32 %v453, %v589
      %v591 = vpop.f32.mrf.mxu0
      %592 = vmatprep.mubr.bf16.mxu0 0
      %593 = vmatmul.mubr.bf16.gmra.mxu0 %v502
      %v594 = vpop.f32.mrf.mxu0
      %v595 = vadd.f32 %v453, %v594
      %v596 = vpop.f32.mrf.mxu0
      %v597 = vpop.f32.mrf.mxu0
      %v598 = vadd.f32 %v453, %v597
      %v599 = vpop.f32.mrf.mxu0
      %600 = vdwg.mxu0
      %v601 = vmax.f32 %v539, 0.0
      %v602 = vmax.f32 %v542, 0.0
      %v603 = vmax.f32 %v547, 0.0
      %v604 = vmax.f32 %v550, 0.0
      %v605 = vmax.f32 %v555, 0.0
      %v606 = vmax.f32 %v558, 0.0
      %v607 = vmax.f32 %v563, 0.0
      %v608 = vmax.f32 %v566, 0.0
      %v609 = vmax.f32 %v571, 0.0
      %v610 = vmax.f32 %v574, 0.0
      %v611 = vmax.f32 %v579, 0.0
      %v612 = vmax.f32 %v582, 0.0
      %v613 = vmax.f32 %v587, 0.0
      %v614 = vmax.f32 %v590, 0.0
      %v615 = vmax.f32 %v595, 0.0
      %v616 = vmax.f32 %v598, 0.0
      %v617 = vld [vmem:[%s248] sm:$0x1]
      %v618 = vmax.f32 %v601, %v605
      %v619 = vmax.f32 %v602, %v606
      %v620 = vmax.f32 %v603, %v607
      %v621 = vmax.f32 %v604, %v608
      %v622 = vmax.f32 %v618, %v609
      %v623 = vmax.f32 %v619, %v610
      %v624 = vmax.f32 %v620, %v611
      %v625 = vmax.f32 %v621, %v612
      %v626 = vmax.f32 %v622, %v613
      %v627 = vmax.f32 %v623, %v614
      %v628 = vmax.f32 %v624, %v615
      %v629 = vmax.f32 %v625, %v616
      %v630 = vmax.f32 %v626, %v627
      %v631 = vmax.f32 %v628, %v629
      %v632 = vmax.f32 %v630, %v631
      %v633 = vrot.slane %v632, 4
      %v634 = vmax.f32 %v632, %v633
      %v635 = vrot.slane %v634, 2
      %v636 = vmax.f32 %v634, %v635
      %v637 = vrot.slane %v636, 1
      %v638 = vmax.f32 %v636, %v637
      %v639 = vmax.f32 %v617, %v638
      %640 = vst [vmem:[%s248] sm:$0x1] %v639
      %p641 = scmp.lt.s32.totalorder %s20, 1
      %s642 = scalar_select %p641, %s20, 1
      %s643 = scalar_lea.vmem %s5, %s642
      // Predicated region
      $region45: #{posenet9d_forward.2} parent=39 // pred_check
        %p644 = pneg %p158
      $region46: #{posenet9d_forward.2} parent=39 // pred_check_branch
        %646 = sbr.rel (%p644) target = $region48
      $region47: #{posenet9d_forward.2} parent=39 // pred_region
        _
      $region48: #{posenet9d_forward.2} parent=39 // pred_fallthru
        _
    $region40: #{posenet9d_forward.2} parent=5 // pred_fallthru
      _
    %p647 = scmp.le.s32.totalorder 2, %s11
    // Predicated region
    $region49: #{posenet9d_forward.2} parent=5 // pred_check
      %p648 = pneg %p647
    $region50: #{posenet9d_forward.2} parent=5 // pred_check_branch
      %650 = sbr.rel (%p648) target = $region52
    $region51: #{posenet9d_forward.2} parent=5 // pred_region
      %s651 = ssub.s32 %s11, 2
      // Predicated region
      $region53: #{posenet9d_forward.2} parent=51 // pred_check
        %p652 = pneg %p164
      $region54: #{posenet9d_forward.2} parent=51 // pred_check_branch
        %654 = sbr.rel (%p652) target = $region56
      $region55: #{posenet9d_forward.2} parent=51 // pred_region
        %p655 = scmp.lt.s32.totalorder %s22, 1
        %s656 = scalar_select %p655, %s22, 1
        %s657 = scalar_lea.vmem %s5, %s656
      $region56: #{posenet9d_forward.2} parent=51 // pred_fallthru
        _
    $region52: #{posenet9d_forward.2} parent=5 // pred_fallthru
      _
  $region6: #{posenet9d_forward.2} parent=0 // loop_footer
    %s15 = sadd.s32 1, %s11
  $region7: #{posenet9d_forward.2} parent=0 // loop_footer_branch
    %10 = sbr.rel target = $region3
  $region8: #{posenet9d_forward.2} parent=0 // loop_exit
    _

// kernel: posenet9d_forward.3
$region0: #{posenet9d_forward.3}
  #allocation0 [shape = 'u32[]', space=smem, size = 0x4, offset = 0x4, fixed_abs, tag = 'smem constant byte address 0x4 - core index']
  #allocation1 [shape = 'u32[144,128]{1,0:T(1,128)}', space=vmem, size = 0x12000, scoped, tag = 'internal scratch']
  %s0 = inlined_call_operand.vmem [shape: f32[2,128,3], index: 0, kind: input, shape index: {}]
  %s1 = inlined_call_operand.vmem [shape: f32[2,128,6], index: 1, kind: input, shape index: {}]
  %s2 = inlined_call_operand.vmem [shape: f32[2,1,256], index: 2, kind: input, shape index: {}]
  %s3 = inlined_call_operand.vmem [shape: bf16[3,64], index: 3, kind: input, shape index: {}]
  %s4 = inlined_call_operand.vmem [shape: f32[1,64], index: 4, kind: input, shape index: {}]
  %s5 = inlined_call_operand.vmem [shape: bf16[64,128], index: 5, kind: input, shape index: {}]
  %s6 = inlined_call_operand.vmem [shape: f32[1,128], index: 6, kind: input, shape index: {}]
  %s7 = inlined_call_operand.vmem [shape: bf16[128,256], index: 7, kind: input, shape index: {}]
  %s8 = inlined_call_operand.vmem [shape: bf16[256,128], index: 8, kind: input, shape index: {}]
  %s9 = inlined_call_operand.vmem [shape: f32[1,128], index: 9, kind: input, shape index: {}]
  %s10 = inlined_call_operand.vmem [shape: bf16[128,128], index: 10, kind: input, shape index: {}]
  %s11 = inlined_call_operand.vmem [shape: f32[1,128], index: 11, kind: input, shape index: {}]
  %s12 = inlined_call_operand.vmem [shape: bf16[128,128], index: 12, kind: input, shape index: {}]
  %s13 = inlined_call_operand.vmem [shape: f32[1,128], index: 13, kind: input, shape index: {}]
  %s14 = inlined_call_operand.vmem [shape: bf16[3,128,256], index: 14, kind: input, shape index: {}]
  %s15 = inlined_call_operand.vmem [shape: bf16[3,6,256], index: 15, kind: input, shape index: {}]
  %s16 = inlined_call_operand.vmem [shape: bf16[3,256], index: 16, kind: input, shape index: {}]
  %s17 = inlined_call_operand.vmem [shape: f32[3,256], index: 17, kind: input, shape index: {}]
  %s18 = inlined_call_operand.vmem [shape: bf16[3,256,128], index: 18, kind: input, shape index: {}]
  %s19 = inlined_call_operand.vmem [shape: f32[3,128], index: 19, kind: input, shape index: {}]
  %s20 = inlined_call_operand.vmem [shape: bf16[3,128,128], index: 20, kind: input, shape index: {}]
  %s21 = inlined_call_operand.vmem [shape: f32[3,128], index: 21, kind: input, shape index: {}]
  %s22 = inlined_call_operand.vmem [shape: bf16[2,128,128], index: 22, kind: output, shape index: {0}]
  %s23 = inlined_call_operand.vmem [shape: f32[2,1,384], index: 23, kind: output, shape index: {1}]
  %24 = xla_tuple %s22, %s23
  %s25 = sld [smem:[#allocation0]]
  $region133: #{posenet9d_forward.3} parent=0
    _
  %s27 = ssub.s32 1, %s25
  %s28 = scalar_select 0, %s27, %s25
  loop: start=0, step=1, limit=4
  $region2: #{posenet9d_forward.3} parent=0 // loop_pre_header
    _
  $region3: #{posenet9d_forward.3} parent=0 // loop_header
    %s30 = sphi 0, %s34
    %p31 = scmp.ge.s32.totalorder %s30, 4
    %s37 = sphi 0, %s49
    %s38 = sphi 0, %s45
    %s39 = sphi 0, %s37
    %s40 = sphi 0, %s38
    %s41 = sphi 0, %s39
    %s42 = sphi 0, %s40
    %s54 = sphi 0, %s56
    %s57 = sphi 0, %s54
    %s58 = sphi 0, %s57
    %s74 = sphi 0, %s58
    %s82 = sphi 0, %s84
    %s85 = sphi 0, %s82
    %s86 = sphi 0, %s85
    %s102 = sphi 0, %s86
    %s108 = sphi 0, %s110
    %s111 = sphi 0, %s108
    %s112 = sphi 0, %s111
    %s128 = sphi 0, %s112
    %s132 = sphi 0, %s132
    %s134 = sphi 0, %s132
    %s135 = sphi 0, %s134
    %s149 = sphi 0, %s135
    %s153 = sphi 0, %s153
    %s155 = sphi 0, %s153
    %s156 = sphi 0, %s155
    %s170 = sphi 0, %s156
    %s174 = sphi 0, %s174
    %s176 = sphi 0, %s174
    %s177 = sphi 0, %s176
    %s191 = sphi 0, %s177
    %s195 = sphi 0, %s195
    %s197 = sphi 0, %s195
    %s198 = sphi 0, %s197
    %s212 = sphi 0, %s198
    %s216 = sphi 0, %s216
    %s218 = sphi 0, %s216
    %s219 = sphi 0, %s218
    %s233 = sphi 0, %s219
    %s237 = sphi 0, %s237
    %s239 = sphi 0, %s237
    %s240 = sphi 0, %s239
    %s254 = sphi 0, %s240
    %s258 = sphi 0, %s258
    %s260 = sphi 0, %s258
    %s261 = sphi 0, %s260
    %s275 = sphi 0, %s261
    %s279 = sphi 0, %s279
    %s281 = sphi 0, %s279
    %s282 = sphi 0, %s281
    %s296 = sphi 0, %s282
    %s300 = sphi 0, %s300
    %s302 = sphi 0, %s300
    %s303 = sphi 0, %s302
    %s317 = sphi 0, %s303
    %s321 = sphi 0, %s321
    %s323 = sphi 0, %s321
    %s324 = sphi 0, %s323
    %s338 = sphi 0, %s324
    %s342 = sphi 0, %s342
    %s344 = sphi 0, %s342
    %s345 = sphi 0, %s344
    %s359 = sphi 0, %s345
    %s363 = sphi 0, %s363
    %s365 = sphi 0, %s363
    %s366 = sphi 0, %s365
    %s380 = sphi 0, %s366
    %s384 = sphi 0, %s384
    %s386 = sphi 0, %s384
    %s387 = sphi 0, %s386
    %s401 = sphi 0, %s387
    %s405 = sphi 0, %s405
    %s407 = sphi 0, %s405
    %s408 = sphi 0, %s407
    %s422 = sphi 0, %s408
    %s426 = sphi 0, %s426
    %s428 = sphi 0, %s426
    %s429 = sphi 0, %s428
    %s443 = sphi 0, %s429
    %s447 = sphi 0, %s447
    %s449 = sphi 0, %s447
    %s450 = sphi 0, %s449
    %s464 = sphi 0, %s450
    %s468 = sphi 0, %s468
    %s470 = sphi 0, %s468
    %s471 = sphi 0, %s470
    %s485 = sphi 0, %s471
    %s489 = sphi 0, %s489
    %s491 = sphi 0, %s489
    %s492 = sphi 0, %s491
    %s506 = sphi 0, %s492
    %s510 = sphi 0, %s510
    %s512 = sphi 0, %s510
    %s513 = sphi 0, %s512
    %s527 = sphi 0, %s513
    %s535 = sphi 0, %s537
    %s538 = sphi 0, %s535
    %s539 = sphi 0, %s538
    %s555 = sphi 0, %s539
    %s561 = sphi 0, %s563
    %s564 = sphi 0, %s561
    %s565 = sphi 0, %s564
    %s581 = sphi 0, %s565
  $region4: #{posenet9d_forward.3} parent=0 // loop_header_branch
    %33 = sbr.rel (%p31) target = $region8
  $region5: #{posenet9d_forward.3} parent=0 // loop_body
    %s35 = ssub.s32 %s30, 1
    %s36 = ssub.s32 %s30, 2
    %s43 = sadd.s32 1, %s38
    %p44 = scmp.ge.s32.totalorder %s43, 1
    %s45 = scalar_select %p44, 0, %s43
    %s46 = sadd.s32 1, %s37
    %s47 = scalar_select %p44, %s46, %s37
    %p48 = scmp.ge.s32.totalorder %s47, 2
    %s49 = scalar_select %p48, 0, %s47
    %s50 = ssub.s32 %s37, %s49
    %s51 = ssub.s32 %s38, %s45
    %s52 = sor.u32 %s50, %s51
    %p53 = scmp.eq.s32.totalorder %s52, 0
    %s55 = sadd.s32 %s54, 1
    %s56 = scalar_select %p53, %s54, %s55
    %p59 = pneg %p53
    %p60 = scmp.eq.s32.totalorder %s30, 1
    %p61 = por %p59, %p60
    %p62 = scmp.ne.s32.totalorder %s54, %s57
    %p63 = scmp.eq.s32.totalorder %s30, 0
    %p64 = por %p62, %p63
    %p65 = scmp.ne.s32.totalorder %s54, %s57
    %p66 = scmp.eq.s32.totalorder %s35, 1
    %p67 = por %p65, %p66
    %p68 = scmp.ne.s32.totalorder %s57, %s58
    %p69 = scmp.eq.s32.totalorder %s35, 0
    %p70 = por %p68, %p69
    %p71 = scmp.ne.s32.totalorder %s57, %s58
    %p72 = scmp.eq.s32.totalorder %s36, 1
    %p73 = por %p71, %p72
    %p75 = scmp.ne.s32.totalorder %s58, %s74
    %p76 = scmp.eq.s32.totalorder %s36, 0
    %p77 = por %p75, %p76
    %s78 = ssub.s32 %s37, %s49
    %s79 = ssub.s32 %s38, %s45
    %s80 = sor.u32 %s78, %s79
    %p81 = scmp.eq.s32.totalorder %s80, 0
    %s83 = sadd.s32 %s82, 1
    %s84 = scalar_select %p81, %s82, %s83
    %p87 = pneg %p81
    %p88 = scmp.eq.s32.totalorder %s30, 1
    %p89 = por %p87, %p88
    %p90 = scmp.ne.s32.totalorder %s82, %s85
    %p91 = scmp.eq.s32.totalorder %s30, 0
    %p92 = por %p90, %p91
    %p93 = scmp.ne.s32.totalorder %s82, %s85
    %p94 = scmp.eq.s32.totalorder %s35, 1
    %p95 = por %p93, %p94
    %p96 = scmp.ne.s32.totalorder %s85, %s86
    %p97 = scmp.eq.s32.totalorder %s35, 0
    %p98 = por %p96, %p97
    %p99 = scmp.ne.s32.totalorder %s85, %s86
    %p100 = scmp.eq.s32.totalorder %s36, 1
    %p101 = por %p99, %p100
    %p103 = scmp.ne.s32.totalorder %s86, %s102
    %p104 = scmp.eq.s32.totalorder %s36, 0
    %p105 = por %p103, %p104
    %s106 = ssub.s32 %s37, %s49
    %p107 = scmp.eq.s32.totalorder %s106, 0
    %s109 = sadd.s32 %s108, 1
    %s110 = scalar_select %p107, %s108, %s109
    %p113 = pneg %p107
    %p114 = scmp.eq.s32.totalorder %s30, 1
    %p115 = por %p113, %p114
    %p116 = scmp.ne.s32.totalorder %s108, %s111
    %p117 = scmp.eq.s32.totalorder %s30, 0
    %p118 = por %p116, %p117
    %p119 = scmp.ne.s32.totalorder %s108, %s111
    %p120 = scmp.eq.s32.totalorder %s35, 1
    %p121 = por %p119, %p120
    %p122 = scmp.ne.s32.totalorder %s111, %s112
    %p123 = scmp.eq.s32.totalorder %s35, 0
    %p124 = por %p122, %p123
    %p125 = scmp.ne.s32.totalorder %s111, %s112
    %p126 = scmp.eq.s32.totalorder %s36, 1
    %p127 = por %p125, %p126
    %p129 = scmp.ne.s32.totalorder %s112, %s128
    %p130 = scmp.eq.s32.totalorder %s36, 0
    %p131 = por %p129, %p130
    %s133 = sadd.s32 %s132, 1
    %p136 = scmp.eq.s32.totalorder %s30, 1
    %p137 = scmp.ne.s32.totalorder %s132, %s134
    %p138 = scmp.eq.s32.totalorder %s30, 0
    %p139 = por %p137, %p138
    %p140 = scmp.ne.s32.totalorder %s132, %s134
    %p141 = scmp.eq.s32.totalorder %s35, 1
    %p142 = por %p140, %p141
    %p143 = scmp.ne.s32.totalorder %s134, %s135
    %p144 = scmp.eq.s32.totalorder %s35, 0
    %p145 = por %p143, %p144
    %p146 = scmp.ne.s32.totalorder %s134, %s135
    %p147 = scmp.eq.s32.totalorder %s36, 1
    %p148 = por %p146, %p147
    %p150 = scmp.ne.s32.totalorder %s135, %s149
    %p151 = scmp.eq.s32.totalorder %s36, 0
    %p152 = por %p150, %p151
    %s154 = sadd.s32 %s153, 1
    %p157 = scmp.eq.s32.totalorder %s30, 1
    %p158 = scmp.ne.s32.totalorder %s153, %s155
    %p159 = scmp.eq.s32.totalorder %s30, 0
    %p160 = por %p158, %p159
    %p161 = scmp.ne.s32.totalorder %s153, %s155
    %p162 = scmp.eq.s32.totalorder %s35, 1
    %p163 = por %p161, %p162
    %p164 = scmp.ne.s32.totalorder %s155, %s156
    %p165 = scmp.eq.s32.totalorder %s35, 0
    %p166 = por %p164, %p165
    %p167 = scmp.ne.s32.totalorder %s155, %s156
    %p168 = scmp.eq.s32.totalorder %s36, 1
    %p169 = por %p167, %p168
    %p171 = scmp.ne.s32.totalorder %s156, %s170
    %p172 = scmp.eq.s32.totalorder %s36, 0
    %p173 = por %p171, %p172
    %s175 = sadd.s32 %s174, 1
    %p178 = scmp.eq.s32.totalorder %s30, 1
    %p179 = scmp.ne.s32.totalorder %s174, %s176
    %p180 = scmp.eq.s32.totalorder %s30, 0
    %p181 = por %p179, %p180
    %p182 = scmp.ne.s32.totalorder %s174, %s176
    %p183 = scmp.eq.s32.totalorder %s35, 1
    %p184 = por %p182, %p183
    %p185 = scmp.ne.s32.totalorder %s176, %s177
    %p186 = scmp.eq.s32.totalorder %s35, 0
    %p187 = por %p185, %p186
    %p188 = scmp.ne.s32.totalorder %s176, %s177
    %p189 = scmp.eq.s32.totalorder %s36, 1
    %p190 = por %p188, %p189
    %p192 = scmp.ne.s32.totalorder %s177, %s191
    %p193 = scmp.eq.s32.totalorder %s36, 0
    %p194 = por %p192, %p193
    %s196 = sadd.s32 %s195, 1
    %p199 = scmp.eq.s32.totalorder %s30, 1
    %p200 = scmp.ne.s32.totalorder %s195, %s197
    %p201 = scmp.eq.s32.totalorder %s30, 0
    %p202 = por %p200, %p201
    %p203 = scmp.ne.s32.totalorder %s195, %s197
    %p204 = scmp.eq.s32.totalorder %s35, 1
    %p205 = por %p203, %p204
    %p206 = scmp.ne.s32.totalorder %s197, %s198
    %p207 = scmp.eq.s32.totalorder %s35, 0
    %p208 = por %p206, %p207
    %p209 = scmp.ne.s32.totalorder %s197, %s198
    %p210 = scmp.eq.s32.totalorder %s36, 1
    %p211 = por %p209, %p210
    %p213 = scmp.ne.s32.totalorder %s198, %s212
    %p214 = scmp.eq.s32.totalorder %s36, 0
    %p215 = por %p213, %p214
    %s217 = sadd.s32 %s216, 1
    %p220 = scmp.eq.s32.totalorder %s30, 1
    %p221 = scmp.ne.s32.totalorder %s216, %s218
    %p222 = scmp.eq.s32.totalorder %s30, 0
    %p223 = por %p221, %p222
    %p224 = scmp.ne.s32.totalorder %s216, %s218
    %p225 = scmp.eq.s32.totalorder %s35, 1
    %p226 = por %p224, %p225
    %p227 = scmp.ne.s32.totalorder %s218, %s219
    %p228 = scmp.eq.s32.totalorder %s35, 0
    %p229 = por %p227, %p228
    %p230 = scmp.ne.s32.totalorder %s218, %s219
    %p231 = scmp.eq.s32.totalorder %s36, 1
    %p232 = por %p230, %p231
    %p234 = scmp.ne.s32.totalorder %s219, %s233
    %p235 = scmp.eq.s32.totalorder %s36, 0
    %p236 = por %p234, %p235
    %s238 = sadd.s32 %s237, 1
    %p241 = scmp.eq.s32.totalorder %s30, 1
    %p242 = scmp.ne.s32.totalorder %s237, %s239
    %p243 = scmp.eq.s32.totalorder %s30, 0
    %p244 = por %p242, %p243
    %p245 = scmp.ne.s32.totalorder %s237, %s239
    %p246 = scmp.eq.s32.totalorder %s35, 1
    %p247 = por %p245, %p246
    %p248 = scmp.ne.s32.totalorder %s239, %s240
    %p249 = scmp.eq.s32.totalorder %s35, 0
    %p250 = por %p248, %p249
    %p251 = scmp.ne.s32.totalorder %s239, %s240
    %p252 = scmp.eq.s32.totalorder %s36, 1
    %p253 = por %p251, %p252
    %p255 = scmp.ne.s32.totalorder %s240, %s254
    %p256 = scmp.eq.s32.totalorder %s36, 0
    %p257 = por %p255, %p256
    %s259 = sadd.s32 %s258, 1
    %p262 = scmp.eq.s32.totalorder %s30, 1
    %p263 = scmp.ne.s32.totalorder %s258, %s260
    %p264 = scmp.eq.s32.totalorder %s30, 0
    %p265 = por %p263, %p264
    %p266 = scmp.ne.s32.totalorder %s258, %s260
    %p267 = scmp.eq.s32.totalorder %s35, 1
    %p268 = por %p266, %p267
    %p269 = scmp.ne.s32.totalorder %s260, %s261
    %p270 = scmp.eq.s32.totalorder %s35, 0
    %p271 = por %p269, %p270
    %p272 = scmp.ne.s32.totalorder %s260, %s261
    %p273 = scmp.eq.s32.totalorder %s36, 1
    %p274 = por %p272, %p273
    %p276 = scmp.ne.s32.totalorder %s261, %s275
    %p277 = scmp.eq.s32.totalorder %s36, 0
    %p278 = por %p276, %p277
    %s280 = sadd.s32 %s279, 1
    %p283 = scmp.eq.s32.totalorder %s30, 1
    %p284 = scmp.ne.s32.totalorder %s279, %s281
    %p285 = scmp.eq.s32.totalorder %s30, 0
    %p286 = por %p284, %p285
    %p287 = scmp.ne.s32.totalorder %s279, %s281
    %p288 = scmp.eq.s32.totalorder %s35, 1
    %p289 = por %p287, %p288
    %p290 = scmp.ne.s32.totalorder %s281, %s282
    %p291 = scmp.eq.s32.totalorder %s35, 0
    %p292 = por %p290, %p291
    %p293 = scmp.ne.s32.totalorder %s281, %s282
    %p294 = scmp.eq.s32.totalorder %s36, 1
    %p295 = por %p293, %p294
    %p297 = scmp.ne.s32.totalorder %s282, %s296
    %p298 = scmp.eq.s32.totalorder %s36, 0
    %p299 = por %p297, %p298
    %s301 = sadd.s32 %s300, 1
    %p304 = scmp.eq.s32.totalorder %s30, 1
    %p305 = scmp.ne.s32.totalorder %s300, %s302
    %p306 = scmp.eq.s32.totalorder %s30, 0
    %p307 = por %p305, %p306
    %p308 = scmp.ne.s32.totalorder %s300, %s302
    %p309 = scmp.eq.s32.totalorder %s35, 1
    %p310 = por %p308, %p309
    %p311 = scmp.ne.s32.totalorder %s302, %s303
    %p312 = scmp.eq.s32.totalorder %s35, 0
    %p313 = por %p311, %p312
    %p314 = scmp.ne.s32.totalorder %s302, %s303
    %p315 = scmp.eq.s32.totalorder %s36, 1
    %p316 = por %p314, %p315
    %p318 = scmp.ne.s32.totalorder %s303, %s317
    %p319 = scmp.eq.s32.totalorder %s36, 0
    %p320 = por %p318, %p319
    %s322 = sadd.s32 %s321, 1
    %p325 = scmp.eq.s32.totalorder %s30, 1
    %p326 = scmp.ne.s32.totalorder %s321, %s323
    %p327 = scmp.eq.s32.totalorder %s30, 0
    %p328 = por %p326, %p327
    %p329 = scmp.ne.s32.totalorder %s321, %s323
    %p330 = scmp.eq.s32.totalorder %s35, 1
    %p331 = por %p329, %p330
    %p332 = scmp.ne.s32.totalorder %s323, %s324
    %p333 = scmp.eq.s32.totalorder %s35, 0
    %p334 = por %p332, %p333
    %p335 = scmp.ne.s32.totalorder %s323, %s324
    %p336 = scmp.eq.s32.totalorder %s36, 1
    %p337 = por %p335, %p336
    %p339 = scmp.ne.s32.totalorder %s324, %s338
    %p340 = scmp.eq.s32.totalorder %s36, 0
    %p341 = por %p339, %p340
    %s343 = sadd.s32 %s342, 1
    %p346 = scmp.eq.s32.totalorder %s30, 1
    %p347 = scmp.ne.s32.totalorder %s342, %s344
    %p348 = scmp.eq.s32.totalorder %s30, 0
    %p349 = por %p347, %p348
    %p350 = scmp.ne.s32.totalorder %s342, %s344
    %p351 = scmp.eq.s32.totalorder %s35, 1
    %p352 = por %p350, %p351
    %p353 = scmp.ne.s32.totalorder %s344, %s345
    %p354 = scmp.eq.s32.totalorder %s35, 0
    %p355 = por %p353, %p354
    %p356 = scmp.ne.s32.totalorder %s344, %s345
    %p357 = scmp.eq.s32.totalorder %s36, 1
    %p358 = por %p356, %p357
    %p360 = scmp.ne.s32.totalorder %s345, %s359
    %p361 = scmp.eq.s32.totalorder %s36, 0
    %p362 = por %p360, %p361
    %s364 = sadd.s32 %s363, 1
    %p367 = scmp.eq.s32.totalorder %s30, 1
    %p368 = scmp.ne.s32.totalorder %s363, %s365
    %p369 = scmp.eq.s32.totalorder %s30, 0
    %p370 = por %p368, %p369
    %p371 = scmp.ne.s32.totalorder %s363, %s365
    %p372 = scmp.eq.s32.totalorder %s35, 1
    %p373 = por %p371, %p372
    %p374 = scmp.ne.s32.totalorder %s365, %s366
    %p375 = scmp.eq.s32.totalorder %s35, 0
    %p376 = por %p374, %p375
    %p377 = scmp.ne.s32.totalorder %s365, %s366
    %p378 = scmp.eq.s32.totalorder %s36, 1
    %p379 = por %p377, %p378
    %p381 = scmp.ne.s32.totalorder %s366, %s380
    %p382 = scmp.eq.s32.totalorder %s36, 0
    %p383 = por %p381, %p382
    %s385 = sadd.s32 %s384, 1
    %p388 = scmp.eq.s32.totalorder %s30, 1
    %p389 = scmp.ne.s32.totalorder %s384, %s386
    %p390 = scmp.eq.s32.totalorder %s30, 0
    %p391 = por %p389, %p390
    %p392 = scmp.ne.s32.totalorder %s384, %s386
    %p393 = scmp.eq.s32.totalorder %s35, 1
    %p394 = por %p392, %p393
    %p395 = scmp.ne.s32.totalorder %s386, %s387
    %p396 = scmp.eq.s32.totalorder %s35, 0
    %p397 = por %p395, %p396
    %p398 = scmp.ne.s32.totalorder %s386, %s387
    %p399 = scmp.eq.s32.totalorder %s36, 1
    %p400 = por %p398, %p399
    %p402 = scmp.ne.s32.totalorder %s387, %s401
    %p403 = scmp.eq.s32.totalorder %s36, 0
    %p404 = por %p402, %p403
    %s406 = sadd.s32 %s405, 1
    %p409 = scmp.eq.s32.totalorder %s30, 1
    %p410 = scmp.ne.s32.totalorder %s405, %s407
    %p411 = scmp.eq.s32.totalorder %s30, 0
    %p412 = por %p410, %p411
    %p413 = scmp.ne.s32.totalorder %s405, %s407
    %p414 = scmp.eq.s32.totalorder %s35, 1
    %p415 = por %p413, %p414
    %p416 = scmp.ne.s32.totalorder %s407, %s408
    %p417 = scmp.eq.s32.totalorder %s35, 0
    %p418 = por %p416, %p417
    %p419 = scmp.ne.s32.totalorder %s407, %s408
    %p420 = scmp.eq.s32.totalorder %s36, 1
    %p421 = por %p419, %p420
    %p423 = scmp.ne.s32.totalorder %s408, %s422
    %p424 = scmp.eq.s32.totalorder %s36, 0
    %p425 = por %p423, %p424
    %s427 = sadd.s32 %s426, 1
    %p430 = scmp.eq.s32.totalorder %s30, 1
    %p431 = scmp.ne.s32.totalorder %s426, %s428
    %p432 = scmp.eq.s32.totalorder %s30, 0
    %p433 = por %p431, %p432
    %p434 = scmp.ne.s32.totalorder %s426, %s428
    %p435 = scmp.eq.s32.totalorder %s35, 1
    %p436 = por %p434, %p435
    %p437 = scmp.ne.s32.totalorder %s428, %s429
    %p438 = scmp.eq.s32.totalorder %s35, 0
    %p439 = por %p437, %p438
    %p440 = scmp.ne.s32.totalorder %s428, %s429
    %p441 = scmp.eq.s32.totalorder %s36, 1
    %p442 = por %p440, %p441
    %p444 = scmp.ne.s32.totalorder %s429, %s443
    %p445 = scmp.eq.s32.totalorder %s36, 0
    %p446 = por %p444, %p445
    %s448 = sadd.s32 %s447, 1
    %p451 = scmp.eq.s32.totalorder %s30, 1
    %p452 = scmp.ne.s32.totalorder %s447, %s449
    %p453 = scmp.eq.s32.totalorder %s30, 0
    %p454 = por %p452, %p453
    %p455 = scmp.ne.s32.totalorder %s447, %s449
    %p456 = scmp.eq.s32.totalorder %s35, 1
    %p457 = por %p455, %p456
    %p458 = scmp.ne.s32.totalorder %s449, %s450
    %p459 = scmp.eq.s32.totalorder %s35, 0
    %p460 = por %p458, %p459
    %p461 = scmp.ne.s32.totalorder %s449, %s450
    %p462 = scmp.eq.s32.totalorder %s36, 1
    %p463 = por %p461, %p462
    %p465 = scmp.ne.s32.totalorder %s450, %s464
    %p466 = scmp.eq.s32.totalorder %s36, 0
    %p467 = por %p465, %p466
    %s469 = sadd.s32 %s468, 1
    %p472 = scmp.eq.s32.totalorder %s30, 1
    %p473 = scmp.ne.s32.totalorder %s468, %s470
    %p474 = scmp.eq.s32.totalorder %s30, 0
    %p475 = por %p473, %p474
    %p476 = scmp.ne.s32.totalorder %s468, %s470
    %p477 = scmp.eq.s32.totalorder %s35, 1
    %p478 = por %p476, %p477
    %p479 = scmp.ne.s32.totalorder %s470, %s471
    %p480 = scmp.eq.s32.totalorder %s35, 0
    %p481 = por %p479, %p480
    %p482 = scmp.ne.s32.totalorder %s470, %s471
    %p483 = scmp.eq.s32.totalorder %s36, 1
    %p484 = por %p482, %p483
    %p486 = scmp.ne.s32.totalorder %s471, %s485
    %p487 = scmp.eq.s32.totalorder %s36, 0
    %p488 = por %p486, %p487
    %s490 = sadd.s32 %s489, 1
    %p493 = scmp.eq.s32.totalorder %s30, 1
    %p494 = scmp.ne.s32.totalorder %s489, %s491
    %p495 = scmp.eq.s32.totalorder %s30, 0
    %p496 = por %p494, %p495
    %p497 = scmp.ne.s32.totalorder %s489, %s491
    %p498 = scmp.eq.s32.totalorder %s35, 1
    %p499 = por %p497, %p498
    %p500 = scmp.ne.s32.totalorder %s491, %s492
    %p501 = scmp.eq.s32.totalorder %s35, 0
    %p502 = por %p500, %p501
    %p503 = scmp.ne.s32.totalorder %s491, %s492
    %p504 = scmp.eq.s32.totalorder %s36, 1
    %p505 = por %p503, %p504
    %p507 = scmp.ne.s32.totalorder %s492, %s506
    %p508 = scmp.eq.s32.totalorder %s36, 0
    %p509 = por %p507, %p508
    %s511 = sadd.s32 %s510, 1
    %p514 = scmp.eq.s32.totalorder %s30, 1
    %p515 = scmp.ne.s32.totalorder %s510, %s512
    %p516 = scmp.eq.s32.totalorder %s30, 0
    %p517 = por %p515, %p516
    %p518 = scmp.ne.s32.totalorder %s510, %s512
    %p519 = scmp.eq.s32.totalorder %s35, 1
    %p520 = por %p518, %p519
    %p521 = scmp.ne.s32.totalorder %s512, %s513
    %p522 = scmp.eq.s32.totalorder %s35, 0
    %p523 = por %p521, %p522
    %p524 = scmp.ne.s32.totalorder %s512, %s513
    %p525 = scmp.eq.s32.totalorder %s36, 1
    %p526 = por %p524, %p525
    %p528 = scmp.ne.s32.totalorder %s513, %s527
    %p529 = scmp.eq.s32.totalorder %s36, 0
    %p530 = por %p528, %p529
    %s531 = ssub.s32 %s37, %s49
    %s532 = ssub.s32 %s38, %s45
    %s533 = sor.u32 %s531, %s532
    %p534 = scmp.eq.s32.totalorder %s533, 0
    %s536 = sadd.s32 %s535, 1
    %s537 = scalar_select %p534, %s535, %s536
    %p540 = pneg %p534
    %p541 = scmp.eq.s32.totalorder %s30, 1
    %p542 = por %p540, %p541
    %p543 = scmp.ne.s32.totalorder %s535, %s538
    %p544 = scmp.eq.s32.totalorder %s30, 0
    %p545 = por %p543, %p544
    %p546 = scmp.ne.s32.totalorder %s535, %s538
    %p547 = scmp.eq.s32.totalorder %s35, 1
    %p548 = por %p546, %p547
    %p549 = scmp.ne.s32.totalorder %s538, %s539
    %p550 = scmp.eq.s32.totalorder %s35, 0
    %p551 = por %p549, %p550
    %p552 = scmp.ne.s32.totalorder %s538, %s539
    %p553 = scmp.eq.s32.totalorder %s36, 1
    %p554 = por %p552, %p553
    %p556 = scmp.ne.s32.totalorder %s539, %s555
    %p557 = scmp.eq.s32.totalorder %s36, 0
    %p558 = por %p556, %p557
    %s559 = ssub.s32 %s37, %s49
    %p560 = scmp.eq.s32.totalorder %s559, 0
    %s562 = sadd.s32 %s561, 1
    %s563 = scalar_select %p560, %s561, %s562
    %p566 = pneg %p560
    %p567 = scmp.eq.s32.totalorder %s30, 1
    %p568 = por %p566, %p567
    %p569 = scmp.ne.s32.totalorder %s561, %s564
    %p570 = scmp.eq.s32.totalorder %s30, 0
    %p571 = por %p569, %p570
    %p572 = scmp.ne.s32.totalorder %s561, %s564
    %p573 = scmp.eq.s32.totalorder %s35, 1
    %p574 = por %p572, %p573
    %p575 = scmp.ne.s32.totalorder %s564, %s565
    %p576 = scmp.eq.s32.totalorder %s35, 0
    %p577 = por %p575, %p576
    %p578 = scmp.ne.s32.totalorder %s564, %s565
    %p579 = scmp.eq.s32.totalorder %s36, 1
    %p580 = por %p578, %p579
    %p582 = scmp.ne.s32.totalorder %s565, %s581
    %p583 = scmp.eq.s32.totalorder %s36, 0
    %p584 = por %p582, %p583
    %p585 = scmp.le.s32.totalorder 1, %s30
    %p586 = scmp.lt.s32.totalorder %s30, 3
    %p587 = pnand %p585, %p586
    %p588 = pneg %p587
    // Predicated region
    $region9: #{posenet9d_forward.3} parent=5 // pred_check
      _
    $region10: #{posenet9d_forward.3} parent=5 // pred_check_branch
      %590 = sbr.rel (%p587) target = $region12
    $region11: #{posenet9d_forward.3} parent=5 // pred_region
      %s591 = ssub.s32 %s30, 1
      // Predicated region
      $region13: #{posenet9d_forward.3} parent=11 // pred_check
        %p592 = pneg %p145
      $region14: #{posenet9d_forward.3} parent=11 // pred_check_branch
        %594 = sbr.rel (%p592) target = $region16
      $region15: #{posenet9d_forward.3} parent=11 // pred_region
        _
      $region16: #{posenet9d_forward.3} parent=11 // pred_fallthru
        _
      // Predicated region
      $region17: #{posenet9d_forward.3} parent=11 // pred_check
        %p595 = pneg %p166
      $region18: #{posenet9d_forward.3} parent=11 // pred_check_branch
        %597 = sbr.rel (%p595) target = $region20
      $region19: #{posenet9d_forward.3} parent=11 // pred_region
        _
      $region20: #{posenet9d_forward.3} parent=11 // pred_fallthru
        _
      // Predicated region
      $region21: #{posenet9d_forward.3} parent=11 // pred_check
        %p598 = pneg %p187
      $region22: #{posenet9d_forward.3} parent=11 // pred_check_branch
        %600 = sbr.rel (%p598) target = $region24
      $region23: #{posenet9d_forward.3} parent=11 // pred_region
        _
      $region24: #{posenet9d_forward.3} parent=11 // pred_fallthru
        _
      // Predicated region
      $region25: #{posenet9d_forward.3} parent=11 // pred_check
        %p601 = pneg %p208
      $region26: #{posenet9d_forward.3} parent=11 // pred_check_branch
        %603 = sbr.rel (%p601) target = $region28
      $region27: #{posenet9d_forward.3} parent=11 // pred_region
        _
      $region28: #{posenet9d_forward.3} parent=11 // pred_fallthru
        _
      // Predicated region
      $region29: #{posenet9d_forward.3} parent=11 // pred_check
        %p604 = pneg %p229
      $region30: #{posenet9d_forward.3} parent=11 // pred_check_branch
        %606 = sbr.rel (%p604) target = $region32
      $region31: #{posenet9d_forward.3} parent=11 // pred_region
        _
      $region32: #{posenet9d_forward.3} parent=11 // pred_fallthru
        _
      // Predicated region
      $region33: #{posenet9d_forward.3} parent=11 // pred_check
        %p607 = pneg %p250
      $region34: #{posenet9d_forward.3} parent=11 // pred_check_branch
        %609 = sbr.rel (%p607) target = $region36
      $region35: #{posenet9d_forward.3} parent=11 // pred_region
        _
      $region36: #{posenet9d_forward.3} parent=11 // pred_fallthru
        _
      // Predicated region
      $region37: #{posenet9d_forward.3} parent=11 // pred_check
        %p610 = pneg %p271
      $region38: #{posenet9d_forward.3} parent=11 // pred_check_branch
        %612 = sbr.rel (%p610) target = $region40
      $region39: #{posenet9d_forward.3} parent=11 // pred_region
        _
      $region40: #{posenet9d_forward.3} parent=11 // pred_fallthru
        _
      // Predicated region
      $region41: #{posenet9d_forward.3} parent=11 // pred_check
        %p613 = pneg %p292
      $region42: #{posenet9d_forward.3} parent=11 // pred_check_branch
        %615 = sbr.rel (%p613) target = $region44
      $region43: #{posenet9d_forward.3} parent=11 // pred_region
        _
      $region44: #{posenet9d_forward.3} parent=11 // pred_fallthru
        _
      // Predicated region
      $region45: #{posenet9d_forward.3} parent=11 // pred_check
        %p616 = pneg %p313
      $region46: #{posenet9d_forward.3} parent=11 // pred_check_branch
        %618 = sbr.rel (%p616) target = $region48
      $region47: #{posenet9d_forward.3} parent=11 // pred_region
        _
      $region48: #{posenet9d_forward.3} parent=11 // pred_fallthru
        _
      // Predicated region
      $region49: #{posenet9d_forward.3} parent=11 // pred_check
        %p619 = pneg %p334
      $region50: #{posenet9d_forward.3} parent=11 // pred_check_branch
        %621 = sbr.rel (%p619) target = $region52
      $region51: #{posenet9d_forward.3} parent=11 // pred_region
        _
      $region52: #{posenet9d_forward.3} parent=11 // pred_fallthru
        _
      // Predicated region
      $region53: #{posenet9d_forward.3} parent=11 // pred_check
        %p622 = pneg %p355
      $region54: #{posenet9d_forward.3} parent=11 // pred_check_branch
        %624 = sbr.rel (%p622) target = $region56
      $region55: #{posenet9d_forward.3} parent=11 // pred_region
        _
      $region56: #{posenet9d_forward.3} parent=11 // pred_fallthru
        _
      // Predicated region
      $region57: #{posenet9d_forward.3} parent=11 // pred_check
        %p625 = pneg %p376
      $region58: #{posenet9d_forward.3} parent=11 // pred_check_branch
        %627 = sbr.rel (%p625) target = $region60
      $region59: #{posenet9d_forward.3} parent=11 // pred_region
        _
      $region60: #{posenet9d_forward.3} parent=11 // pred_fallthru
        _
      // Predicated region
      $region61: #{posenet9d_forward.3} parent=11 // pred_check
        %p628 = pneg %p397
      $region62: #{posenet9d_forward.3} parent=11 // pred_check_branch
        %630 = sbr.rel (%p628) target = $region64
      $region63: #{posenet9d_forward.3} parent=11 // pred_region
        _
      $region64: #{posenet9d_forward.3} parent=11 // pred_fallthru
        _
      // Predicated region
      $region65: #{posenet9d_forward.3} parent=11 // pred_check
        %p631 = pneg %p418
      $region66: #{posenet9d_forward.3} parent=11 // pred_check_branch
        %633 = sbr.rel (%p631) target = $region68
      $region67: #{posenet9d_forward.3} parent=11 // pred_region
        _
      $region68: #{posenet9d_forward.3} parent=11 // pred_fallthru
        _
      // Predicated region
      $region69: #{posenet9d_forward.3} parent=11 // pred_check
        %p634 = pneg %p439
      $region70: #{posenet9d_forward.3} parent=11 // pred_check_branch
        %636 = sbr.rel (%p634) target = $region72
      $region71: #{posenet9d_forward.3} parent=11 // pred_region
        _
      $region72: #{posenet9d_forward.3} parent=11 // pred_fallthru
        _
      // Predicated region
      $region73: #{posenet9d_forward.3} parent=11 // pred_check
        %p637 = pneg %p460
      $region74: #{posenet9d_forward.3} parent=11 // pred_check_branch
        %639 = sbr.rel (%p637) target = $region76
      $region75: #{posenet9d_forward.3} parent=11 // pred_region
        _
      $region76: #{posenet9d_forward.3} parent=11 // pred_fallthru
        _
      // Predicated region
      $region77: #{posenet9d_forward.3} parent=11 // pred_check
        %p640 = pneg %p481
      $region78: #{posenet9d_forward.3} parent=11 // pred_check_branch
        %642 = sbr.rel (%p640) target = $region80
      $region79: #{posenet9d_forward.3} parent=11 // pred_region
        _
      $region80: #{posenet9d_forward.3} parent=11 // pred_fallthru
        _
      // Predicated region
      $region81: #{posenet9d_forward.3} parent=11 // pred_check
        %p643 = pneg %p502
      $region82: #{posenet9d_forward.3} parent=11 // pred_check_branch
        %645 = sbr.rel (%p643) target = $region84
      $region83: #{posenet9d_forward.3} parent=11 // pred_region
        _
      $region84: #{posenet9d_forward.3} parent=11 // pred_fallthru
        _
      // Predicated region
      $region85: #{posenet9d_forward.3} parent=11 // pred_check
        %p646 = pneg %p523
      $region86: #{posenet9d_forward.3} parent=11 // pred_check_branch
        %648 = sbr.rel (%p646) target = $region88
      $region87: #{posenet9d_forward.3} parent=11 // pred_region
        _
      $region88: #{posenet9d_forward.3} parent=11 // pred_fallthru
        _
    $region12: #{posenet9d_forward.3} parent=5 // pred_fallthru
      _
    %p649 = scmp.lt.s32.totalorder %s30, 2
    // Predicated region
    $region89: #{posenet9d_forward.3} parent=5 // pred_check
      %p650 = pneg %p649
    $region90: #{posenet9d_forward.3} parent=5 // pred_check_branch
      %652 = sbr.rel (%p650) target = $region92
    $region91: #{posenet9d_forward.3} parent=5 // pred_region
      // Predicated region
      $region93: #{posenet9d_forward.3} parent=91 // pred_check
        %p653 = pneg %p64
      $region94: #{posenet9d_forward.3} parent=91 // pred_check_branch
        %655 = sbr.rel (%p653) target = $region96
      $region95: #{posenet9d_forward.3} parent=91 // pred_region
        %s656 = smul.u32 16, %s38
        %p657 = scmp.lt.s32.totalorder %s37, 1
        %s658 = scalar_select %p657, %s37, 1
        %p659 = scmp.lt.s32.totalorder %s656, 15
        %s660 = scalar_select %p659, %s656, 15
        %s661 = smul.addr %s658, 16
        %s662 = sadd.s32 %s660, %s661
        %s663 = smul.addr %s662, 8
        %s664 = scalar_lea.vmem %s0, %s663
        %s665 = smul.u32 16, %s38
      $region96: #{posenet9d_forward.3} parent=91 // pred_fallthru
        _
      // Predicated region
      $region97: #{posenet9d_forward.3} parent=91 // pred_check
        %p666 = pneg %p92
      $region98: #{posenet9d_forward.3} parent=91 // pred_check_branch
        %668 = sbr.rel (%p666) target = $region100
      $region99: #{posenet9d_forward.3} parent=91 // pred_region
        %s669 = smul.u32 16, %s38
        %p670 = scmp.lt.s32.totalorder %s37, 1
        %s671 = scalar_select %p670, %s37, 1
        %p672 = scmp.lt.s32.totalorder %s669, 15
        %s673 = scalar_select %p672, %s669, 15
        %s674 = smul.addr %s671, 16
        %s675 = sadd.s32 %s673, %s674
        %s676 = smul.addr %s675, 8
        %s677 = scalar_lea.vmem %s1, %s676
        %s678 = smul.u32 16, %s38
      $region100: #{posenet9d_forward.3} parent=91 // pred_fallthru
        _
      // Predicated region
      $region101: #{posenet9d_forward.3} parent=91 // pred_check
        %p679 = pneg %p118
      $region102: #{posenet9d_forward.3} parent=91 // pred_check_branch
        %681 = sbr.rel (%p679) target = $region104
      $region103: #{posenet9d_forward.3} parent=91 // pred_region
        %p682 = scmp.lt.s32.totalorder %s37, 1
        %s683 = scalar_select %p682, %s37, 1
        %s684 = smul.addr %s683, 2
        %s685 = scalar_lea.vmem %s2, %s684
      $region104: #{posenet9d_forward.3} parent=91 // pred_fallthru
        _
    $region92: #{posenet9d_forward.3} parent=5 // pred_fallthru
      _
    %p686 = scmp.le.s32.totalorder 1, %s30
    %p687 = scmp.lt.s32.totalorder %s30, 3
    %p688 = pnand %p686, %p687
    %p689 = pneg %p688
    // Predicated region
    $region105: #{posenet9d_forward.3} parent=5 // pred_check
      _
    $region106: #{posenet9d_forward.3} parent=5 // pred_check_branch
      %691 = sbr.rel (%p688) target = $region108
    $region107: #{posenet9d_forward.3} parent=5 // pred_region
      %s692 = ssub.s32 %s30, 1
      %s693 = smul.u32 16, %s40
      %p694 = scmp.lt.s32.totalorder %s39, 1
      %s695 = scalar_select %p694, %s39, 1
      %p696 = scmp.lt.s32.totalorder %s693, 15
      %s697 = scalar_select %p696, %s693, 15
      %s698 = smul.addr %s695, 16
      %s699 = sadd.s32 %s697, %s698
      %s700 = smul.addr %s699, 8
      %s701 = scalar_lea.vmem %s0, %s700
      %p702 = pneg %p70
      %p703 = pneg %p67
      %s704 = smul.u32 16, %s40
      %p705 = scmp.lt.s32.totalorder %s39, 1
      %s706 = scalar_select %p705, %s39, 1
      %p707 = scmp.lt.s32.totalorder %s704, 15
      %s708 = scalar_select %p707, %s704, 15
      %s709 = smul.addr %s706, 16
      %s710 = sadd.s32 %s708, %s709
      %s711 = smul.addr %s710, 8
      %s712 = scalar_lea.vmem %s1, %s711
      %p713 = pneg %p98
      %p714 = pneg %p95
      %p715 = scmp.lt.s32.totalorder %s39, 1
      %s716 = scalar_select %p715, %s39, 1
      %s717 = smul.addr %s716, 2
      %s718 = scalar_lea.vmem %s2, %s717
      %p719 = pneg %p124
      %p720 = pneg %p121
      %p721 = pneg %p145
      %p722 = pneg %p142
      %p723 = pneg %p166
      %p724 = pneg %p163
      %p725 = pneg %p187
      %p726 = pneg %p184
      %p727 = pneg %p208
      %p728 = pneg %p205
      %p729 = pneg %p229
      %p730 = pneg %p226
      %p731 = pneg %p250
      %p732 = pneg %p247
      %p733 = pneg %p271
      %p734 = pneg %p268
      %p735 = pneg %p292
      %p736 = pneg %p289
      %p737 = pneg %p313
      %p738 = pneg %p310
      %p739 = pneg %p334
      %p740 = pneg %p331
      %p741 = pneg %p355
      %p742 = pneg %p352
      %p743 = pneg %p376
      %p744 = pneg %p373
      %p745 = pneg %p397
      %p746 = pneg %p394
      %p747 = pneg %p418
      %p748 = pneg %p415
      %p749 = pneg %p439
      %p750 = pneg %p436
      %p751 = pneg %p460
      %p752 = pneg %p457
      %p753 = pneg %p481
      %p754 = pneg %p478
      %p755 = pneg %p502
      %p756 = pneg %p499
      %p757 = pneg %p523
      %p758 = pneg %p520
      %p759 = pneg %p551
      %p760 = pneg %p548
      %s761 = smul.u32 16, %s40
      %p762 = scmp.lt.s32.totalorder %s39, 1
      %s763 = scalar_select %p762, %s39, 1
      %p764 = scmp.lt.s32.totalorder %s761, 15
      %s765 = scalar_select %p764, %s761, 15
      %s766 = smul.addr %s763, 16
      %s767 = sadd.s32 %s765, %s766
      %s768 = smul.addr %s767, 4
      %s769 = scalar_lea.vmem %s22, %s768
      %p770 = pneg %p577
      %p771 = pneg %p574
      %p772 = scmp.lt.s32.totalorder %s39, 1
      %s773 = scalar_select %p772, %s39, 1
      %s774 = smul.addr %s773, 3
      %s775 = scalar_lea.vmem %s23, %s774
      %s776 = smul.u32 16, %s40
      %p777 = scmp.lt.s32.totalorder %s39, 1
      %s778 = scalar_select %p777, %s39, 1
      %p779 = scmp.lt.s32.totalorder %s776, 15
      %s780 = scalar_select %p779, %s776, 15
      %s781 = smul.addr %s778, 16
      %s782 = sadd.s32 %s780, %s781
      %s783 = smul.addr %s782, 8
      %s784 = scalar_lea.vmem %s0, %s783
      %s785 = smul.u32 16, %s40
      %s786 = smul.u32 16, %s40
      %p787 = scmp.lt.s32.totalorder %s39, 1
      %s788 = scalar_select %p787, %s39, 1
      %p789 = scmp.lt.s32.totalorder %s786, 15
      %s790 = scalar_select %p789, %s786, 15
      %s791 = smul.addr %s788, 16
      %s792 = sadd.s32 %s790, %s791
      %s793 = smul.addr %s792, 8
      %s794 = scalar_lea.vmem %s1, %s793
      %s795 = smul.u32 16, %s40
      %p796 = scmp.lt.s32.totalorder %s39, 1
      %s797 = scalar_select %p796, %s39, 1
      %s798 = smul.addr %s797, 2
      %s799 = scalar_lea.vmem %s2, %s798
      %s800 = smul.u32 16, %s40
      %p801 = scmp.lt.s32.totalorder %s39, 1
      %s802 = scalar_select %p801, %s39, 1
      %p803 = scmp.lt.s32.totalorder %s800, 15
      %s804 = scalar_select %p803, %s800, 15
      %s805 = smul.addr %s802, 16
      %s806 = sadd.s32 %s804, %s805
      %s807 = smul.addr %s806, 4
      %s808 = scalar_lea.vmem %s22, %s807
      %s809 = smul.u32 16, %s40
      %p810 = scmp.lt.s32.totalorder %s39, 1
      %s811 = scalar_select %p810, %s39, 1
      %s812 = smul.addr %s811, 3
      %s813 = scalar_lea.vmem %s23, %s812
      %p815 = scmp.eq.s32.totalorder %s40, 0
      // Predicated region
      $region109: #{posenet9d_forward.3} parent=107 // pred_check
        %p816 = pneg %p815
      $region110: #{posenet9d_forward.3} parent=107 // pred_check_branch
        %818 = sbr.rel (%p816) target = $region112
      $region111: #{posenet9d_forward.3} parent=107 // pred_region
        %v819 = vlaneseq
        %vm820 = vcmp.ge.s32.totalorder %v819, 0
        %vm821 = vcmp.lt.s32.totalorder %v819, 384
        %vm822 = vmand %vm820, %vm821
        %823 = vst.msk [vmem:[%s813] sm:$0x7] %vm822, 0.0
      $region112: #{posenet9d_forward.3} parent=107 // pred_fallthru
        _
      %v824 = vld [vmem:[%s784] sm:$0xff]
      %v825 = vld [vmem:[%s784 + $0x8] sm:$0xff]
      %v826 = vld [vmem:[%s784 + $0x10] sm:$0xff]
      %v827 = vld [vmem:[%s784 + $0x18] sm:$0xff]
      %v828 = vld [vmem:[%s784 + $0x20] sm:$0xff]
      %v829 = vld [vmem:[%s784 + $0x28] sm:$0xff]
      %v830 = vld [vmem:[%s784 + $0x30] sm:$0xff]
      %v831 = vld [vmem:[%s784 + $0x38] sm:$0xff]
      %v832 = vld [vmem:[%s784 + $0x40] sm:$0xff]
      %v833 = vld [vmem:[%s784 + $0x48] sm:$0xff]
      %v834 = vld [vmem:[%s784 + $0x50] sm:$0xff]
      %v835 = vld [vmem:[%s784 + $0x58] sm:$0xff]
      %v836 = vld [vmem:[%s784 + $0x60] sm:$0xff]
      %v837 = vld [vmem:[%s784 + $0x68] sm:$0xff]
      %v838 = vld [vmem:[%s784 + $0x70] sm:$0xff]
      %v839 = vld [vmem:[%s784 + $0x78] sm:$0xff]
      %v840 = vpack.c.bf16 %v825, %v824
      %v841 = vpack.c.bf16 %v827, %v826
      %v842 = vpack.c.bf16 %v829, %v828
      %v843 = vpack.c.bf16 %v831, %v830
      %v844 = vpack.c.bf16 %v833, %v832
      %v845 = vpack.c.bf16 %v835, %v834
      %v846 = vpack.c.bf16 %v837, %v836
      %v847 = vpack.c.bf16 %v839, %v838
      %v848 = vld [vmem:[%s794] sm:$0xff]
      %v849 = vld [vmem:[%s794 + $0x8] sm:$0xff]
      %v850 = vld [vmem:[%s794 + $0x10] sm:$0xff]
      %v851 = vld [vmem:[%s794 + $0x18] sm:$0xff]
      %v852 = vld [vmem:[%s794 + $0x20] sm:$0xff]
      %v853 = vld [vmem:[%s794 + $0x28] sm:$0xff]
      %v854 = vld [vmem:[%s794 + $0x30] sm:$0xff]
      %v855 = vld [vmem:[%s794 + $0x38] sm:$0xff]
      %v856 = vld [vmem:[%s794 + $0x40] sm:$0xff]
      %v857 = vld [vmem:[%s794 + $0x48] sm:$0xff]
      %v858 = vld [vmem:[%s794 + $0x50] sm:$0xff]
      %v859 = vld [vmem:[%s794 + $0x58] sm:$0xff]
      %v860 = vld [vmem:[%s794 + $0x60] sm:$0xff]
      %v861 = vld [vmem:[%s794 + $0x68] sm:$0xff]
      %v862 = vld [vmem:[%s794 + $0x70] sm:$0xff]
      %v863 = vld [vmem:[%s794 + $0x78] sm:$0xff]
      %v864 = vpack.c.bf16 %v849, %v848
      %v865 = vpack.c.bf16 %v851, %v850
      %v866 = vpack.c.bf16 %v853, %v852
      %v867 = vpack.c.bf16 %v855, %v854
      %v868 = vpack.c.bf16 %v857, %v856
      %v869 = vpack.c.bf16 %v859, %v858
      %v870 = vpack.c.bf16 %v861, %v860
      %v871 = vpack.c.bf16 %v863, %v862
      %v872 = vld [vmem:[%s3] sm:$0x3]
      %v873 = vld [vmem:[%s4] sm:$0x1]
      %v875 = vlaneseq
      %v876 = vshrl.u32 %v875, 7
      %v877 = vsub.s32 0, %v876
      %v878 = vrot.slane %v873, %v877
      %vm880 = vcmask 23552
      %v882 = vsel %vm880, %v840, 0
      %v885 = vsel %vm880, %v841, 0
      %v888 = vsel %vm880, %v842, 0
      %v891 = vsel %vm880, %v843, 0
      %v894 = vsel %vm880, %v844, 0
      %v897 = vsel %vm880, %v845, 0
      %v900 = vsel %vm880, %v846, 0
      %v903 = vsel %vm880, %v847, 0
      %vm905 = vcmask 1040384
      %vm906 = vcmask 1041408
      %v907 = vsel %vm905, 4294967295, 65535
      %v908 = vsel %vm906, %v907, 0
      %v910 = vand.u32 %v872, %v908
      %912 = vmatprep.subr.bf16.mxu0 0
      %913 = vmatpush1.bf16.msra.mxu0 0
      %914 = vmatprep.subr.bf16.mxu0 0
      %915 = vmatpush1.bf16.msra.mxu0 0
      %916 = vmatprep.subr.bf16.mxu0 0
      %917 = vmatpush1.bf16.msra.mxu0 0
      %918 = vmatprep.subr.bf16.mxu0 0
      %919 = vmatpush1.bf16.msra.mxu0 0
      %920 = vmatprep.subr.bf16.mxu0 0
      %921 = vmatpush1.bf16.msra.mxu0 0
      %922 = vmatprep.subr.bf16.mxu0 0
      %923 = vmatpush1.bf16.msra.mxu0 0
      %924 = vmatprep.subr.bf16.mxu0 0
      %925 = vmatpush1.bf16.msra.mxu0 0
      %926 = vmatprep.subr.bf16.mxu0 0
      %927 = vmatpush1.bf16.msra.mxu0 %v910
      %928 = vmatprep.subr.bf16.mxu0 0
      %929 = vmatpush2.bf16.msra.mxu0 0
      %930 = vmatprep.subr.bf16.mxu0 0
      %931 = vmatpush2.bf16.msra.mxu0 0
      %932 = vmatprep.subr.bf16.mxu0 0
      %933 = vmatpush2.bf16.msra.mxu0 0
      %934 = vmatprep.subr.bf16.mxu0 0
      %935 = vmatpush2.bf16.msra.mxu0 0
      %936 = vmatprep.subr.bf16.mxu0 0
      %937 = vmatpush2.bf16.msra.mxu0 0
      %938 = vmatprep.subr.bf16.mxu0 0
      %939 = vmatpush2.bf16.msra.mxu0 0
      %940 = vmatprep.subr.bf16.mxu0 0
      %941 = vmatpush2.bf16.msra.mxu0 0
      %942 = vmatprep.subr.bf16.mxu0 0
      %943 = vmatpush2.bf16.msra.mxu0 0
      %944 = vmatprep.mubr.bf16.mxu0 0
      %945 = vmatmul.mubr.bf16.gmra.mxu0 %v882
      %v946 = vpop.f32.mrf.mxu0
      %v947 = vadd.f32 %v878, %v946
      %v948 = vpop.f32.mrf.mxu0
      %v949 = vpop.f32.mrf.mxu0
      %v950 = vadd.f32 %v878, %v949
      %v951 = vpop.f32.mrf.mxu0
      %952 = vmatprep.mubr.bf16.mxu0 0
      %953 = vmatmul.mubr.bf16.gmra.mxu0 %v885
      %v954 = vpop.f32.mrf.mxu0
      %v955 = vadd.f32 %v878, %v954
      %v956 = vpop.f32.mrf.mxu0
      %v957 = vpop.f32.mrf.mxu0
      %v958 = vadd.f32 %v878, %v957
      %v959 = vpop.f32.mrf.mxu0
      %960 = vmatprep.mubr.bf16.mxu0 0
      %961 = vmatmul.mubr.bf16.gmra.mxu0 %v888
      %v962 = vpop.f32.mrf.mxu0
      %v963 = vadd.f32 %v878, %v962
      %v964 = vpop.f32.mrf.mxu0
      %v965 = vpop.f32.mrf.mxu0
      %v966 = vadd.f32 %v878, %v965
      %v967 = vpop.f32.mrf.mxu0
      %968 = vmatprep.mubr.bf16.mxu0 0
      %969 = vmatmul.mubr.bf16.gmra.mxu0 %v891
      %v970 = vpop.f32.mrf.mxu0
      %v971 = vadd.f32 %v878, %v970
      %v972 = vpop.f32.mrf.mxu0
      %v973 = vpop.f32.mrf.mxu0
      %v974 = vadd.f32 %v878, %v973
      %v975 = vpop.f32.mrf.mxu0
      %976 = vmatprep.mubr.bf16.mxu0 0
      %977 = vmatmul.mubr.bf16.gmra.mxu0 %v894
      %v978 = vpop.f32.mrf.mxu0
      %v979 = vadd.f32 %v878, %v978
      %v980 = vpop.f32.mrf.mxu0
      %v981 = vpop.f32.mrf.mxu0
      %v982 = vadd.f32 %v878, %v981
      %v983 = vpop.f32.mrf.mxu0
      %984 = vmatprep.mubr.bf16.mxu0 0
      %985 = vmatmul.mubr.bf16.gmra.mxu0 %v897
      %v986 = vpop.f32.mrf.mxu0
      %v987 = vadd.f32 %v878, %v986
      %v988 = vpop.f32.mrf.mxu0
      %v989 = vpop.f32.mrf.mxu0
      %v990 = vadd.f32 %v878, %v989
      %v991 = vpop.f32.mrf.mxu0
      %992 = vmatprep.mubr.bf16.mxu0 0
      %993 = vmatmul.mubr.bf16.gmra.mxu0 %v900
      %v994 = vpop.f32.mrf.mxu0
      %v995 = vadd.f32 %v878, %v994
      %v996 = vpop.f32.mrf.mxu0
      %v997 = vpop.f32.mrf.mxu0
      %v998 = vadd.f32 %v878, %v997
      %v999 = vpop.f32.mrf.mxu0
      %1000 = vmatprep.mubr.bf16.mxu0 0
      %1001 = vmatmul.mubr.bf16.gmra.mxu0 %v903
      %v1002 = vpop.f32.mrf.mxu0
      %v1003 = vadd.f32 %v878, %v1002
      %v1004 = vpop.f32.mrf.mxu0
      %v1005 = vpop.f32.mrf.mxu0
      %v1006 = vadd.f32 %v878, %v1005
      %v1007 = vpop.f32.mrf.mxu0
      %1008 = vdwg.mxu0
      %v1009 = vmax.f32 %v947, 0.0
      %v1010 = vmax.f32 %v950, 0.0
      %v1011 = vmax.f32 %v955, 0.0
      %v1012 = vmax.f32 %v958, 0.0
      %v1013 = vmax.f32 %v963, 0.0
      %v1014 = vmax.f32 %v966, 0.0
      %v1015 = vmax.f32 %v971, 0.0
      %v1016 = vmax.f32 %v974, 0.0
      %v1017 = vmax.f32 %v979, 0.0
      %v1018 = vmax.f32 %v982, 0.0
      %v1019 = vmax.f32 %v987, 0.0
      %v1020 = vmax.f32 %v990, 0.0
      %v1021 = vmax.f32 %v995, 0.0
      %v1022 = vmax.f32 %v998, 0.0
      %v1023 = vmax.f32 %v1003, 0.0
      %v1024 = vmax.f32 %v1006, 0.0
      %v1025 = vpack.c.bf16 %v1010, %v1009
      %v1026 = vpack.c.bf16 %v1012, %v1011
      %v1027 = vpack.c.bf16 %v1014, %v1013
      %v1028 = vpack.c.bf16 %v1016, %v1015
      %v1029 = vpack.c.bf16 %v1018, %v1017
      %v1030 = vpack.c.bf16 %v1020, %v1019
      %v1031 = vpack.c.bf16 %v1022, %v1021
      %v1032 = vpack.c.bf16 %v1024, %v1023
      %v1033 = vld [vmem:[%s5] sm:$0xf]
      %v1034 = vld [vmem:[%s5 + $0x4] sm:$0xf]
      %v1035 = vld [vmem:[%s5 + $0x8] sm:$0xf]
      %v1036 = vld [vmem:[%s5 + $0xc] sm:$0xf]
      %v1037 = vld [vmem:[%s5 + $0x10] sm:$0xf]
      %v1038 = vld [vmem:[%s5 + $0x14] sm:$0xf]
      %v1039 = vld [vmem:[%s5 + $0x18] sm:$0xf]
      %v1040 = vld [vmem:[%s5 + $0x1c] sm:$0xf]
      %v1041 = vld [vmem:[%s6] sm:$0x1]
      %v1043 = vlaneseq
      %v1044 = vshrl.u32 %v1043, 7
      %v1045 = vsub.s32 0, %v1044
      %v1046 = vrot.slane %v1041, %v1045
      %v1056 = vunpack.c.l.b16 %v1033
      %v1057 = vunpack.c.l.b16 %v1034
      %v1058 = vunpack.c.l.b16 %v1035
      %v1059 = vunpack.c.l.b16 %v1036
      %v1060 = vunpack.c.l.b16 %v1037
      %v1061 = vunpack.c.l.b16 %v1038
      %v1062 = vunpack.c.l.b16 %v1039
      %v1063 = vunpack.c.l.b16 %v1040
      %v1064 = vpack.c.b16 %v1057, %v1056
      %v1065 = vpack.c.b16 %v1059, %v1058
      %v1066 = vpack.c.b16 %v1061, %v1060
      %v1067 = vpack.c.b16 %v1063, %v1062
      %vm1072 = vcmask 523264
      %v1074 = vsel %vm1072, %v1025, 0
      %v1077 = vsel %vm1072, %v1026, 0
      %v1080 = vsel %vm1072, %v1027, 0
      %v1083 = vsel %vm1072, %v1028, 0
      %v1086 = vsel %vm1072, %v1029, 0
      %v1089 = vsel %vm1072, %v1030, 0
      %v1092 = vsel %vm1072, %v1031, 0
      %v1095 = vsel %vm1072, %v1032, 0
      %1097 = vmatprep.subr.bf16.mxu0 0
      %1098 = vmatpush1.bf16.msra.mxu0 0
      %1099 = vmatprep.subr.bf16.mxu0 0
      %1100 = vmatpush1.bf16.msra.mxu0 0
      %1101 = vmatprep.subr.bf16.mxu0 0
      %1102 = vmatpush1.bf16.msra.mxu0 0
      %1103 = vmatprep.subr.bf16.mxu0 0
      %1104 = vmatpush1.bf16.msra.mxu0 0
      %1105 = vmatprep.subr.bf16.mxu0 0
      %1106 = vmatpush1.bf16.msra.mxu0 %v1067
      %1107 = vmatprep.subr.bf16.mxu0 0
      %1108 = vmatpush1.bf16.msra.mxu0 %v1066
      %1109 = vmatprep.subr.bf16.mxu0 0
      %1110 = vmatpush1.bf16.msra.mxu0 %v1065
      %1111 = vmatprep.subr.bf16.mxu0 0
      %1112 = vmatpush1.bf16.msra.mxu0 %v1064
      %1113 = vmatprep.subr.bf16.mxu0 0
      %1114 = vmatpush2.bf16.msra.mxu0 0
      %1115 = vmatprep.subr.bf16.mxu0 0
      %1116 = vmatpush2.bf16.msra.mxu0 0
      %1117 = vmatprep.subr.bf16.mxu0 0
      %1118 = vmatpush2.bf16.msra.mxu0 0
      %1119 = vmatprep.subr.bf16.mxu0 0
      %1120 = vmatpush2.bf16.msra.mxu0 0
      %1121 = vmatprep.subr.bf16.mxu0 0
      %1122 = vmatpush2.bf16.msra.mxu0 0
      %1123 = vmatprep.subr.bf16.mxu0 0
      %1124 = vmatpush2.bf16.msra.mxu0 0
      %1125 = vmatprep.subr.bf16.mxu0 0
      %1126 = vmatpush2.bf16.msra.mxu0 0
      %1127 = vmatprep.subr.bf16.mxu0 0
      %1128 = vmatpush2.bf16.msra.mxu0 0
      %1129 = vmatprep.mubr.bf16.mxu0 0
      %1130 = vmatmul.mubr.bf16.gmra.mxu0 %v1074
      %v1131 = vpop.f32.mrf.mxu0
      %v1132 = vadd.f32 %v1046, %v1131
      %v1133 = vpop.f32.mrf.mxu0
      %v1134 = vpop.f32.mrf.mxu0
      %v1135 = vadd.f32 %v1046, %v1134
      %v1136 = vpop.f32.mrf.mxu0
      %1137 = vmatprep.mubr.bf16.mxu0 0
      %1138 = vmatmul.mubr.bf16.gmra.mxu0 %v1077
      %v1139 = vpop.f32.mrf.mxu0
      %v1140 = vadd.f32 %v1046, %v1139
      %v1141 = vpop.f32.mrf.mxu0
      %v1142 = vpop.f32.mrf.mxu0
      %v1143 = vadd.f32 %v1046, %v1142
      %v1144 = vpop.f32.mrf.mxu0
      %1145 = vmatprep.mubr.bf16.mxu0 0
      %1146 = vmatmul.mubr.bf16.gmra.mxu0 %v1080
      %v1147 = vpop.f32.mrf.mxu0
      %v1148 = vadd.f32 %v1046, %v1147
      %v1149 = vpop.f32.mrf.mxu0
      %v1150 = vpop.f32.mrf.mxu0
      %v1151 = vadd.f32 %v1046, %v1150
      %v1152 = vpop.f32.mrf.mxu0
      %1153 = vmatprep.mubr.bf16.mxu0 0
      %1154 = vmatmul.mubr.bf16.gmra.mxu0 %v1083
      %v1155 = vpop.f32.mrf.mxu0
      %v1156 = vadd.f32 %v1046, %v1155
      %v1157 = vpop.f32.mrf.mxu0
      %v1158 = vpop.f32.mrf.mxu0
      %v1159 = vadd.f32 %v1046, %v1158
      %v1160 = vpop.f32.mrf.mxu0
      %1161 = vmatprep.mubr.bf16.mxu0 0
      %1162 = vmatmul.mubr.bf16.gmra.mxu0 %v1086
      %v1163 = vpop.f32.mrf.mxu0
      %v1164 = vadd.f32 %v1046, %v1163
      %v1165 = vpop.f32.mrf.mxu0
      %v1166 = vpop.f32.mrf.mxu0
      %v1167 = vadd.f32 %v1046, %v1166
      %v1168 = vpop.f32.mrf.mxu0
      %1169 = vmatprep.mubr.bf16.mxu0 0
      %1170 = vmatmul.mubr.bf16.gmra.mxu0 %v1089
      %v1171 = vpop.f32.mrf.mxu0
      %v1172 = vadd.f32 %v1046, %v1171
      %v1173 = vpop.f32.mrf.mxu0
      %v1174 = vpop.f32.mrf.mxu0
      %v1175 = vadd.f32 %v1046, %v1174
      %v1176 = vpop.f32.mrf.mxu0
      %1177 = vmatprep.mubr.bf16.mxu0 0
      %1178 = vmatmul.mubr.bf16.gmra.mxu0 %v1092
      %v1179 = vpop.f32.mrf.mxu0
      %v1180 = vadd.f32 %v1046, %v1179
      %v1181 = vpop.f32.mrf.mxu0
      %v1182 = vpop.f32.mrf.mxu0
      %v1183 = vadd.f32 %v1046, %v1182
      %v1184 = vpop.f32.mrf.mxu0
      %1185 = vmatprep.mubr.bf16.mxu0 0
      %1186 = vmatmul.mubr.bf16.gmra.mxu0 %v1095
      %v1187 = vpop.f32.mrf.mxu0
      %v1188 = vadd.f32 %v1046, %v1187
      %v1189 = vpop.f32.mrf.mxu0
      %v1190 = vpop.f32.mrf.mxu0
      %v1191 = vadd.f32 %v1046, %v1190
      %v1192 = vpop.f32.mrf.mxu0
      %1193 = vdwg.mxu0
      %v1194 = vmax.f32 %v1132, 0.0
      %v1195 = vmax.f32 %v1135, 0.0
      %v1196 = vmax.f32 %v1140, 0.0
      %v1197 = vmax.f32 %v1143, 0.0
      %v1198 = vmax.f32 %v1148, 0.0
      %v1199 = vmax.f32 %v1151, 0.0
      %v1200 = vmax.f32 %v1156, 0.0
      %v1201 = vmax.f32 %v1159, 0.0
      %v1202 = vmax.f32 %v1164, 0.0
      %v1203 = vmax.f32 %v1167, 0.0
      %v1204 = vmax.f32 %v1172, 0.0
      %v1205 = vmax.f32 %v1175, 0.0
      %v1206 = vmax.f32 %v1180, 0.0
      %v1207 = vmax.f32 %v1183, 0.0
      %v1208 = vmax.f32 %v1188, 0.0
      %v1209 = vmax.f32 %v1191, 0.0
      %v1210 = vpack.c.bf16 %v1195, %v1194
      %v1211 = vpack.c.bf16 %v1197, %v1196
      %v1212 = vpack.c.bf16 %v1199, %v1198
      %v1213 = vpack.c.bf16 %v1201, %v1200
      %v1214 = vpack.c.bf16 %v1203, %v1202
      %v1215 = vpack.c.bf16 %v1205, %v1204
      %v1216 = vpack.c.bf16 %v1207, %v1206
      %v1217 = vpack.c.bf16 %v1209, %v1208
      %v1218 = vld [vmem:[%s7] sm:$0xff]
      %v1219 = vld [vmem:[%s7 + $0x8] sm:$0xff]
      %v1220 = vld [vmem:[%s7 + $0x10] sm:$0xff]
      %v1221 = vld [vmem:[%s7 + $0x18] sm:$0xff]
      %v1222 = vld [vmem:[%s7 + $0x20] sm:$0xff]
      %v1223 = vld [vmem:[%s7 + $0x28] sm:$0xff]
      %v1224 = vld [vmem:[%s7 + $0x30] sm:$0xff]
      %v1225 = vld [vmem:[%s7 + $0x38] sm:$0xff]
      %v1226 = vld [vmem:[%s7 + $0x40] sm:$0xff]
      %v1227 = vld [vmem:[%s7 + $0x48] sm:$0xff]
      %v1228 = vld [vmem:[%s7 + $0x50] sm:$0xff]
      %v1229 = vld [vmem:[%s7 + $0x58] sm:$0xff]
      %v1230 = vld [vmem:[%s7 + $0x60] sm:$0xff]
      %v1231 = vld [vmem:[%s7 + $0x68] sm:$0xff]
      %v1232 = vld [vmem:[%s7 + $0x70] sm:$0xff]
      %v1233 = vld [vmem:[%s7 + $0x78] sm:$0xff]
      %v1234 = vld [vmem:[%s799] sm:$0x3]
      %v1236 = vlaneseq
      %v1237 = vshrl.u32 %v1236, 7
      %v1238 = vsub.s32 0, %v1237
      %v1239 = vrot.slane %v1234, %v1238
      %v1240 = vlaneseq
      %v1241 = vshrl.u32 %v1240, 7
      %v1242 = vsub.s32 1, %v1241
      %v1243 = vrot.slane %v1234, %v1242
      %v1262 = vunpack.c.l.b16 %v1218
      %v1263 = vunpack.c.h.b16 %v1218
      %v1264 = vunpack.c.l.b16 %v1219
      %v1265 = vunpack.c.h.b16 %v1219
      %v1266 = vunpack.c.l.b16 %v1220
      %v1267 = vunpack.c.h.b16 %v1220
      %v1268 = vunpack.c.l.b16 %v1221
      %v1269 = vunpack.c.h.b16 %v1221
      %v1270 = vunpack.c.l.b16 %v1222
      %v1271 = vunpack.c.h.b16 %v1222
      %v1272 = vunpack.c.l.b16 %v1223
      %v1273 = vunpack.c.h.b16 %v1223
      %v1274 = vunpack.c.l.b16 %v1224
      %v1275 = vunpack.c.h.b16 %v1224
      %v1276 = vunpack.c.l.b16 %v1225
      %v1277 = vunpack.c.h.b16 %v1225
      %v1278 = vunpack.c.l.b16 %v1226
      %v1279 = vunpack.c.h.b16 %v1226
      %v1280 = vunpack.c.l.b16 %v1227
      %v1281 = vunpack.c.h.b16 %v1227
      %v1282 = vunpack.c.l.b16 %v1228
      %v1283 = vunpack.c.h.b16 %v1228
      %v1284 = vunpack.c.l.b16 %v1229
      %v1285 = vunpack.c.h.b16 %v1229
      %v1286 = vunpack.c.l.b16 %v1230
      %v1287 = vunpack.c.h.b16 %v1230
      %v1288 = vunpack.c.l.b16 %v1231
      %v1289 = vunpack.c.h.b16 %v1231
      %v1290 = vunpack.c.l.b16 %v1232
      %v1291 = vunpack.c.h.b16 %v1232
      %v1292 = vunpack.c.l.b16 %v1233
      %v1293 = vunpack.c.h.b16 %v1233
      %v1294 = vpack.c.b16 %v1264, %v1262
      %v1295 = vpack.c.b16 %v1265, %v1263
      %v1296 = vpack.c.b16 %v1268, %v1266
      %v1297 = vpack.c.b16 %v1269, %v1267
      %v1298 = vpack.c.b16 %v1272, %v1270
      %v1299 = vpack.c.b16 %v1273, %v1271
      %v1300 = vpack.c.b16 %v1276, %v1274
      %v1301 = vpack.c.b16 %v1277, %v1275
      %v1302 = vpack.c.b16 %v1280, %v1278
      %v1303 = vpack.c.b16 %v1281, %v1279
      %v1304 = vpack.c.b16 %v1284, %v1282
      %v1305 = vpack.c.b16 %v1285, %v1283
      %v1306 = vpack.c.b16 %v1288, %v1286
      %v1307 = vpack.c.b16 %v1289, %v1287
      %v1308 = vpack.c.b16 %v1292, %v1290
      %v1309 = vpack.c.b16 %v1293, %v1291
      %1326 = vmatprep.subr.bf16.mxu0 %v1309
      %1327 = vmatpush1.bf16.msra.mxu0 %v1308
      %1328 = vmatprep.subr.bf16.mxu0 %v1307
      %1329 = vmatpush1.bf16.msra.mxu0 %v1306
      %1330 = vmatprep.subr.bf16.mxu0 %v1305
      %1331 = vmatpush1.bf16.msra.mxu0 %v1304
      %1332 = vmatprep.subr.bf16.mxu0 %v1303
      %1333 = vmatpush1.bf16.msra.mxu0 %v1302
      %1334 = vmatprep.subr.bf16.mxu0 %v1301
      %1335 = vmatpush1.bf16.msra.mxu0 %v1300
      %1336 = vmatprep.subr.bf16.mxu0 %v1299
      %1337 = vmatpush1.bf16.msra.mxu0 %v1298
      %1338 = vmatprep.subr.bf16.mxu0 %v1297
      %1339 = vmatpush1.bf16.msra.mxu0 %v1296
      %1340 = vmatprep.subr.bf16.mxu0 %v1295
      %1341 = vmatpush1.bf16.msra.mxu0 %v1294
      %1342 = vmatprep.subr.bf16.mxu0 0
      %1343 = vmatpush2.bf16.msra.mxu0 0
      %1344 = vmatprep.subr.bf16.mxu0 0
      %1345 = vmatpush2.bf16.msra.mxu0 0
      %1346 = vmatprep.subr.bf16.mxu0 0
      %1347 = vmatpush2.bf16.msra.mxu0 0
      %1348 = vmatprep.subr.bf16.mxu0 0
      %1349 = vmatpush2.bf16.msra.mxu0 0
      %1350 = vmatprep.subr.bf16.mxu0 0
      %1351 = vmatpush2.bf16.msra.mxu0 0
      %1352 = vmatprep.subr.bf16.mxu0 0
      %1353 = vmatpush2.bf16.msra.mxu0 0
      %1354 = vmatprep.subr.bf16.mxu0 0
      %1355 = vmatpush2.bf16.msra.mxu0 0
      %1356 = vmatprep.subr.bf16.mxu0 0
      %1357 = vmatpush2.bf16.msra.mxu0 0
      %1358 = vmatprep.mubr.bf16.mxu0 0
      %1359 = vmatmul.mubr.bf16.gmra.mxu0 %v1210
      %v1360 = vpop.f32.mrf.mxu0
      %v1361 = vadd.f32 %v1239, %v1360
      %v1362 = vpop.f32.mrf.mxu0
      %v1363 = vadd.f32 %v1243, %v1362
      %v1364 = vpop.f32.mrf.mxu0
      %v1365 = vadd.f32 %v1239, %v1364
      %v1366 = vpop.f32.mrf.mxu0
      %v1367 = vadd.f32 %v1243, %v1366
      %1368 = vmatprep.mubr.bf16.mxu0 0
      %1369 = vmatmul.mubr.bf16.gmra.mxu0 %v1211
      %v1370 = vpop.f32.mrf.mxu0
      %v1371 = vadd.f32 %v1239, %v1370
      %v1372 = vpop.f32.mrf.mxu0
      %v1373 = vadd.f32 %v1243, %v1372
      %v1374 = vpop.f32.mrf.mxu0
      %v1375 = vadd.f32 %v1239, %v1374
      %v1376 = vpop.f32.mrf.mxu0
      %v1377 = vadd.f32 %v1243, %v1376
      %1378 = vmatprep.mubr.bf16.mxu0 0
      %1379 = vmatmul.mubr.bf16.gmra.mxu0 %v1212
      %v1380 = vpop.f32.mrf.mxu0
      %v1381 = vadd.f32 %v1239, %v1380
      %v1382 = vpop.f32.mrf.mxu0
      %v1383 = vadd.f32 %v1243, %v1382
      %v1384 = vpop.f32.mrf.mxu0
      %v1385 = vadd.f32 %v1239, %v1384
      %v1386 = vpop.f32.mrf.mxu0
      %v1387 = vadd.f32 %v1243, %v1386
      %1388 = vmatprep.mubr.bf16.mxu0 0
      %1389 = vmatmul.mubr.bf16.gmra.mxu0 %v1213
      %v1390 = vpop.f32.mrf.mxu0
      %v1391 = vadd.f32 %v1239, %v1390
      %v1392 = vpop.f32.mrf.mxu0
      %v1393 = vadd.f32 %v1243, %v1392
      %v1394 = vpop.f32.mrf.mxu0
      %v1395 = vadd.f32 %v1239, %v1394
      %v1396 = vpop.f32.mrf.mxu0
      %v1397 = vadd.f32 %v1243, %v1396
      %1398 = vmatprep.mubr.bf16.mxu0 0
      %1399 = vmatmul.mubr.bf16.gmra.mxu0 %v1214
      %v1400 = vpop.f32.mrf.mxu0
      %v1401 = vadd.f32 %v1239, %v1400
      %v1402 = vpop.f32.mrf.mxu0
      %v1403 = vadd.f32 %v1243, %v1402
      %v1404 = vpop.f32.mrf.mxu0
      %v1405 = vadd.f32 %v1239, %v1404
      %v1406 = vpop.f32.mrf.mxu0
      %v1407 = vadd.f32 %v1243, %v1406
      %1408 = vmatprep.mubr.bf16.mxu0 0
      %1409 = vmatmul.mubr.bf16.gmra.mxu0 %v1215
      %v1410 = vpop.f32.mrf.mxu0
      %v1411 = vadd.f32 %v1239, %v1410
      %v1412 = vpop.f32.mrf.mxu0
      %v1413 = vadd.f32 %v1243, %v1412
      %v1414 = vpop.f32.mrf.mxu0
      %v1415 = vadd.f32 %v1239, %v1414
      %v1416 = vpop.f32.mrf.mxu0
      %v1417 = vadd.f32 %v1243, %v1416
      %1418 = vmatprep.mubr.bf16.mxu0 0
      %1419 = vmatmul.mubr.bf16.gmra.mxu0 %v1216
      %v1420 = vpop.f32.mrf.mxu0
      %v1421 = vadd.f32 %v1239, %v1420
      %v1422 = vpop.f32.mrf.mxu0
      %v1423 = vadd.f32 %v1243, %v1422
      %v1424 = vpop.f32.mrf.mxu0
      %v1425 = vadd.f32 %v1239, %v1424
      %v1426 = vpop.f32.mrf.mxu0
      %v1427 = vadd.f32 %v1243, %v1426
      %1428 = vmatprep.mubr.bf16.mxu0 0
      %1429 = vmatmul.mubr.bf16.gmra.mxu0 %v1217
      %v1430 = vpop.f32.mrf.mxu0
      %v1431 = vadd.f32 %v1239, %v1430
      %v1432 = vpop.f32.mrf.mxu0
      %v1433 = vadd.f32 %v1243, %v1432
      %v1434 = vpop.f32.mrf.mxu0
      %v1435 = vadd.f32 %v1239, %v1434
      %v1436 = vpop.f32.mrf.mxu0
      %v1437 = vadd.f32 %v1243, %v1436
      %1438 = vdwg.mxu0
      %v1439 = vmax.f32 %v1361, 0.0
      %v1440 = vmax.f32 %v1363, 0.0
      %v1441 = vmax.f32 %v1365, 0.0
      %v1442 = vmax.f32 %v1367, 0.0
      %v1443 = vmax.f32 %v1371, 0.0
      %v1444 = vmax.f32 %v1373, 0.0
      %v1445 = vmax.f32 %v1375, 0.0
      %v1446 = vmax.f32 %v1377, 0.0
      %v1447 = vmax.f32 %v1381, 0.0
      %v1448 = vmax.f32 %v1383, 0.0
      %v1449 = vmax.f32 %v1385, 0.0
      %v1450 = vmax.f32 %v1387, 0.0
      %v1451 = vmax.f32 %v1391, 0.0
      %v1452 = vmax.f32 %v1393, 0.0
      %v1453 = vmax.f32 %v1395, 0.0
      %v1454 = vmax.f32 %v1397, 0.0
      %v1455 = vmax.f32 %v1401, 0.0
      %v1456 = vmax.f32 %v1403, 0.0
      %v1457 = vmax.f32 %v1405, 0.0
      %v1458 = vmax.f32 %v1407, 0.0
      %v1459 = vmax.f32 %v1411, 0.0
      %v1460 = vmax.f32 %v1413, 0.0
      %v1461 = vmax.f32 %v1415, 0.0
      %v1462 = vmax.f32 %v1417, 0.0
      %v1463 = vmax.f32 %v1421, 0.0
      %v1464 = vmax.f32 %v1423, 0.0
      %v1465 = vmax.f32 %v1425, 0.0
      %v1466 = vmax.f32 %v1427, 0.0
      %v1467 = vmax.f32 %v1431, 0.0
      %v1468 = vmax.f32 %v1433, 0.0
      %v1469 = vmax.f32 %v1435, 0.0
      %v1470 = vmax.f32 %v1437, 0.0
      %v1471 = vpack.c.bf16 %v1441, %v1439
      %v1472 = vpack.c.bf16 %v1442, %v1440
      %v1473 = vpack.c.bf16 %v1445, %v1443
      %v1474 = vpack.c.bf16 %v1446, %v1444
      %v1475 = vpack.c.bf16 %v1449, %v1447
      %v1476 = vpack.c.bf16 %v1450, %v1448
      %v1477 = vpack.c.bf16 %v1453, %v1451
      %v1478 = vpack.c.bf16 %v1454, %v1452
      %v1479 = vpack.c.bf16 %v1457, %v1455
      %v1480 = vpack.c.bf16 %v1458, %v1456
      %v1481 = vpack.c.bf16 %v1461, %v1459
      %v1482 = vpack.c.bf16 %v1462, %v1460
      %v1483 = vpack.c.bf16 %v1465, %v1463
      %v1484 = vpack.c.bf16 %v1466, %v1464
      %v1485 = vpack.c.bf16 %v1469, %v1467
      %v1486 = vpack.c.bf16 %v1470, %v1468
      %v1487 = vld [vmem:[%s8] sm:$0xf]
      %v1488 = vld [vmem:[%s8 + $0x4] sm:$0xf]
      %v1489 = vld [vmem:[%s8 + $0x8] sm:$0xf]
      %v1490 = vld [vmem:[%s8 + $0xc] sm:$0xf]
      %v1491 = vld [vmem:[%s8 + $0x10] sm:$0xf]
      %v1492 = vld [vmem:[%s8 + $0x14] sm:$0xf]
      %v1493 = vld [vmem:[%s8 + $0x18] sm:$0xf]
      %v1494 = vld [vmem:[%s8 + $0x1c] sm:$0xf]
      %v1495 = vld [vmem:[%s8 + $0x20] sm:$0xf]
      %v1496 = vld [vmem:[%s8 + $0x24] sm:$0xf]
      %v1497 = vld [vmem:[%s8 + $0x28] sm:$0xf]
      %v1498 = vld [vmem:[%s8 + $0x2c] sm:$0xf]
      %v1499 = vld [vmem:[%s8 + $0x30] sm:$0xf]
      %v1500 = vld [vmem:[%s8 + $0x34] sm:$0xf]
      %v1501 = vld [vmem:[%s8 + $0x38] sm:$0xf]
      %v1502 = vld [vmem:[%s8 + $0x3c] sm:$0xf]
      %v1503 = vld [vmem:[%s8 + $0x40] sm:$0xf]
      %v1504 = vld [vmem:[%s8 + $0x44] sm:$0xf]
      %v1505 = vld [vmem:[%s8 + $0x48] sm:$0xf]
      %v1506 = vld [vmem:[%s8 + $0x4c] sm:$0xf]
      %v1507 = vld [vmem:[%s8 + $0x50] sm:$0xf]
      %v1508 = vld [vmem:[%s8 + $0x54] sm:$0xf]
      %v1509 = vld [vmem:[%s8 + $0x58] sm:$0xf]
      %v1510 = vld [vmem:[%s8 + $0x5c] sm:$0xf]
      %v1511 = vld [vmem:[%s8 + $0x60] sm:$0xf]
      %v1512 = vld [vmem:[%s8 + $0x64] sm:$0xf]
      %v1513 = vld [vmem:[%s8 + $0x68] sm:$0xf]
      %v1514 = vld [vmem:[%s8 + $0x6c] sm:$0xf]
      %v1515 = vld [vmem:[%s8 + $0x70] sm:$0xf]
      %v1516 = vld [vmem:[%s8 + $0x74] sm:$0xf]
      %v1517 = vld [vmem:[%s8 + $0x78] sm:$0xf]
      %v1518 = vld [vmem:[%s8 + $0x7c] sm:$0xf]
      %v1519 = vld [vmem:[%s9] sm:$0x1]
      %v1521 = vlaneseq
      %v1522 = vshrl.u32 %v1521, 7
      %v1523 = vsub.s32 0, %v1522
      %v1524 = vrot.slane %v1519, %v1523
      %v1558 = vunpack.c.l.b16 %v1487
      %v1559 = vunpack.c.l.b16 %v1488
      %v1560 = vunpack.c.l.b16 %v1489
      %v1561 = vunpack.c.l.b16 %v1490
      %v1562 = vunpack.c.l.b16 %v1491
      %v1563 = vunpack.c.l.b16 %v1492
      %v1564 = vunpack.c.l.b16 %v1493
      %v1565 = vunpack.c.l.b16 %v1494
      %v1566 = vunpack.c.l.b16 %v1495
      %v1567 = vunpack.c.l.b16 %v1496
      %v1568 = vunpack.c.l.b16 %v1497
      %v1569 = vunpack.c.l.b16 %v1498
      %v1570 = vunpack.c.l.b16 %v1499
      %v1571 = vunpack.c.l.b16 %v1500
      %v1572 = vunpack.c.l.b16 %v1501
      %v1573 = vunpack.c.l.b16 %v1502
      %v1574 = vunpack.c.l.b16 %v1503
      %v1575 = vunpack.c.l.b16 %v1504
      %v1576 = vunpack.c.l.b16 %v1505
      %v1577 = vunpack.c.l.b16 %v1506
      %v1578 = vunpack.c.l.b16 %v1507
      %v1579 = vunpack.c.l.b16 %v1508
      %v1580 = vunpack.c.l.b16 %v1509
      %v1581 = vunpack.c.l.b16 %v1510
      %v1582 = vunpack.c.l.b16 %v1511
      %v1583 = vunpack.c.l.b16 %v1512
      %v1584 = vunpack.c.l.b16 %v1513
      %v1585 = vunpack.c.l.b16 %v1514
      %v1586 = vunpack.c.l.b16 %v1515
      %v1587 = vunpack.c.l.b16 %v1516
      %v1588 = vunpack.c.l.b16 %v1517
      %v1589 = vunpack.c.l.b16 %v1518
      %v1590 = vpack.c.b16 %v1559, %v1558
      %v1591 = vpack.c.b16 %v1561, %v1560
      %v1592 = vpack.c.b16 %v1563, %v1562
      %v1593 = vpack.c.b16 %v1565, %v1564
      %v1594 = vpack.c.b16 %v1567, %v1566
      %v1595 = vpack.c.b16 %v1569, %v1568
      %v1596 = vpack.c.b16 %v1571, %v1570
      %v1597 = vpack.c.b16 %v1573, %v1572
      %v1598 = vpack.c.b16 %v1575, %v1574
      %v1599 = vpack.c.b16 %v1577, %v1576
      %v1600 = vpack.c.b16 %v1579, %v1578
      %v1601 = vpack.c.b16 %v1581, %v1580
      %v1602 = vpack.c.b16 %v1583, %v1582
      %v1603 = vpack.c.b16 %v1585, %v1584
      %v1604 = vpack.c.b16 %v1587, %v1586
      %v1605 = vpack.c.b16 %v1589, %v1588
      %1622 = vmatprep.subr.bf16.mxu0 0
      %1623 = vmatpush1.bf16.msra.mxu0 %v1597
      %1624 = vmatprep.subr.bf16.mxu0 0
      %1625 = vmatpush1.bf16.msra.mxu0 %v1596
      %1626 = vmatprep.subr.bf16.mxu0 0
      %1627 = vmatpush1.bf16.msra.mxu0 %v1595
      %1628 = vmatprep.subr.bf16.mxu0 0
      %1629 = vmatpush1.bf16.msra.mxu0 %v1594
      %1630 = vmatprep.subr.bf16.mxu0 0
      %1631 = vmatpush1.bf16.msra.mxu0 %v1593
      %1632 = vmatprep.subr.bf16.mxu0 0
      %1633 = vmatpush1.bf16.msra.mxu0 %v1592
      %1634 = vmatprep.subr.bf16.mxu0 0
      %1635 = vmatpush1.bf16.msra.mxu0 %v1591
      %1636 = vmatprep.subr.bf16.mxu0 0
      %1637 = vmatpush1.bf16.msra.mxu0 %v1590
      %1638 = vmatprep.subr.bf16.mxu0 0
      %1639 = vmatpush2.bf16.msra.mxu0 %v1605
      %1640 = vmatprep.subr.bf16.mxu0 0
      %1641 = vmatpush2.bf16.msra.mxu0 %v1604
      %1642 = vmatprep.subr.bf16.mxu0 0
      %1643 = vmatpush2.bf16.msra.mxu0 %v1603
      %1644 = vmatprep.subr.bf16.mxu0 0
      %1645 = vmatpush2.bf16.msra.mxu0 %v1602
      %1646 = vmatprep.subr.bf16.mxu0 0
      %1647 = vmatpush2.bf16.msra.mxu0 %v1601
      %1648 = vmatprep.subr.bf16.mxu0 0
      %1649 = vmatpush2.bf16.msra.mxu0 %v1600
      %1650 = vmatprep.subr.bf16.mxu0 0
      %1651 = vmatpush2.bf16.msra.mxu0 %v1599
      %1652 = vmatprep.subr.bf16.mxu0 0
      %1653 = vmatpush2.bf16.msra.mxu0 %v1598
      %1654 = vmatprep.mubr.bf16.mxu0 %v1472
      %1655 = vmatmul.mubr.bf16.gmra.mxu0 %v1471
      %v1656 = vpop.f32.mrf.mxu0
      %v1657 = vadd.f32 %v1524, %v1656
      %v1658 = vpop.f32.mrf.mxu0
      %v1659 = vpop.f32.mrf.mxu0
      %v1660 = vadd.f32 %v1524, %v1659
      %v1661 = vpop.f32.mrf.mxu0
      %1662 = vmatprep.mubr.bf16.mxu0 %v1474
      %1663 = vmatmul.mubr.bf16.gmra.mxu0 %v1473
      %v1664 = vpop.f32.mrf.mxu0
      %v1665 = vadd.f32 %v1524, %v1664
      %v1666 = vpop.f32.mrf.mxu0
      %v1667 = vpop.f32.mrf.mxu0
      %v1668 = vadd.f32 %v1524, %v1667
      %v1669 = vpop.f32.mrf.mxu0
      %1670 = vmatprep.mubr.bf16.mxu0 %v1476
      %1671 = vmatmul.mubr.bf16.gmra.mxu0 %v1475
      %v1672 = vpop.f32.mrf.mxu0
      %v1673 = vadd.f32 %v1524, %v1672
      %v1674 = vpop.f32.mrf.mxu0
      %v1675 = vpop.f32.mrf.mxu0
      %v1676 = vadd.f32 %v1524, %v1675
      %v1677 = vpop.f32.mrf.mxu0
      %1678 = vmatprep.mubr.bf16.mxu0 %v1478
      %1679 = vmatmul.mubr.bf16.gmra.mxu0 %v1477
      %v1680 = vpop.f32.mrf.mxu0
      %v1681 = vadd.f32 %v1524, %v1680
      %v1682 = vpop.f32.mrf.mxu0
      %v1683 = vpop.f32.mrf.mxu0
      %v1684 = vadd.f32 %v1524, %v1683
      %v1685 = vpop.f32.mrf.mxu0
      %1686 = vmatprep.mubr.bf16.mxu0 %v1480
      %1687 = vmatmul.mubr.bf16.gmra.mxu0 %v1479
      %v1688 = vpop.f32.mrf.mxu0
      %v1689 = vadd.f32 %v1524, %v1688
      %v1690 = vpop.f32.mrf.mxu0
      %v1691 = vpop.f32.mrf.mxu0
      %v1692 = vadd.f32 %v1524, %v1691
      %v1693 = vpop.f32.mrf.mxu0
      %1694 = vmatprep.mubr.bf16.mxu0 %v1482
      %1695 = vmatmul.mubr.bf16.gmra.mxu0 %v1481
      %v1696 = vpop.f32.mrf.mxu0
      %v1697 = vadd.f32 %v1524, %v1696
      %v1698 = vpop.f32.mrf.mxu0
      %v1699 = vpop.f32.mrf.mxu0
      %v1700 = vadd.f32 %v1524, %v1699
      %v1701 = vpop.f32.mrf.mxu0
      %1702 = vmatprep.mubr.bf16.mxu0 %v1484
      %1703 = vmatmul.mubr.bf16.gmra.mxu0 %v1483
      %v1704 = vpop.f32.mrf.mxu0
      %v1705 = vadd.f32 %v1524, %v1704
      %v1706 = vpop.f32.mrf.mxu0
      %v1707 = vpop.f32.mrf.mxu0
      %v1708 = vadd.f32 %v1524, %v1707
      %v1709 = vpop.f32.mrf.mxu0
      %1710 = vmatprep.mubr.bf16.mxu0 %v1486
      %1711 = vmatmul.mubr.bf16.gmra.mxu0 %v1485
      %v1712 = vpop.f32.mrf.mxu0
      %v1713 = vadd.f32 %v1524, %v1712
      %v1714 = vpop.f32.mrf.mxu0
      %v1715 = vpop.f32.mrf.mxu0
      %v1716 = vadd.f32 %v1524, %v1715
      %v1717 = vpop.f32.mrf.mxu0
      %1718 = vdwg.mxu0
      %v1719 = vmax.f32 %v1657, 0.0
      %v1720 = vmax.f32 %v1660, 0.0
      %v1721 = vmax.f32 %v1665, 0.0
      %v1722 = vmax.f32 %v1668, 0.0
      %v1723 = vmax.f32 %v1673, 0.0
      %v1724 = vmax.f32 %v1676, 0.0
      %v1725 = vmax.f32 %v1681, 0.0
      %v1726 = vmax.f32 %v1684, 0.0
      %v1727 = vmax.f32 %v1689, 0.0
      %v1728 = vmax.f32 %v1692, 0.0
      %v1729 = vmax.f32 %v1697, 0.0
      %v1730 = vmax.f32 %v1700, 0.0
      %v1731 = vmax.f32 %v1705, 0.0
      %v1732 = vmax.f32 %v1708, 0.0
      %v1733 = vmax.f32 %v1713, 0.0
      %v1734 = vmax.f32 %v1716, 0.0
      %v1735 = vpack.c.bf16 %v1720, %v1719
      %v1736 = vpack.c.bf16 %v1722, %v1721
      %v1737 = vpack.c.bf16 %v1724, %v1723
      %v1738 = vpack.c.bf16 %v1726, %v1725
      %v1739 = vpack.c.bf16 %v1728, %v1727
      %v1740 = vpack.c.bf16 %v1730, %v1729
      %v1741 = vpack.c.bf16 %v1732, %v1731
      %v1742 = vpack.c.bf16 %v1734, %v1733
      %v1743 = vld [vmem:[%s10] sm:$0xf]
      %v1744 = vld [vmem:[%s10 + $0x4] sm:$0xf]
      %v1745 = vld [vmem:[%s10 + $0x8] sm:$0xf]
      %v1746 = vld [vmem:[%s10 + $0xc] sm:$0xf]
      %v1747 = vld [vmem:[%s10 + $0x10] sm:$0xf]
      %v1748 = vld [vmem:[%s10 + $0x14] sm:$0xf]
      %v1749 = vld [vmem:[%s10 + $0x18] sm:$0xf]
      %v1750 = vld [vmem:[%s10 + $0x1c] sm:$0xf]
      %v1751 = vld [vmem:[%s10 + $0x20] sm:$0xf]
      %v1752 = vld [vmem:[%s10 + $0x24] sm:$0xf]
      %v1753 = vld [vmem:[%s10 + $0x28] sm:$0xf]
      %v1754 = vld [vmem:[%s10 + $0x2c] sm:$0xf]
      %v1755 = vld [vmem:[%s10 + $0x30] sm:$0xf]
      %v1756 = vld [vmem:[%s10 + $0x34] sm:$0xf]
      %v1757 = vld [vmem:[%s10 + $0x38] sm:$0xf]
      %v1758 = vld [vmem:[%s10 + $0x3c] sm:$0xf]
      %v1759 = vld [vmem:[%s11] sm:$0x1]
      %v1761 = vlaneseq
      %v1762 = vshrl.u32 %v1761, 7
      %v1763 = vsub.s32 0, %v1762
      %v1764 = vrot.slane %v1759, %v1763
      %v1782 = vunpack.c.l.b16 %v1743
      %v1783 = vunpack.c.l.b16 %v1744
      %v1784 = vunpack.c.l.b16 %v1745
      %v1785 = vunpack.c.l.b16 %v1746
      %v1786 = vunpack.c.l.b16 %v1747
      %v1787 = vunpack.c.l.b16 %v1748
      %v1788 = vunpack.c.l.b16 %v1749
      %v1789 = vunpack.c.l.b16 %v1750
      %v1790 = vunpack.c.l.b16 %v1751
      %v1791 = vunpack.c.l.b16 %v1752
      %v1792 = vunpack.c.l.b16 %v1753
      %v1793 = vunpack.c.l.b16 %v1754
      %v1794 = vunpack.c.l.b16 %v1755
      %v1795 = vunpack.c.l.b16 %v1756
      %v1796 = vunpack.c.l.b16 %v1757
      %v1797 = vunpack.c.l.b16 %v1758
      %v1798 = vpack.c.b16 %v1783, %v1782
      %v1799 = vpack.c.b16 %v1785, %v1784
      %v1800 = vpack.c.b16 %v1787, %v1786
      %v1801 = vpack.c.b16 %v1789, %v1788
      %v1802 = vpack.c.b16 %v1791, %v1790
      %v1803 = vpack.c.b16 %v1793, %v1792
      %v1804 = vpack.c.b16 %v1795, %v1794
      %v1805 = vpack.c.b16 %v1797, %v1796
      %1814 = vmatprep.subr.bf16.mxu0 0
      %1815 = vmatpush1.bf16.msra.mxu0 %v1805
      %1816 = vmatprep.subr.bf16.mxu0 0
      %1817 = vmatpush1.bf16.msra.mxu0 %v1804
      %1818 = vmatprep.subr.bf16.mxu0 0
      %1819 = vmatpush1.bf16.msra.mxu0 %v1803
      %1820 = vmatprep.subr.bf16.mxu0 0
      %1821 = vmatpush1.bf16.msra.mxu0 %v1802
      %1822 = vmatprep.subr.bf16.mxu0 0
      %1823 = vmatpush1.bf16.msra.mxu0 %v1801
      %1824 = vmatprep.subr.bf16.mxu0 0
      %1825 = vmatpush1.bf16.msra.mxu0 %v1800
      %1826 = vmatprep.subr.bf16.mxu0 0
      %1827 = vmatpush1.bf16.msra.mxu0 %v1799
      %1828 = vmatprep.subr.bf16.mxu0 0
      %1829 = vmatpush1.bf16.msra.mxu0 %v1798
      %1830 = vmatprep.subr.bf16.mxu0 0
      %1831 = vmatpush2.bf16.msra.mxu0 0
      %1832 = vmatprep.subr.bf16.mxu0 0
      %1833 = vmatpush2.bf16.msra.mxu0 0
      %1834 = vmatprep.subr.bf16.mxu0 0
      %1835 = vmatpush2.bf16.msra.mxu0 0
      %1836 = vmatprep.subr.bf16.mxu0 0
      %1837 = vmatpush2.bf16.msra.mxu0 0
      %1838 = vmatprep.subr.bf16.mxu0 0
      %1839 = vmatpush2.bf16.msra.mxu0 0
      %1840 = vmatprep.subr.bf16.mxu0 0
      %1841 = vmatpush2.bf16.msra.mxu0 0
      %1842 = vmatprep.subr.bf16.mxu0 0
      %1843 = vmatpush2.bf16.msra.mxu0 0
      %1844 = vmatprep.subr.bf16.mxu0 0
      %1845 = vmatpush2.bf16.msra.mxu0 0
      %1846 = vmatprep.mubr.bf16.mxu0 0
      %1847 = vmatmul.mubr.bf16.gmra.mxu0 %v1735
      %v1848 = vpop.f32.mrf.mxu0
      %v1849 = vadd.f32 %v1764, %v1848
      %v1850 = vpop.f32.mrf.mxu0
      %v1851 = vpop.f32.mrf.mxu0
      %v1852 = vadd.f32 %v1764, %v1851
      %v1853 = vpop.f32.mrf.mxu0
      %1854 = vmatprep.mubr.bf16.mxu0 0
      %1855 = vmatmul.mubr.bf16.gmra.mxu0 %v1736
      %v1856 = vpop.f32.mrf.mxu0
      %v1857 = vadd.f32 %v1764, %v1856
      %v1858 = vpop.f32.mrf.mxu0
      %v1859 = vpop.f32.mrf.mxu0
      %v1860 = vadd.f32 %v1764, %v1859
      %v1861 = vpop.f32.mrf.mxu0
      %1862 = vmatprep.mubr.bf16.mxu0 0
      %1863 = vmatmul.mubr.bf16.gmra.mxu0 %v1737
      %v1864 = vpop.f32.mrf.mxu0
      %v1865 = vadd.f32 %v1764, %v1864
      %v1866 = vpop.f32.mrf.mxu0
      %v1867 = vpop.f32.mrf.mxu0
      %v1868 = vadd.f32 %v1764, %v1867
      %v1869 = vpop.f32.mrf.mxu0
      %1870 = vmatprep.mubr.bf16.mxu0 0
      %1871 = vmatmul.mubr.bf16.gmra.mxu0 %v1738
      %v1872 = vpop.f32.mrf.mxu0
      %v1873 = vadd.f32 %v1764, %v1872
      %v1874 = vpop.f32.mrf.mxu0
      %v1875 = vpop.f32.mrf.mxu0
      %v1876 = vadd.f32 %v1764, %v1875
      %v1877 = vpop.f32.mrf.mxu0
      %1878 = vmatprep.mubr.bf16.mxu0 0
      %1879 = vmatmul.mubr.bf16.gmra.mxu0 %v1739
      %v1880 = vpop.f32.mrf.mxu0
      %v1881 = vadd.f32 %v1764, %v1880
      %v1882 = vpop.f32.mrf.mxu0
      %v1883 = vpop.f32.mrf.mxu0
      %v1884 = vadd.f32 %v1764, %v1883
      %v1885 = vpop.f32.mrf.mxu0
      %1886 = vmatprep.mubr.bf16.mxu0 0
      %1887 = vmatmul.mubr.bf16.gmra.mxu0 %v1740
      %v1888 = vpop.f32.mrf.mxu0
      %v1889 = vadd.f32 %v1764, %v1888
      %v1890 = vpop.f32.mrf.mxu0
      %v1891 = vpop.f32.mrf.mxu0
      %v1892 = vadd.f32 %v1764, %v1891
      %v1893 = vpop.f32.mrf.mxu0
      %1894 = vmatprep.mubr.bf16.mxu0 0
      %1895 = vmatmul.mubr.bf16.gmra.mxu0 %v1741
      %v1896 = vpop.f32.mrf.mxu0
      %v1897 = vadd.f32 %v1764, %v1896
      %v1898 = vpop.f32.mrf.mxu0
      %v1899 = vpop.f32.mrf.mxu0
      %v1900 = vadd.f32 %v1764, %v1899
      %v1901 = vpop.f32.mrf.mxu0
      %1902 = vmatprep.mubr.bf16.mxu0 0
      %1903 = vmatmul.mubr.bf16.gmra.mxu0 %v1742
      %v1904 = vpop.f32.mrf.mxu0
      %v1905 = vadd.f32 %v1764, %v1904
      %v1906 = vpop.f32.mrf.mxu0
      %v1907 = vpop.f32.mrf.mxu0
      %v1908 = vadd.f32 %v1764, %v1907
      %v1909 = vpop.f32.mrf.mxu0
      %1910 = vdwg.mxu0
      %v1911 = vmax.f32 %v1849, 0.0
      %v1912 = vmax.f32 %v1852, 0.0
      %v1913 = vmax.f32 %v1857, 0.0
      %v1914 = vmax.f32 %v1860, 0.0
      %v1915 = vmax.f32 %v1865, 0.0
      %v1916 = vmax.f32 %v1868, 0.0
      %v1917 = vmax.f32 %v1873, 0.0
      %v1918 = vmax.f32 %v1876, 0.0
      %v1919 = vmax.f32 %v1881, 0.0
      %v1920 = vmax.f32 %v1884, 0.0
      %v1921 = vmax.f32 %v1889, 0.0
      %v1922 = vmax.f32 %v1892, 0.0
      %v1923 = vmax.f32 %v1897, 0.0
      %v1924 = vmax.f32 %v1900, 0.0
      %v1925 = vmax.f32 %v1905, 0.0
      %v1926 = vmax.f32 %v1908, 0.0
      %v1927 = vpack.c.bf16 %v1912, %v1911
      %v1928 = vpack.c.bf16 %v1914, %v1913
      %v1929 = vpack.c.bf16 %v1916, %v1915
      %v1930 = vpack.c.bf16 %v1918, %v1917
      %v1931 = vpack.c.bf16 %v1920, %v1919
      %v1932 = vpack.c.bf16 %v1922, %v1921
      %v1933 = vpack.c.bf16 %v1924, %v1923
      %v1934 = vpack.c.bf16 %v1926, %v1925
      %v1935 = vld [vmem:[%s12] sm:$0xf]
      %v1936 = vld [vmem:[%s12 + $0x4] sm:$0xf]
      %v1937 = vld [vmem:[%s12 + $0x8] sm:$0xf]
      %v1938 = vld [vmem:[%s12 + $0xc] sm:$0xf]
      %v1939 = vld [vmem:[%s12 + $0x10] sm:$0xf]
      %v1940 = vld [vmem:[%s12 + $0x14] sm:$0xf]
      %v1941 = vld [vmem:[%s12 + $0x18] sm:$0xf]
      %v1942 = vld [vmem:[%s12 + $0x1c] sm:$0xf]
      %v1943 = vld [vmem:[%s12 + $0x20] sm:$0xf]
      %v1944 = vld [vmem:[%s12 + $0x24] sm:$0xf]
      %v1945 = vld [vmem:[%s12 + $0x28] sm:$0xf]
      %v1946 = vld [vmem:[%s12 + $0x2c] sm:$0xf]
      %v1947 = vld [vmem:[%s12 + $0x30] sm:$0xf]
      %v1948 = vld [vmem:[%s12 + $0x34] sm:$0xf]
      %v1949 = vld [vmem:[%s12 + $0x38] sm:$0xf]
      %v1950 = vld [vmem:[%s12 + $0x3c] sm:$0xf]
      %v1951 = vld [vmem:[%s13] sm:$0x1]
      %v1953 = vlaneseq
      %v1954 = vshrl.u32 %v1953, 7
      %v1955 = vsub.s32 0, %v1954
      %v1956 = vrot.slane %v1951, %v1955
      %v1974 = vunpack.c.l.b16 %v1935
      %v1975 = vunpack.c.l.b16 %v1936
      %v1976 = vunpack.c.l.b16 %v1937
      %v1977 = vunpack.c.l.b16 %v1938
      %v1978 = vunpack.c.l.b16 %v1939
      %v1979 = vunpack.c.l.b16 %v1940
      %v1980 = vunpack.c.l.b16 %v1941
      %v1981 = vunpack.c.l.b16 %v1942
      %v1982 = vunpack.c.l.b16 %v1943
      %v1983 = vunpack.c.l.b16 %v1944
      %v1984 = vunpack.c.l.b16 %v1945
      %v1985 = vunpack.c.l.b16 %v1946
      %v1986 = vunpack.c.l.b16 %v1947
      %v1987 = vunpack.c.l.b16 %v1948
      %v1988 = vunpack.c.l.b16 %v1949
      %v1989 = vunpack.c.l.b16 %v1950
      %v1990 = vpack.c.b16 %v1975, %v1974
      %v1991 = vpack.c.b16 %v1977, %v1976
      %v1992 = vpack.c.b16 %v1979, %v1978
      %v1993 = vpack.c.b16 %v1981, %v1980
      %v1994 = vpack.c.b16 %v1983, %v1982
      %v1995 = vpack.c.b16 %v1985, %v1984
      %v1996 = vpack.c.b16 %v1987, %v1986
      %v1997 = vpack.c.b16 %v1989, %v1988
      %2006 = vmatprep.subr.bf16.mxu0 0
      %2007 = vmatpush1.bf16.msra.mxu0 %v1997
      %2008 = vmatprep.subr.bf16.mxu0 0
      %2009 = vmatpush1.bf16.msra.mxu0 %v1996
      %2010 = vmatprep.subr.bf16.mxu0 0
      %2011 = vmatpush1.bf16.msra.mxu0 %v1995
      %2012 = vmatprep.subr.bf16.mxu0 0
      %2013 = vmatpush1.bf16.msra.mxu0 %v1994
      %2014 = vmatprep.subr.bf16.mxu0 0
      %2015 = vmatpush1.bf16.msra.mxu0 %v1993
      %2016 = vmatprep.subr.bf16.mxu0 0
      %2017 = vmatpush1.bf16.msra.mxu0 %v1992
      %2018 = vmatprep.subr.bf16.mxu0 0
      %2019 = vmatpush1.bf16.msra.mxu0 %v1991
      %2020 = vmatprep.subr.bf16.mxu0 0
      %2021 = vmatpush1.bf16.msra.mxu0 %v1990
      %2022 = vmatprep.subr.bf16.mxu0 0
      %2023 = vmatpush2.bf16.msra.mxu0 0
      %2024 = vmatprep.subr.bf16.mxu0 0
      %2025 = vmatpush2.bf16.msra.mxu0 0
      %2026 = vmatprep.subr.bf16.mxu0 0
      %2027 = vmatpush2.bf16.msra.mxu0 0
      %2028 = vmatprep.subr.bf16.mxu0 0
      %2029 = vmatpush2.bf16.msra.mxu0 0
      %2030 = vmatprep.subr.bf16.mxu0 0
      %2031 = vmatpush2.bf16.msra.mxu0 0
      %2032 = vmatprep.subr.bf16.mxu0 0
      %2033 = vmatpush2.bf16.msra.mxu0 0
      %2034 = vmatprep.subr.bf16.mxu0 0
      %2035 = vmatpush2.bf16.msra.mxu0 0
      %2036 = vmatprep.subr.bf16.mxu0 0
      %2037 = vmatpush2.bf16.msra.mxu0 0
      %2038 = vmatprep.mubr.bf16.mxu0 0
      %2039 = vmatmul.mubr.bf16.gmra.mxu0 %v1927
      %v2040 = vpop.f32.mrf.mxu0
      %v2041 = vadd.f32 %v1956, %v2040
      %v2042 = vpop.f32.mrf.mxu0
      %v2043 = vpop.f32.mrf.mxu0
      %v2044 = vadd.f32 %v1956, %v2043
      %v2045 = vpop.f32.mrf.mxu0
      %2046 = vmatprep.mubr.bf16.mxu0 0
      %2047 = vmatmul.mubr.bf16.gmra.mxu0 %v1928
      %v2048 = vpop.f32.mrf.mxu0
      %v2049 = vadd.f32 %v1956, %v2048
      %v2050 = vpop.f32.mrf.mxu0
      %v2051 = vpop.f32.mrf.mxu0
      %v2052 = vadd.f32 %v1956, %v2051
      %v2053 = vpop.f32.mrf.mxu0
      %2054 = vmatprep.mubr.bf16.mxu0 0
      %2055 = vmatmul.mubr.bf16.gmra.mxu0 %v1929
      %v2056 = vpop.f32.mrf.mxu0
      %v2057 = vadd.f32 %v1956, %v2056
      %v2058 = vpop.f32.mrf.mxu0
      %v2059 = vpop.f32.mrf.mxu0
      %v2060 = vadd.f32 %v1956, %v2059
      %v2061 = vpop.f32.mrf.mxu0
      %2062 = vmatprep.mubr.bf16.mxu0 0
      %2063 = vmatmul.mubr.bf16.gmra.mxu0 %v1930
      %v2064 = vpop.f32.mrf.mxu0
      %v2065 = vadd.f32 %v1956, %v2064
      %v2066 = vpop.f32.mrf.mxu0
      %v2067 = vpop.f32.mrf.mxu0
      %v2068 = vadd.f32 %v1956, %v2067
      %v2069 = vpop.f32.mrf.mxu0
      %2070 = vmatprep.mubr.bf16.mxu0 0
      %2071 = vmatmul.mubr.bf16.gmra.mxu0 %v1931
      %v2072 = vpop.f32.mrf.mxu0
      %v2073 = vadd.f32 %v1956, %v2072
      %v2074 = vpop.f32.mrf.mxu0
      %v2075 = vpop.f32.mrf.mxu0
      %v2076 = vadd.f32 %v1956, %v2075
      %v2077 = vpop.f32.mrf.mxu0
      %2078 = vmatprep.mubr.bf16.mxu0 0
      %2079 = vmatmul.mubr.bf16.gmra.mxu0 %v1932
      %v2080 = vpop.f32.mrf.mxu0
      %v2081 = vadd.f32 %v1956, %v2080
      %v2082 = vpop.f32.mrf.mxu0
      %v2083 = vpop.f32.mrf.mxu0
      %v2084 = vadd.f32 %v1956, %v2083
      %v2085 = vpop.f32.mrf.mxu0
      %2086 = vmatprep.mubr.bf16.mxu0 0
      %2087 = vmatmul.mubr.bf16.gmra.mxu0 %v1933
      %v2088 = vpop.f32.mrf.mxu0
      %v2089 = vadd.f32 %v1956, %v2088
      %v2090 = vpop.f32.mrf.mxu0
      %v2091 = vpop.f32.mrf.mxu0
      %v2092 = vadd.f32 %v1956, %v2091
      %v2093 = vpop.f32.mrf.mxu0
      %2094 = vmatprep.mubr.bf16.mxu0 0
      %2095 = vmatmul.mubr.bf16.gmra.mxu0 %v1934
      %v2096 = vpop.f32.mrf.mxu0
      %v2097 = vadd.f32 %v1956, %v2096
      %v2098 = vpop.f32.mrf.mxu0
      %v2099 = vpop.f32.mrf.mxu0
      %v2100 = vadd.f32 %v1956, %v2099
      %v2101 = vpop.f32.mrf.mxu0
      %2102 = vdwg.mxu0
      %v2103 = vpack.c.bf16 %v2044, %v2041
      %v2104 = vpack.c.bf16 %v2052, %v2049
      %v2105 = vpack.c.bf16 %v2060, %v2057
      %v2106 = vpack.c.bf16 %v2068, %v2065
      %v2107 = vpack.c.bf16 %v2076, %v2073
      %v2108 = vpack.c.bf16 %v2084, %v2081
      %v2109 = vpack.c.bf16 %v2092, %v2089
      %v2110 = vpack.c.bf16 %v2100, %v2097
      %v2119 = vunpack.c.l.b16 %v2103
      %v2120 = vunpack.c.h.b16 %v2103
      %v2121 = vunpack.c.l.b16 %v2104
      %v2122 = vunpack.c.h.b16 %v2104
      %v2123 = vunpack.c.l.b16 %v2105
      %v2124 = vunpack.c.h.b16 %v2105
      %v2125 = vunpack.c.l.b16 %v2106
      %v2126 = vunpack.c.h.b16 %v2106
      %v2127 = vunpack.c.l.b16 %v2107
      %v2128 = vunpack.c.h.b16 %v2107
      %v2129 = vunpack.c.l.b16 %v2108
      %v2130 = vunpack.c.h.b16 %v2108
      %v2131 = vunpack.c.l.b16 %v2109
      %v2132 = vunpack.c.h.b16 %v2109
      %v2133 = vunpack.c.l.b16 %v2110
      %v2134 = vunpack.c.h.b16 %v2110
      %v2135 = vpack.c.b16 %v2119, %v2119
      %v2136 = vpack.c.b16 %v2120, %v2120
      %v2137 = vpack.c.b16 %v2121, %v2121
      %v2138 = vpack.c.b16 %v2122, %v2122
      %v2139 = vpack.c.b16 %v2123, %v2123
      %v2140 = vpack.c.b16 %v2124, %v2124
      %v2141 = vpack.c.b16 %v2125, %v2125
      %v2142 = vpack.c.b16 %v2126, %v2126
      %v2143 = vpack.c.b16 %v2127, %v2127
      %v2144 = vpack.c.b16 %v2128, %v2128
      %v2145 = vpack.c.b16 %v2129, %v2129
      %v2146 = vpack.c.b16 %v2130, %v2130
      %v2147 = vpack.c.b16 %v2131, %v2131
      %v2148 = vpack.c.b16 %v2132, %v2132
      %v2149 = vpack.c.b16 %v2133, %v2133
      %v2150 = vpack.c.b16 %v2134, %v2134
      %2167 = vst [vmem:[%s808] sm:$0xf] %v2135
      %2168 = vst [vmem:[%s808 + $0x4] sm:$0xf] %v2136
      %2169 = vst [vmem:[%s808 + $0x8] sm:$0xf] %v2137
      %2170 = vst [vmem:[%s808 + $0xc] sm:$0xf] %v2138
      %2171 = vst [vmem:[%s808 + $0x10] sm:$0xf] %v2139
      %2172 = vst [vmem:[%s808 + $0x14] sm:$0xf] %v2140
      %2173 = vst [vmem:[%s808 + $0x18] sm:$0xf] %v2141
      %2174 = vst [vmem:[%s808 + $0x1c] sm:$0xf] %v2142
      %2175 = vst [vmem:[%s808 + $0x20] sm:$0xf] %v2143
      %2176 = vst [vmem:[%s808 + $0x24] sm:$0xf] %v2144
      %2177 = vst [vmem:[%s808 + $0x28] sm:$0xf] %v2145
      %2178 = vst [vmem:[%s808 + $0x2c] sm:$0xf] %v2146
      %2179 = vst [vmem:[%s808 + $0x30] sm:$0xf] %v2147
      %2180 = vst [vmem:[%s808 + $0x34] sm:$0xf] %v2148
      %2181 = vst [vmem:[%s808 + $0x38] sm:$0xf] %v2149
      %2182 = vst [vmem:[%s808 + $0x3c] sm:$0xf] %v2150
      %v2183 = vld [vmem:[%s14] sm:$0xff]
      %v2184 = vld [vmem:[%s14 + $0x8] sm:$0xff]
      %v2185 = vld [vmem:[%s14 + $0x10] sm:$0xff]
      %v2186 = vld [vmem:[%s14 + $0x18] sm:$0xff]
      %v2187 = vld [vmem:[%s14 + $0x20] sm:$0xff]
      %v2188 = vld [vmem:[%s14 + $0x28] sm:$0xff]
      %v2189 = vld [vmem:[%s14 + $0x30] sm:$0xff]
      %v2190 = vld [vmem:[%s14 + $0x38] sm:$0xff]
      %v2191 = vld [vmem:[%s14 + $0x40] sm:$0xff]
      %v2192 = vld [vmem:[%s14 + $0x48] sm:$0xff]
      %v2193 = vld [vmem:[%s14 + $0x50] sm:$0xff]
      %v2194 = vld [vmem:[%s14 + $0x58] sm:$0xff]
      %v2195 = vld [vmem:[%s14 + $0x60] sm:$0xff]
      %v2196 = vld [vmem:[%s14 + $0x68] sm:$0xff]
      %v2197 = vld [vmem:[%s14 + $0x70] sm:$0xff]
      %v2198 = vld [vmem:[%s14 + $0x78] sm:$0xff]
      %v2199 = vld [vmem:[%s15] sm:$0x77]
      %v2201 = vunpack.c.l.b16 %v2199
      %v2202 = vunpack.c.h.b16 %v2199
      %v2203 = vpack.c.b16 %v2201, %v2201
      %v2204 = vpack.c.b16 %v2202, %v2202
      %vm2205 = vcmask 48128
      %v2207 = vsel %vm2205, %v864, 0
      %v2210 = vsel %vm2205, %v865, 0
      %v2213 = vsel %vm2205, %v866, 0
      %v2216 = vsel %vm2205, %v867, 0
      %v2219 = vsel %vm2205, %v868, 0
      %v2222 = vsel %vm2205, %v869, 0
      %v2225 = vsel %vm2205, %v870, 0
      %v2228 = vsel %vm2205, %v871, 0
      %vm2230 = vcmask 1042432
      %v2232 = vsel %vm2230, %v2203, 0
      %v2235 = vsel %vm2230, %v2204, 0
      %2237 = vmatprep.subr.bf16.mxu0 0
      %2238 = vmatpush1.bf16.msra.mxu0 0
      %2239 = vmatprep.subr.bf16.mxu0 0
      %2240 = vmatpush1.bf16.msra.mxu0 0
      %2241 = vmatprep.subr.bf16.mxu0 0
      %2242 = vmatpush1.bf16.msra.mxu0 0
      %2243 = vmatprep.subr.bf16.mxu0 0
      %2244 = vmatpush1.bf16.msra.mxu0 0
      %2245 = vmatprep.subr.bf16.mxu0 0
      %2246 = vmatpush1.bf16.msra.mxu0 0
      %2247 = vmatprep.subr.bf16.mxu0 0
      %2248 = vmatpush1.bf16.msra.mxu0 0
      %2249 = vmatprep.subr.bf16.mxu0 0
      %2250 = vmatpush1.bf16.msra.mxu0 0
      %2251 = vmatprep.subr.bf16.mxu0 %v2235
      %2252 = vmatpush1.bf16.msra.mxu0 %v2232
      %2253 = vmatprep.subr.bf16.mxu0 0
      %2254 = vmatpush2.bf16.msra.mxu0 0
      %2255 = vmatprep.subr.bf16.mxu0 0
      %2256 = vmatpush2.bf16.msra.mxu0 0
      %2257 = vmatprep.subr.bf16.mxu0 0
      %2258 = vmatpush2.bf16.msra.mxu0 0
      %2259 = vmatprep.subr.bf16.mxu0 0
      %2260 = vmatpush2.bf16.msra.mxu0 0
      %2261 = vmatprep.subr.bf16.mxu0 0
      %2262 = vmatpush2.bf16.msra.mxu0 0
      %2263 = vmatprep.subr.bf16.mxu0 0
      %2264 = vmatpush2.bf16.msra.mxu0 0
      %2265 = vmatprep.subr.bf16.mxu0 0
      %2266 = vmatpush2.bf16.msra.mxu0 0
      %2267 = vmatprep.subr.bf16.mxu0 0
      %2268 = vmatpush2.bf16.msra.mxu0 0
      %2269 = vmatprep.mubr.bf16.mxu0 0
      %2270 = vmatmul.mubr.bf16.gmra.mxu0 %v2207
      %v2271 = vpop.f32.mrf.mxu0
      %v2272 = vadd.f32 0.0, %v2271
      %v2273 = vpop.f32.mrf.mxu0
      %v2274 = vadd.f32 0.0, %v2273
      %v2275 = vpop.f32.mrf.mxu0
      %v2276 = vadd.f32 0.0, %v2275
      %v2277 = vpop.f32.mrf.mxu0
      %v2278 = vadd.f32 0.0, %v2277
      %2279 = vmatprep.mubr.bf16.mxu0 0
      %2280 = vmatmul.mubr.bf16.gmra.mxu0 %v2210
      %v2281 = vpop.f32.mrf.mxu0
      %v2282 = vadd.f32 0.0, %v2281
      %v2283 = vpop.f32.mrf.mxu0
      %v2284 = vadd.f32 0.0, %v2283
      %v2285 = vpop.f32.mrf.mxu0
      %v2286 = vadd.f32 0.0, %v2285
      %v2287 = vpop.f32.mrf.mxu0
      %v2288 = vadd.f32 0.0, %v2287
      %2289 = vmatprep.mubr.bf16.mxu0 0
      %2290 = vmatmul.mubr.bf16.gmra.mxu0 %v2213
      %v2291 = vpop.f32.mrf.mxu0
      %v2292 = vadd.f32 0.0, %v2291
      %v2293 = vpop.f32.mrf.mxu0
      %v2294 = vadd.f32 0.0, %v2293
      %v2295 = vpop.f32.mrf.mxu0
      %v2296 = vadd.f32 0.0, %v2295
      %v2297 = vpop.f32.mrf.mxu0
      %v2298 = vadd.f32 0.0, %v2297
      %2299 = vmatprep.mubr.bf16.mxu0 0
      %2300 = vmatmul.mubr.bf16.gmra.mxu0 %v2216
      %v2301 = vpop.f32.mrf.mxu0
      %v2302 = vadd.f32 0.0, %v2301
      %v2303 = vpop.f32.mrf.mxu0
      %v2304 = vadd.f32 0.0, %v2303
      %v2305 = vpop.f32.mrf.mxu0
      %v2306 = vadd.f32 0.0, %v2305
      %v2307 = vpop.f32.mrf.mxu0
      %v2308 = vadd.f32 0.0, %v2307
      %2309 = vmatprep.mubr.bf16.mxu0 0
      %2310 = vmatmul.mubr.bf16.gmra.mxu0 %v2219
      %v2311 = vpop.f32.mrf.mxu0
      %v2312 = vadd.f32 0.0, %v2311
      %v2313 = vpop.f32.mrf.mxu0
      %v2314 = vadd.f32 0.0, %v2313
      %v2315 = vpop.f32.mrf.mxu0
      %v2316 = vadd.f32 0.0, %v2315
      %v2317 = vpop.f32.mrf.mxu0
      %v2318 = vadd.f32 0.0, %v2317
      %2319 = vmatprep.mubr.bf16.mxu0 0
      %2320 = vmatmul.mubr.bf16.gmra.mxu0 %v2222
      %v2321 = vpop.f32.mrf.mxu0
      %v2322 = vadd.f32 0.0, %v2321
      %v2323 = vpop.f32.mrf.mxu0
      %v2324 = vadd.f32 0.0, %v2323
      %v2325 = vpop.f32.mrf.mxu0
      %v2326 = vadd.f32 0.0, %v2325
      %v2327 = vpop.f32.mrf.mxu0
      %v2328 = vadd.f32 0.0, %v2327
      %2329 = vmatprep.mubr.bf16.mxu0 0
      %2330 = vmatmul.mubr.bf16.gmra.mxu0 %v2225
      %v2331 = vpop.f32.mrf.mxu0
      %v2332 = vadd.f32 0.0, %v2331
      %v2333 = vpop.f32.mrf.mxu0
      %v2334 = vadd.f32 0.0, %v2333
      %v2335 = vpop.f32.mrf.mxu0
      %v2336 = vadd.f32 0.0, %v2335
      %v2337 = vpop.f32.mrf.mxu0
      %v2338 = vadd.f32 0.0, %v2337
      %2339 = vmatprep.mubr.bf16.mxu0 0
      %2340 = vmatmul.mubr.bf16.gmra.mxu0 %v2228
      %v2341 = vpop.f32.mrf.mxu0
      %v2342 = vadd.f32 0.0, %v2341
      %v2343 = vpop.f32.mrf.mxu0
      %v2344 = vadd.f32 0.0, %v2343
      %v2345 = vpop.f32.mrf.mxu0
      %v2346 = vadd.f32 0.0, %v2345
      %v2347 = vpop.f32.mrf.mxu0
      %v2348 = vadd.f32 0.0, %v2347
      %2349 = vdwg.mxu0
      %v2366 = vunpack.c.l.b16 %v2183
      %v2367 = vunpack.c.h.b16 %v2183
      %v2368 = vunpack.c.l.b16 %v2184
      %v2369 = vunpack.c.h.b16 %v2184
      %v2370 = vunpack.c.l.b16 %v2185
      %v2371 = vunpack.c.h.b16 %v2185
      %v2372 = vunpack.c.l.b16 %v2186
      %v2373 = vunpack.c.h.b16 %v2186
      %v2374 = vunpack.c.l.b16 %v2187
      %v2375 = vunpack.c.h.b16 %v2187
      %v2376 = vunpack.c.l.b16 %v2188
      %v2377 = vunpack.c.h.b16 %v2188
      %v2378 = vunpack.c.l.b16 %v2189
      %v2379 = vunpack.c.h.b16 %v2189
      %v2380 = vunpack.c.l.b16 %v2190
      %v2381 = vunpack.c.h.b16 %v2190
      %v2382 = vunpack.c.l.b16 %v2191
      %v2383 = vunpack.c.h.b16 %v2191
      %v2384 = vunpack.c.l.b16 %v2192
      %v2385 = vunpack.c.h.b16 %v2192
      %v2386 = vunpack.c.l.b16 %v2193
      %v2387 = vunpack.c.h.b16 %v2193
      %v2388 = vunpack.c.l.b16 %v2194
      %v2389 = vunpack.c.h.b16 %v2194
      %v2390 = vunpack.c.l.b16 %v2195
      %v2391 = vunpack.c.h.b16 %v2195
      %v2392 = vunpack.c.l.b16 %v2196
      %v2393 = vunpack.c.h.b16 %v2196
      %v2394 = vunpack.c.l.b16 %v2197
      %v2395 = vunpack.c.h.b16 %v2197
      %v2396 = vunpack.c.l.b16 %v2198
      %v2397 = vunpack.c.h.b16 %v2198
      %v2398 = vpack.c.b16 %v2368, %v2366
      %v2399 = vpack.c.b16 %v2369, %v2367
      %v2400 = vpack.c.b16 %v2372, %v2370
      %v2401 = vpack.c.b16 %v2373, %v2371
      %v2402 = vpack.c.b16 %v2376, %v2374
      %v2403 = vpack.c.b16 %v2377, %v2375
      %v2404 = vpack.c.b16 %v2380, %v2378
      %v2405 = vpack.c.b16 %v2381, %v2379
      %v2406 = vpack.c.b16 %v2384, %v2382
      %v2407 = vpack.c.b16 %v2385, %v2383
      %v2408 = vpack.c.b16 %v2388, %v2386
      %v2409 = vpack.c.b16 %v2389, %v2387
      %v2410 = vpack.c.b16 %v2392, %v2390
      %v2411 = vpack.c.b16 %v2393, %v2391
      %v2412 = vpack.c.b16 %v2396, %v2394
      %v2413 = vpack.c.b16 %v2397, %v2395
      %2430 = vmatprep.subr.bf16.mxu0 %v2413
      %2431 = vmatpush1.bf16.msra.mxu0 %v2412
      %2432 = vmatprep.subr.bf16.mxu0 %v2411
      %2433 = vmatpush1.bf16.msra.mxu0 %v2410
      %2434 = vmatprep.subr.bf16.mxu0 %v2409
      %2435 = vmatpush1.bf16.msra.mxu0 %v2408
      %2436 = vmatprep.subr.bf16.mxu0 %v2407
      %2437 = vmatpush1.bf16.msra.mxu0 %v2406
      %2438 = vmatprep.subr.bf16.mxu0 %v2405
      %2439 = vmatpush1.bf16.msra.mxu0 %v2404
      %2440 = vmatprep.subr.bf16.mxu0 %v2403
      %2441 = vmatpush1.bf16.msra.mxu0 %v2402
      %2442 = vmatprep.subr.bf16.mxu0 %v2401
      %2443 = vmatpush1.bf16.msra.mxu0 %v2400
      %2444 = vmatprep.subr.bf16.mxu0 %v2399
      %2445 = vmatpush1.bf16.msra.mxu0 %v2398
      %2446 = vmatprep.subr.bf16.mxu0 0
      %2447 = vmatpush2.bf16.msra.mxu0 0
      %2448 = vmatprep.subr.bf16.mxu0 0
      %2449 = vmatpush2.bf16.msra.mxu0 0
      %2450 = vmatprep.subr.bf16.mxu0 0
      %2451 = vmatpush2.bf16.msra.mxu0 0
      %2452 = vmatprep.subr.bf16.mxu0 0
      %2453 = vmatpush2.bf16.msra.mxu0 0
      %2454 = vmatprep.subr.bf16.mxu0 0
      %2455 = vmatpush2.bf16.msra.mxu0 0
      %2456 = vmatprep.subr.bf16.mxu0 0
      %2457 = vmatpush2.bf16.msra.mxu0 0
      %2458 = vmatprep.subr.bf16.mxu0 0
      %2459 = vmatpush2.bf16.msra.mxu0 0
      %2460 = vmatprep.subr.bf16.mxu0 0
      %2461 = vmatpush2.bf16.msra.mxu0 0
      %2462 = vmatprep.mubr.bf16.mxu0 0
      %2463 = vmatmul.mubr.bf16.gmra.mxu0 %v1735
      %v2464 = vpop.f32.mrf.mxu0
      %v2465 = vadd.f32 %v2272, %v2464
      %v2466 = vpop.f32.mrf.mxu0
      %v2467 = vadd.f32 %v2274, %v2466
      %v2468 = vpop.f32.mrf.mxu0
      %v2469 = vadd.f32 %v2276, %v2468
      %v2470 = vpop.f32.mrf.mxu0
      %v2471 = vadd.f32 %v2278, %v2470
      %2472 = vmatprep.mubr.bf16.mxu0 0
      %2473 = vmatmul.mubr.bf16.gmra.mxu0 %v1736
      %v2474 = vpop.f32.mrf.mxu0
      %v2475 = vadd.f32 %v2282, %v2474
      %v2476 = vpop.f32.mrf.mxu0
      %v2477 = vadd.f32 %v2284, %v2476
      %v2478 = vpop.f32.mrf.mxu0
      %v2479 = vadd.f32 %v2286, %v2478
      %v2480 = vpop.f32.mrf.mxu0
      %v2481 = vadd.f32 %v2288, %v2480
      %2482 = vmatprep.mubr.bf16.mxu0 0
      %2483 = vmatmul.mubr.bf16.gmra.mxu0 %v1737
      %v2484 = vpop.f32.mrf.mxu0
      %v2485 = vadd.f32 %v2292, %v2484
      %v2486 = vpop.f32.mrf.mxu0
      %v2487 = vadd.f32 %v2294, %v2486
      %v2488 = vpop.f32.mrf.mxu0
      %v2489 = vadd.f32 %v2296, %v2488
      %v2490 = vpop.f32.mrf.mxu0
      %v2491 = vadd.f32 %v2298, %v2490
      %2492 = vmatprep.mubr.bf16.mxu0 0
      %2493 = vmatmul.mubr.bf16.gmra.mxu0 %v1738
      %v2494 = vpop.f32.mrf.mxu0
      %v2495 = vadd.f32 %v2302, %v2494
      %v2496 = vpop.f32.mrf.mxu0
      %v2497 = vadd.f32 %v2304, %v2496
      %v2498 = vpop.f32.mrf.mxu0
      %v2499 = vadd.f32 %v2306, %v2498
      %v2500 = vpop.f32.mrf.mxu0
      %v2501 = vadd.f32 %v2308, %v2500
      %2502 = vmatprep.mubr.bf16.mxu0 0
      %2503 = vmatmul.mubr.bf16.gmra.mxu0 %v1739
      %v2504 = vpop.f32.mrf.mxu0
      %v2505 = vadd.f32 %v2312, %v2504
      %v2506 = vpop.f32.mrf.mxu0
      %v2507 = vadd.f32 %v2314, %v2506
      %v2508 = vpop.f32.mrf.mxu0
      %v2509 = vadd.f32 %v2316, %v2508
      %v2510 = vpop.f32.mrf.mxu0
      %v2511 = vadd.f32 %v2318, %v2510
      %2512 = vmatprep.mubr.bf16.mxu0 0
      %2513 = vmatmul.mubr.bf16.gmra.mxu0 %v1740
      %v2514 = vpop.f32.mrf.mxu0
      %v2515 = vadd.f32 %v2322, %v2514
      %v2516 = vpop.f32.mrf.mxu0
      %v2517 = vadd.f32 %v2324, %v2516
      %v2518 = vpop.f32.mrf.mxu0
      %v2519 = vadd.f32 %v2326, %v2518
      %v2520 = vpop.f32.mrf.mxu0
      %v2521 = vadd.f32 %v2328, %v2520
      %2522 = vmatprep.mubr.bf16.mxu0 0
      %2523 = vmatmul.mubr.bf16.gmra.mxu0 %v1741
      %v2524 = vpop.f32.mrf.mxu0
      %v2525 = vadd.f32 %v2332, %v2524
      %v2526 = vpop.f32.mrf.mxu0
      %v2527 = vadd.f32 %v2334, %v2526
      %v2528 = vpop.f32.mrf.mxu0
      %v2529 = vadd.f32 %v2336, %v2528
      %v2530 = vpop.f32.mrf.mxu0
      %v2531 = vadd.f32 %v2338, %v2530
      %2532 = vmatprep.mubr.bf16.mxu0 0
      %2533 = vmatmul.mubr.bf16.gmra.mxu0 %v1742
      %v2534 = vpop.f32.mrf.mxu0
      %v2535 = vadd.f32 %v2342, %v2534
      %v2536 = vpop.f32.mrf.mxu0
      %v2537 = vadd.f32 %v2344, %v2536
      %v2538 = vpop.f32.mrf.mxu0
      %v2539 = vadd.f32 %v2346, %v2538
      %v2540 = vpop.f32.mrf.mxu0
      %v2541 = vadd.f32 %v2348, %v2540
      %2542 = vdwg.mxu0
      %v2543 = vld [vmem:[%s17] ss:$4 sm:$0x3]
      %v2545 = vlaneseq
      %v2546 = vshrl.u32 %v2545, 7
      %v2547 = vsub.s32 0, %v2546
      %v2548 = vrot.slane %v2543, %v2547
      %v2549 = vlaneseq
      %v2550 = vshrl.u32 %v2549, 7
      %v2551 = vsub.s32 1, %v2550
      %v2552 = vrot.slane %v2543, %v2551
      %v2555 = vadd.f32 %v2465, %v2548
      %v2556 = vadd.f32 %v2467, %v2552
      %v2557 = vadd.f32 %v2469, %v2548
      %v2558 = vadd.f32 %v2471, %v2552
      %v2559 = vadd.f32 %v2475, %v2548
      %v2560 = vadd.f32 %v2477, %v2552
      %v2561 = vadd.f32 %v2479, %v2548
      %v2562 = vadd.f32 %v2481, %v2552
      %v2563 = vadd.f32 %v2485, %v2548
      %v2564 = vadd.f32 %v2487, %v2552
      %v2565 = vadd.f32 %v2489, %v2548
      %v2566 = vadd.f32 %v2491, %v2552
      %v2567 = vadd.f32 %v2495, %v2548
      %v2568 = vadd.f32 %v2497, %v2552
      %v2569 = vadd.f32 %v2499, %v2548
      %v2570 = vadd.f32 %v2501, %v2552
      %v2571 = vadd.f32 %v2505, %v2548
      %v2572 = vadd.f32 %v2507, %v2552
      %v2573 = vadd.f32 %v2509, %v2548
      %v2574 = vadd.f32 %v2511, %v2552
      %v2575 = vadd.f32 %v2515, %v2548
      %v2576 = vadd.f32 %v2517, %v2552
      %v2577 = vadd.f32 %v2519, %v2548
      %v2578 = vadd.f32 %v2521, %v2552
      %v2579 = vadd.f32 %v2525, %v2548
      %v2580 = vadd.f32 %v2527, %v2552
      %v2581 = vadd.f32 %v2529, %v2548
      %v2582 = vadd.f32 %v2531, %v2552
      %v2583 = vadd.f32 %v2535, %v2548
      %v2584 = vadd.f32 %v2537, %v2552
      %v2585 = vadd.f32 %v2539, %v2548
      %v2586 = vadd.f32 %v2541, %v2552
      %v2587 = vmax.f32 %v2555, 0.0
      %v2588 = vmax.f32 %v2556, 0.0
      %v2589 = vmax.f32 %v2557, 0.0
      %v2590 = vmax.f32 %v2558, 0.0
      %v2591 = vmax.f32 %v2559, 0.0
      %v2592 = vmax.f32 %v2560, 0.0
      %v2593 = vmax.f32 %v2561, 0.0
      %v2594 = vmax.f32 %v2562, 0.0
      %v2595 = vmax.f32 %v2563, 0.0
      %v2596 = vmax.f32 %v2564, 0.0
      %v2597 = vmax.f32 %v2565, 0.0
      %v2598 = vmax.f32 %v2566, 0.0
      %v2599 = vmax.f32 %v2567, 0.0
      %v2600 = vmax.f32 %v2568, 0.0
      %v2601 = vmax.f32 %v2569, 0.0
      %v2602 = vmax.f32 %v2570, 0.0
      %v2603 = vmax.f32 %v2571, 0.0
      %v2604 = vmax.f32 %v2572, 0.0
      %v2605 = vmax.f32 %v2573, 0.0
      %v2606 = vmax.f32 %v2574, 0.0
      %v2607 = vmax.f32 %v2575, 0.0
      %v2608 = vmax.f32 %v2576, 0.0
      %v2609 = vmax.f32 %v2577, 0.0
      %v2610 = vmax.f32 %v2578, 0.0
      %v2611 = vmax.f32 %v2579, 0.0
      %v2612 = vmax.f32 %v2580, 0.0
      %v2613 = vmax.f32 %v2581, 0.0
      %v2614 = vmax.f32 %v2582, 0.0
      %v2615 = vmax.f32 %v2583, 0.0
      %v2616 = vmax.f32 %v2584, 0.0
      %v2617 = vmax.f32 %v2585, 0.0
      %v2618 = vmax.f32 %v2586, 0.0
      %v2619 = vpack.c.bf16 %v2589, %v2587
      %v2620 = vpack.c.bf16 %v2590, %v2588
      %v2621 = vpack.c.bf16 %v2593, %v2591
      %v2622 = vpack.c.bf16 %v2594, %v2592
      %v2623 = vpack.c.bf16 %v2597, %v2595
      %v2624 = vpack.c.bf16 %v2598, %v2596
      %v2625 = vpack.c.bf16 %v2601, %v2599
      %v2626 = vpack.c.bf16 %v2602, %v2600
      %v2627 = vpack.c.bf16 %v2605, %v2603
      %v2628 = vpack.c.bf16 %v2606, %v2604
      %v2629 = vpack.c.bf16 %v2609, %v2607
      %v2630 = vpack.c.bf16 %v2610, %v2608
      %v2631 = vpack.c.bf16 %v2613, %v2611
      %v2632 = vpack.c.bf16 %v2614, %v2612
      %v2633 = vpack.c.bf16 %v2617, %v2615
      %v2634 = vpack.c.bf16 %v2618, %v2616
      %v2635 = vld [vmem:[%s18] sm:$0xf]
      %v2636 = vld [vmem:[%s18 + $0x4] sm:$0xf]
      %v2637 = vld [vmem:[%s18 + $0x8] sm:$0xf]
      %v2638 = vld [vmem:[%s18 + $0xc] sm:$0xf]
      %v2639 = vld [vmem:[%s18 + $0x10] sm:$0xf]
      %v2640 = vld [vmem:[%s18 + $0x14] sm:$0xf]
      %v2641 = vld [vmem:[%s18 + $0x18] sm:$0xf]
      %v2642 = vld [vmem:[%s18 + $0x1c] sm:$0xf]
      %v2643 = vld [vmem:[%s18 + $0x20] sm:$0xf]
      %v2644 = vld [vmem:[%s18 + $0x24] sm:$0xf]
      %v2645 = vld [vmem:[%s18 + $0x28] sm:$0xf]
      %v2646 = vld [vmem:[%s18 + $0x2c] sm:$0xf]
      %v2647 = vld [vmem:[%s18 + $0x30] sm:$0xf]
      %v2648 = vld [vmem:[%s18 + $0x34] sm:$0xf]
      %v2649 = vld [vmem:[%s18 + $0x38] sm:$0xf]
      %v2650 = vld [vmem:[%s18 + $0x3c] sm:$0xf]
      %v2651 = vld [vmem:[%s18 + $0x40] sm:$0xf]
      %v2652 = vld [vmem:[%s18 + $0x44] sm:$0xf]
      %v2653 = vld [vmem:[%s18 + $0x48] sm:$0xf]
      %v2654 = vld [vmem:[%s18 + $0x4c] sm:$0xf]
      %v2655 = vld [vmem:[%s18 + $0x50] sm:$0xf]
      %v2656 = vld [vmem:[%s18 + $0x54] sm:$0xf]
      %v2657 = vld [vmem:[%s18 + $0x58] sm:$0xf]
      %v2658 = vld [vmem:[%s18 + $0x5c] sm:$0xf]
      %v2659 = vld [vmem:[%s18 + $0x60] sm:$0xf]
      %v2660 = vld [vmem:[%s18 + $0x64] sm:$0xf]
      %v2661 = vld [vmem:[%s18 + $0x68] sm:$0xf]
      %v2662 = vld [vmem:[%s18 + $0x6c] sm:$0xf]
      %v2663 = vld [vmem:[%s18 + $0x70] sm:$0xf]
      %v2664 = vld [vmem:[%s18 + $0x74] sm:$0xf]
      %v2665 = vld [vmem:[%s18 + $0x78] sm:$0xf]
      %v2666 = vld [vmem:[%s18 + $0x7c] sm:$0xf]
      %v2667 = vld [vmem:[%s19] sm:$0x1]
      %v2668 = vlaneseq
      %v2669 = vshrl.u32 %v2668, 7
      %v2670 = vsub.s32 0, %v2669
      %v2671 = vrot.slane %v2667, %v2670
      %v2704 = vunpack.c.l.b16 %v2635
      %v2705 = vunpack.c.l.b16 %v2636
      %v2706 = vunpack.c.l.b16 %v2637
      %v2707 = vunpack.c.l.b16 %v2638
      %v2708 = vunpack.c.l.b16 %v2639
      %v2709 = vunpack.c.l.b16 %v2640
      %v2710 = vunpack.c.l.b16 %v2641
      %v2711 = vunpack.c.l.b16 %v2642
      %v2712 = vunpack.c.l.b16 %v2643
      %v2713 = vunpack.c.l.b16 %v2644
      %v2714 = vunpack.c.l.b16 %v2645
      %v2715 = vunpack.c.l.b16 %v2646
      %v2716 = vunpack.c.l.b16 %v2647
      %v2717 = vunpack.c.l.b16 %v2648
      %v2718 = vunpack.c.l.b16 %v2649
      %v2719 = vunpack.c.l.b16 %v2650
      %v2720 = vunpack.c.l.b16 %v2651
      %v2721 = vunpack.c.l.b16 %v2652
      %v2722 = vunpack.c.l.b16 %v2653
      %v2723 = vunpack.c.l.b16 %v2654
      %v2724 = vunpack.c.l.b16 %v2655
      %v2725 = vunpack.c.l.b16 %v2656
      %v2726 = vunpack.c.l.b16 %v2657
      %v2727 = vunpack.c.l.b16 %v2658
      %v2728 = vunpack.c.l.b16 %v2659
      %v2729 = vunpack.c.l.b16 %v2660
      %v2730 = vunpack.c.l.b16 %v2661
      %v2731 = vunpack.c.l.b16 %v2662
      %v2732 = vunpack.c.l.b16 %v2663
      %v2733 = vunpack.c.l.b16 %v2664
      %v2734 = vunpack.c.l.b16 %v2665
      %v2735 = vunpack.c.l.b16 %v2666
      %v2736 = vpack.c.b16 %v2705, %v2704
      %v2737 = vpack.c.b16 %v2707, %v2706
      %v2738 = vpack.c.b16 %v2709, %v2708
      %v2739 = vpack.c.b16 %v2711, %v2710
      %v2740 = vpack.c.b16 %v2713, %v2712
      %v2741 = vpack.c.b16 %v2715, %v2714
      %v2742 = vpack.c.b16 %v2717, %v2716
      %v2743 = vpack.c.b16 %v2719, %v2718
      %v2744 = vpack.c.b16 %v2721, %v2720
      %v2745 = vpack.c.b16 %v2723, %v2722
      %v2746 = vpack.c.b16 %v2725, %v2724
      %v2747 = vpack.c.b16 %v2727, %v2726
      %v2748 = vpack.c.b16 %v2729, %v2728
      %v2749 = vpack.c.b16 %v2731, %v2730
      %v2750 = vpack.c.b16 %v2733, %v2732
      %v2751 = vpack.c.b16 %v2735, %v2734
      %2768 = vmatprep.subr.bf16.mxu0 0
      %2769 = vmatpush1.bf16.msra.mxu0 %v2743
      %2770 = vmatprep.subr.bf16.mxu0 0
      %2771 = vmatpush1.bf16.msra.mxu0 %v2742
      %2772 = vmatprep.subr.bf16.mxu0 0
      %2773 = vmatpush1.bf16.msra.mxu0 %v2741
      %2774 = vmatprep.subr.bf16.mxu0 0
      %2775 = vmatpush1.bf16.msra.mxu0 %v2740
      %2776 = vmatprep.subr.bf16.mxu0 0
      %2777 = vmatpush1.bf16.msra.mxu0 %v2739
      %2778 = vmatprep.subr.bf16.mxu0 0
      %2779 = vmatpush1.bf16.msra.mxu0 %v2738
      %2780 = vmatprep.subr.bf16.mxu0 0
      %2781 = vmatpush1.bf16.msra.mxu0 %v2737
      %2782 = vmatprep.subr.bf16.mxu0 0
      %2783 = vmatpush1.bf16.msra.mxu0 %v2736
      %2784 = vmatprep.subr.bf16.mxu0 0
      %2785 = vmatpush2.bf16.msra.mxu0 %v2751
      %2786 = vmatprep.subr.bf16.mxu0 0
      %2787 = vmatpush2.bf16.msra.mxu0 %v2750
      %2788 = vmatprep.subr.bf16.mxu0 0
      %2789 = vmatpush2.bf16.msra.mxu0 %v2749
      %2790 = vmatprep.subr.bf16.mxu0 0
      %2791 = vmatpush2.bf16.msra.mxu0 %v2748
      %2792 = vmatprep.subr.bf16.mxu0 0
      %2793 = vmatpush2.bf16.msra.mxu0 %v2747
      %2794 = vmatprep.subr.bf16.mxu0 0
      %2795 = vmatpush2.bf16.msra.mxu0 %v2746
      %2796 = vmatprep.subr.bf16.mxu0 0
      %2797 = vmatpush2.bf16.msra.mxu0 %v2745
      %2798 = vmatprep.subr.bf16.mxu0 0
      %2799 = vmatpush2.bf16.msra.mxu0 %v2744
      %2800 = vmatprep.mubr.bf16.mxu0 %v2620
      %2801 = vmatmul.mubr.bf16.gmra.mxu0 %v2619
      %v2802 = vpop.f32.mrf.mxu0
      %v2803 = vadd.f32 %v2671, %v2802
      %v2804 = vpop.f32.mrf.mxu0
      %v2805 = vpop.f32.mrf.mxu0
      %v2806 = vadd.f32 %v2671, %v2805
      %v2807 = vpop.f32.mrf.mxu0
      %2808 = vmatprep.mubr.bf16.mxu0 %v2622
      %2809 = vmatmul.mubr.bf16.gmra.mxu0 %v2621
      %v2810 = vpop.f32.mrf.mxu0
      %v2811 = vadd.f32 %v2671, %v2810
      %v2812 = vpop.f32.mrf.mxu0
      %v2813 = vpop.f32.mrf.mxu0
      %v2814 = vadd.f32 %v2671, %v2813
      %v2815 = vpop.f32.mrf.mxu0
      %2816 = vmatprep.mubr.bf16.mxu0 %v2624
      %2817 = vmatmul.mubr.bf16.gmra.mxu0 %v2623
      %v2818 = vpop.f32.mrf.mxu0
      %v2819 = vadd.f32 %v2671, %v2818
      %v2820 = vpop.f32.mrf.mxu0
      %v2821 = vpop.f32.mrf.mxu0
      %v2822 = vadd.f32 %v2671, %v2821
      %v2823 = vpop.f32.mrf.mxu0
      %2824 = vmatprep.mubr.bf16.mxu0 %v2626
      %2825 = vmatmul.mubr.bf16.gmra.mxu0 %v2625
      %v2826 = vpop.f32.mrf.mxu0
      %v2827 = vadd.f32 %v2671, %v2826
      %v2828 = vpop.f32.mrf.mxu0
      %v2829 = vpop.f32.mrf.mxu0
      %v2830 = vadd.f32 %v2671, %v2829
      %v2831 = vpop.f32.mrf.mxu0
      %2832 = vmatprep.mubr.bf16.mxu0 %v2628
      %2833 = vmatmul.mubr.bf16.gmra.mxu0 %v2627
      %v2834 = vpop.f32.mrf.mxu0
      %v2835 = vadd.f32 %v2671, %v2834
      %v2836 = vpop.f32.mrf.mxu0
      %v2837 = vpop.f32.mrf.mxu0
      %v2838 = vadd.f32 %v2671, %v2837
      %v2839 = vpop.f32.mrf.mxu0
      %2840 = vmatprep.mubr.bf16.mxu0 %v2630
      %2841 = vmatmul.mubr.bf16.gmra.mxu0 %v2629
      %v2842 = vpop.f32.mrf.mxu0
      %v2843 = vadd.f32 %v2671, %v2842
      %v2844 = vpop.f32.mrf.mxu0
      %v2845 = vpop.f32.mrf.mxu0
      %v2846 = vadd.f32 %v2671, %v2845
      %v2847 = vpop.f32.mrf.mxu0
      %2848 = vmatprep.mubr.bf16.mxu0 %v2632
      %2849 = vmatmul.mubr.bf16.gmra.mxu0 %v2631
      %v2850 = vpop.f32.mrf.mxu0
      %v2851 = vadd.f32 %v2671, %v2850
      %v2852 = vpop.f32.mrf.mxu0
      %v2853 = vpop.f32.mrf.mxu0
      %v2854 = vadd.f32 %v2671, %v2853
      %v2855 = vpop.f32.mrf.mxu0
      %2856 = vmatprep.mubr.bf16.mxu0 %v2634
      %2857 = vmatmul.mubr.bf16.gmra.mxu0 %v2633
      %v2858 = vpop.f32.mrf.mxu0
      %v2859 = vadd.f32 %v2671, %v2858
      %v2860 = vpop.f32.mrf.mxu0
      %v2861 = vpop.f32.mrf.mxu0
      %v2862 = vadd.f32 %v2671, %v2861
      %v2863 = vpop.f32.mrf.mxu0
      %2864 = vdwg.mxu0
      %v2865 = vmax.f32 %v2803, 0.0
      %v2866 = vmax.f32 %v2806, 0.0
      %v2867 = vmax.f32 %v2811, 0.0
      %v2868 = vmax.f32 %v2814, 0.0
      %v2869 = vmax.f32 %v2819, 0.0
      %v2870 = vmax.f32 %v2822, 0.0
      %v2871 = vmax.f32 %v2827, 0.0
      %v2872 = vmax.f32 %v2830, 0.0
      %v2873 = vmax.f32 %v2835, 0.0
      %v2874 = vmax.f32 %v2838, 0.0
      %v2875 = vmax.f32 %v2843, 0.0
      %v2876 = vmax.f32 %v2846, 0.0
      %v2877 = vmax.f32 %v2851, 0.0
      %v2878 = vmax.f32 %v2854, 0.0
      %v2879 = vmax.f32 %v2859, 0.0
      %v2880 = vmax.f32 %v2862, 0.0
      %v2881 = vpack.c.bf16 %v2866, %v2865
      %v2882 = vpack.c.bf16 %v2868, %v2867
      %v2883 = vpack.c.bf16 %v2870, %v2869
      %v2884 = vpack.c.bf16 %v2872, %v2871
      %v2885 = vpack.c.bf16 %v2874, %v2873
      %v2886 = vpack.c.bf16 %v2876, %v2875
      %v2887 = vpack.c.bf16 %v2878, %v2877
      %v2888 = vpack.c.bf16 %v2880, %v2879
      %v2889 = vld [vmem:[%s20] sm:$0xf]
      %v2890 = vld [vmem:[%s20 + $0x4] sm:$0xf]
      %v2891 = vld [vmem:[%s20 + $0x8] sm:$0xf]
      %v2892 = vld [vmem:[%s20 + $0xc] sm:$0xf]
      %v2893 = vld [vmem:[%s20 + $0x10] sm:$0xf]
      %v2894 = vld [vmem:[%s20 + $0x14] sm:$0xf]
      %v2895 = vld [vmem:[%s20 + $0x18] sm:$0xf]
      %v2896 = vld [vmem:[%s20 + $0x1c] sm:$0xf]
      %v2897 = vld [vmem:[%s20 + $0x20] sm:$0xf]
      %v2898 = vld [vmem:[%s20 + $0x24] sm:$0xf]
      %v2899 = vld [vmem:[%s20 + $0x28] sm:$0xf]
      %v2900 = vld [vmem:[%s20 + $0x2c] sm:$0xf]
      %v2901 = vld [vmem:[%s20 + $0x30] sm:$0xf]
      %v2902 = vld [vmem:[%s20 + $0x34] sm:$0xf]
      %v2903 = vld [vmem:[%s20 + $0x38] sm:$0xf]
      %v2904 = vld [vmem:[%s20 + $0x3c] sm:$0xf]
      %v2905 = vld [vmem:[%s21] sm:$0x1]
      %v2906 = vlaneseq
      %v2907 = vshrl.u32 %v2906, 7
      %v2908 = vsub.s32 0, %v2907
      %v2909 = vrot.slane %v2905, %v2908
      %v2926 = vunpack.c.l.b16 %v2889
      %v2927 = vunpack.c.l.b16 %v2890
      %v2928 = vunpack.c.l.b16 %v2891
      %v2929 = vunpack.c.l.b16 %v2892
      %v2930 = vunpack.c.l.b16 %v2893
      %v2931 = vunpack.c.l.b16 %v2894
      %v2932 = vunpack.c.l.b16 %v2895
      %v2933 = vunpack.c.l.b16 %v2896
      %v2934 = vunpack.c.l.b16 %v2897
      %v2935 = vunpack.c.l.b16 %v2898
      %v2936 = vunpack.c.l.b16 %v2899
      %v2937 = vunpack.c.l.b16 %v2900
      %v2938 = vunpack.c.l.b16 %v2901
      %v2939 = vunpack.c.l.b16 %v2902
      %v2940 = vunpack.c.l.b16 %v2903
      %v2941 = vunpack.c.l.b16 %v2904
      %v2942 = vpack.c.b16 %v2927, %v2926
      %v2943 = vpack.c.b16 %v2929, %v2928
      %v2944 = vpack.c.b16 %v2931, %v2930
      %v2945 = vpack.c.b16 %v2933, %v2932
      %v2946 = vpack.c.b16 %v2935, %v2934
      %v2947 = vpack.c.b16 %v2937, %v2936
      %v2948 = vpack.c.b16 %v2939, %v2938
      %v2949 = vpack.c.b16 %v2941, %v2940
      %2958 = vmatprep.subr.bf16.mxu0 0
      %2959 = vmatpush1.bf16.msra.mxu0 %v2949
      %2960 = vmatprep.subr.bf16.mxu0 0
      %2961 = vmatpush1.bf16.msra.mxu0 %v2948
      %2962 = vmatprep.subr.bf16.mxu0 0
      %2963 = vmatpush1.bf16.msra.mxu0 %v2947
      %2964 = vmatprep.subr.bf16.mxu0 0
      %2965 = vmatpush1.bf16.msra.mxu0 %v2946
      %2966 = vmatprep.subr.bf16.mxu0 0
      %2967 = vmatpush1.bf16.msra.mxu0 %v2945
      %2968 = vmatprep.subr.bf16.mxu0 0
      %2969 = vmatpush1.bf16.msra.mxu0 %v2944
      %2970 = vmatprep.subr.bf16.mxu0 0
      %2971 = vmatpush1.bf16.msra.mxu0 %v2943
      %2972 = vmatprep.subr.bf16.mxu0 0
      %2973 = vmatpush1.bf16.msra.mxu0 %v2942
      %2974 = vmatprep.subr.bf16.mxu0 0
      %2975 = vmatpush2.bf16.msra.mxu0 0
      %2976 = vmatprep.subr.bf16.mxu0 0
      %2977 = vmatpush2.bf16.msra.mxu0 0
      %2978 = vmatprep.subr.bf16.mxu0 0
      %2979 = vmatpush2.bf16.msra.mxu0 0
      %2980 = vmatprep.subr.bf16.mxu0 0
      %2981 = vmatpush2.bf16.msra.mxu0 0
      %2982 = vmatprep.subr.bf16.mxu0 0
      %2983 = vmatpush2.bf16.msra.mxu0 0
      %2984 = vmatprep.subr.bf16.mxu0 0
      %2985 = vmatpush2.bf16.msra.mxu0 0
      %2986 = vmatprep.subr.bf16.mxu0 0
      %2987 = vmatpush2.bf16.msra.mxu0 0
      %2988 = vmatprep.subr.bf16.mxu0 0
      %2989 = vmatpush2.bf16.msra.mxu0 0
      %2990 = vmatprep.mubr.bf16.mxu0 0
      %2991 = vmatmul.mubr.bf16.gmra.mxu0 %v2881
      %v2992 = vpop.f32.mrf.mxu0
      %v2993 = vadd.f32 %v2909, %v2992
      %v2994 = vpop.f32.mrf.mxu0
      %v2995 = vpop.f32.mrf.mxu0
      %v2996 = vadd.f32 %v2909, %v2995
      %v2997 = vpop.f32.mrf.mxu0
      %2998 = vmatprep.mubr.bf16.mxu0 0
      %2999 = vmatmul.mubr.bf16.gmra.mxu0 %v2882
      %v3000 = vpop.f32.mrf.mxu0
      %v3001 = vadd.f32 %v2909, %v3000
      %v3002 = vpop.f32.mrf.mxu0
      %v3003 = vpop.f32.mrf.mxu0
      %v3004 = vadd.f32 %v2909, %v3003
      %v3005 = vpop.f32.mrf.mxu0
      %3006 = vmatprep.mubr.bf16.mxu0 0
      %3007 = vmatmul.mubr.bf16.gmra.mxu0 %v2883
      %v3008 = vpop.f32.mrf.mxu0
      %v3009 = vadd.f32 %v2909, %v3008
      %v3010 = vpop.f32.mrf.mxu0
      %v3011 = vpop.f32.mrf.mxu0
      %v3012 = vadd.f32 %v2909, %v3011
      %v3013 = vpop.f32.mrf.mxu0
      %3014 = vmatprep.mubr.bf16.mxu0 0
      %3015 = vmatmul.mubr.bf16.gmra.mxu0 %v2884
      %v3016 = vpop.f32.mrf.mxu0
      %v3017 = vadd.f32 %v2909, %v3016
      %v3018 = vpop.f32.mrf.mxu0
      %v3019 = vpop.f32.mrf.mxu0
      %v3020 = vadd.f32 %v2909, %v3019
      %v3021 = vpop.f32.mrf.mxu0
      %3022 = vmatprep.mubr.bf16.mxu0 0
      %3023 = vmatmul.mubr.bf16.gmra.mxu0 %v2885
      %v3024 = vpop.f32.mrf.mxu0
      %v3025 = vadd.f32 %v2909, %v3024
      %v3026 = vpop.f32.mrf.mxu0
      %v3027 = vpop.f32.mrf.mxu0
      %v3028 = vadd.f32 %v2909, %v3027
      %v3029 = vpop.f32.mrf.mxu0
      %3030 = vmatprep.mubr.bf16.mxu0 0
      %3031 = vmatmul.mubr.bf16.gmra.mxu0 %v2886
      %v3032 = vpop.f32.mrf.mxu0
      %v3033 = vadd.f32 %v2909, %v3032
      %v3034 = vpop.f32.mrf.mxu0
      %v3035 = vpop.f32.mrf.mxu0
      %v3036 = vadd.f32 %v2909, %v3035
      %v3037 = vpop.f32.mrf.mxu0
      %3038 = vmatprep.mubr.bf16.mxu0 0
      %3039 = vmatmul.mubr.bf16.gmra.mxu0 %v2887
      %v3040 = vpop.f32.mrf.mxu0
      %v3041 = vadd.f32 %v2909, %v3040
      %v3042 = vpop.f32.mrf.mxu0
      %v3043 = vpop.f32.mrf.mxu0
      %v3044 = vadd.f32 %v2909, %v3043
      %v3045 = vpop.f32.mrf.mxu0
      %3046 = vmatprep.mubr.bf16.mxu0 0
      %3047 = vmatmul.mubr.bf16.gmra.mxu0 %v2888
      %v3048 = vpop.f32.mrf.mxu0
      %v3049 = vadd.f32 %v2909, %v3048
      %v3050 = vpop.f32.mrf.mxu0
      %v3051 = vpop.f32.mrf.mxu0
      %v3052 = vadd.f32 %v2909, %v3051
      %v3053 = vpop.f32.mrf.mxu0
      %3054 = vdwg.mxu0
      %v3055 = vmax.f32 %v2993, 0.0
      %v3056 = vmax.f32 %v2996, 0.0
      %v3057 = vmax.f32 %v3001, 0.0
      %v3058 = vmax.f32 %v3004, 0.0
      %v3059 = vmax.f32 %v3009, 0.0
      %v3060 = vmax.f32 %v3012, 0.0
      %v3061 = vmax.f32 %v3017, 0.0
      %v3062 = vmax.f32 %v3020, 0.0
      %v3063 = vmax.f32 %v3025, 0.0
      %v3064 = vmax.f32 %v3028, 0.0
      %v3065 = vmax.f32 %v3033, 0.0
      %v3066 = vmax.f32 %v3036, 0.0
      %v3067 = vmax.f32 %v3041, 0.0
      %v3068 = vmax.f32 %v3044, 0.0
      %v3069 = vmax.f32 %v3049, 0.0
      %v3070 = vmax.f32 %v3052, 0.0
      %v3071 = vmax.f32 %v3055, %v3059
      %v3072 = vmax.f32 %v3056, %v3060
      %v3073 = vmax.f32 %v3057, %v3061
      %v3074 = vmax.f32 %v3058, %v3062
      %v3075 = vmax.f32 %v3071, %v3063
      %v3076 = vmax.f32 %v3072, %v3064
      %v3077 = vmax.f32 %v3073, %v3065
      %v3078 = vmax.f32 %v3074, %v3066
      %v3079 = vmax.f32 %v3075, %v3067
      %v3080 = vmax.f32 %v3076, %v3068
      %v3081 = vmax.f32 %v3077, %v3069
      %v3082 = vmax.f32 %v3078, %v3070
      %v3083 = vmax.f32 %v3079, %v3080
      %v3084 = vmax.f32 %v3081, %v3082
      %v3085 = vmax.f32 %v3083, %v3084
      %v3086 = vrot.slane %v3085, 4
      %v3087 = vmax.f32 %v3085, %v3086
      %v3088 = vrot.slane %v3087, 2
      %v3089 = vmax.f32 %v3087, %v3088
      %v3090 = vrot.slane %v3089, 1
      %v3091 = vmax.f32 %v3089, %v3090
      %s3092 = scalar_lea.vmem %s14, 128
      %v3093 = vld [vmem:[%s3092] sm:$0xff]
      %v3094 = vld [vmem:[%s3092 + $0x8] sm:$0xff]
      %v3095 = vld [vmem:[%s3092 + $0x10] sm:$0xff]
      %v3096 = vld [vmem:[%s3092 + $0x18] sm:$0xff]
      %v3097 = vld [vmem:[%s3092 + $0x20] sm:$0xff]
      %v3098 = vld [vmem:[%s3092 + $0x28] sm:$0xff]
      %v3099 = vld [vmem:[%s3092 + $0x30] sm:$0xff]
      %v3100 = vld [vmem:[%s3092 + $0x38] sm:$0xff]
      %v3101 = vld [vmem:[%s3092 + $0x40] sm:$0xff]
      %v3102 = vld [vmem:[%s3092 + $0x48] sm:$0xff]
      %v3103 = vld [vmem:[%s3092 + $0x50] sm:$0xff]
      %v3104 = vld [vmem:[%s3092 + $0x58] sm:$0xff]
      %v3105 = vld [vmem:[%s3092 + $0x60] sm:$0xff]
      %v3106 = vld [vmem:[%s3092 + $0x68] sm:$0xff]
      %v3107 = vld [vmem:[%s3092 + $0x70] sm:$0xff]
      %v3108 = vld [vmem:[%s3092 + $0x78] sm:$0xff]
      %s3109 = scalar_lea.vmem %s15, 8
      %v3110 = vld [vmem:[%s3109] sm:$0x77]
      %v3112 = vunpack.c.l.b16 %v3110
      %v3113 = vunpack.c.h.b16 %v3110
      %v3114 = vpack.c.b16 %v3112, %v3112
      %v3115 = vpack.c.b16 %v3113, %v3113
      %v3117 = vsel %vm2230, %v3114, 0
      %v3120 = vsel %vm2230, %v3115, 0
      %3122 = vmatprep.subr.bf16.mxu0 0
      %3123 = vmatpush1.bf16.msra.mxu0 0
      %3124 = vmatprep.subr.bf16.mxu0 0
      %3125 = vmatpush1.bf16.msra.mxu0 0
      %3126 = vmatprep.subr.bf16.mxu0 0
      %3127 = vmatpush1.bf16.msra.mxu0 0
      %3128 = vmatprep.subr.bf16.mxu0 0
      %3129 = vmatpush1.bf16.msra.mxu0 0
      %3130 = vmatprep.subr.bf16.mxu0 0
      %3131 = vmatpush1.bf16.msra.mxu0 0
      %3132 = vmatprep.subr.bf16.mxu0 0
      %3133 = vmatpush1.bf16.msra.mxu0 0
      %3134 = vmatprep.subr.bf16.mxu0 0
      %3135 = vmatpush1.bf16.msra.mxu0 0
      %3136 = vmatprep.subr.bf16.mxu0 %v3120
      %3137 = vmatpush1.bf16.msra.mxu0 %v3117
      %3138 = vmatprep.subr.bf16.mxu0 0
      %3139 = vmatpush2.bf16.msra.mxu0 0
      %3140 = vmatprep.subr.bf16.mxu0 0
      %3141 = vmatpush2.bf16.msra.mxu0 0
      %3142 = vmatprep.subr.bf16.mxu0 0
      %3143 = vmatpush2.bf16.msra.mxu0 0
      %3144 = vmatprep.subr.bf16.mxu0 0
      %3145 = vmatpush2.bf16.msra.mxu0 0
      %3146 = vmatprep.subr.bf16.mxu0 0
      %3147 = vmatpush2.bf16.msra.mxu0 0
      %3148 = vmatprep.subr.bf16.mxu0 0
      %3149 = vmatpush2.bf16.msra.mxu0 0
      %3150 = vmatprep.subr.bf16.mxu0 0
      %3151 = vmatpush2.bf16.msra.mxu0 0
      %3152 = vmatprep.subr.bf16.mxu0 0
      %3153 = vmatpush2.bf16.msra.mxu0 0
      %3154 = vmatprep.mubr.bf16.mxu0 0
      %3155 = vmatmul.mubr.bf16.gmra.mxu0 %v2207
      %v3156 = vpop.f32.mrf.mxu0
      %v3157 = vadd.f32 0.0, %v3156
      %v3158 = vpop.f32.mrf.mxu0
      %v3159 = vadd.f32 0.0, %v3158
      %v3160 = vpop.f32.mrf.mxu0
      %v3161 = vadd.f32 0.0, %v3160
      %v3162 = vpop.f32.mrf.mxu0
      %v3163 = vadd.f32 0.0, %v3162
      %3164 = vmatprep.mubr.bf16.mxu0 0
      %3165 = vmatmul.mubr.bf16.gmra.mxu0 %v2210
      %v3166 = vpop.f32.mrf.mxu0
      %v3167 = vadd.f32 0.0, %v3166
      %v3168 = vpop.f32.mrf.mxu0
      %v3169 = vadd.f32 0.0, %v3168
      %v3170 = vpop.f32.mrf.mxu0
      %v3171 = vadd.f32 0.0, %v3170
      %v3172 = vpop.f32.mrf.mxu0
      %v3173 = vadd.f32 0.0, %v3172
      %3174 = vmatprep.mubr.bf16.mxu0 0
      %3175 = vmatmul.mubr.bf16.gmra.mxu0 %v2213
      %v3176 = vpop.f32.mrf.mxu0
      %v3177 = vadd.f32 0.0, %v3176
      %v3178 = vpop.f32.mrf.mxu0
      %v3179 = vadd.f32 0.0, %v3178
      %v3180 = vpop.f32.mrf.mxu0
      %v3181 = vadd.f32 0.0, %v3180
      %v3182 = vpop.f32.mrf.mxu0
      %v3183 = vadd.f32 0.0, %v3182
      %3184 = vmatprep.mubr.bf16.mxu0 0
      %3185 = vmatmul.mubr.bf16.gmra.mxu0 %v2216
      %v3186 = vpop.f32.mrf.mxu0
      %v3187 = vadd.f32 0.0, %v3186
      %v3188 = vpop.f32.mrf.mxu0
      %v3189 = vadd.f32 0.0, %v3188
      %v3190 = vpop.f32.mrf.mxu0
      %v3191 = vadd.f32 0.0, %v3190
      %v3192 = vpop.f32.mrf.mxu0
      %v3193 = vadd.f32 0.0, %v3192
      %3194 = vmatprep.mubr.bf16.mxu0 0
      %3195 = vmatmul.mubr.bf16.gmra.mxu0 %v2219
      %v3196 = vpop.f32.mrf.mxu0
      %v3197 = vadd.f32 0.0, %v3196
      %v3198 = vpop.f32.mrf.mxu0
      %v3199 = vadd.f32 0.0, %v3198
      %v3200 = vpop.f32.mrf.mxu0
      %v3201 = vadd.f32 0.0, %v3200
      %v3202 = vpop.f32.mrf.mxu0
      %v3203 = vadd.f32 0.0, %v3202
      %3204 = vmatprep.mubr.bf16.mxu0 0
      %3205 = vmatmul.mubr.bf16.gmra.mxu0 %v2222
      %v3206 = vpop.f32.mrf.mxu0
      %v3207 = vadd.f32 0.0, %v3206
      %v3208 = vpop.f32.mrf.mxu0
      %v3209 = vadd.f32 0.0, %v3208
      %v3210 = vpop.f32.mrf.mxu0
      %v3211 = vadd.f32 0.0, %v3210
      %v3212 = vpop.f32.mrf.mxu0
      %v3213 = vadd.f32 0.0, %v3212
      %3214 = vmatprep.mubr.bf16.mxu0 0
      %3215 = vmatmul.mubr.bf16.gmra.mxu0 %v2225
      %v3216 = vpop.f32.mrf.mxu0
      %v3217 = vadd.f32 0.0, %v3216
      %v3218 = vpop.f32.mrf.mxu0
      %v3219 = vadd.f32 0.0, %v3218
      %v3220 = vpop.f32.mrf.mxu0
      %v3221 = vadd.f32 0.0, %v3220
      %v3222 = vpop.f32.mrf.mxu0
      %v3223 = vadd.f32 0.0, %v3222
      %3224 = vmatprep.mubr.bf16.mxu0 0
      %3225 = vmatmul.mubr.bf16.gmra.mxu0 %v2228
      %v3226 = vpop.f32.mrf.mxu0
      %v3227 = vadd.f32 0.0, %v3226
      %v3228 = vpop.f32.mrf.mxu0
      %v3229 = vadd.f32 0.0, %v3228
      %v3230 = vpop.f32.mrf.mxu0
      %v3231 = vadd.f32 0.0, %v3230
      %v3232 = vpop.f32.mrf.mxu0
      %v3233 = vadd.f32 0.0, %v3232
      %3234 = vdwg.mxu0
      %v3251 = vunpack.c.l.b16 %v3093
      %v3252 = vunpack.c.h.b16 %v3093
      %v3253 = vunpack.c.l.b16 %v3094
      %v3254 = vunpack.c.h.b16 %v3094
      %v3255 = vunpack.c.l.b16 %v3095
      %v3256 = vunpack.c.h.b16 %v3095
      %v3257 = vunpack.c.l.b16 %v3096
      %v3258 = vunpack.c.h.b16 %v3096
      %v3259 = vunpack.c.l.b16 %v3097
      %v3260 = vunpack.c.h.b16 %v3097
      %v3261 = vunpack.c.l.b16 %v3098
      %v3262 = vunpack.c.h.b16 %v3098
      %v3263 = vunpack.c.l.b16 %v3099
      %v3264 = vunpack.c.h.b16 %v3099
      %v3265 = vunpack.c.l.b16 %v3100
      %v3266 = vunpack.c.h.b16 %v3100
      %v3267 = vunpack.c.l.b16 %v3101
      %v3268 = vunpack.c.h.b16 %v3101
      %v3269 = vunpack.c.l.b16 %v3102
      %v3270 = vunpack.c.h.b16 %v3102
      %v3271 = vunpack.c.l.b16 %v3103
      %v3272 = vunpack.c.h.b16 %v3103
      %v3273 = vunpack.c.l.b16 %v3104
      %v3274 = vunpack.c.h.b16 %v3104
      %v3275 = vunpack.c.l.b16 %v3105
      %v3276 = vunpack.c.h.b16 %v3105
      %v3277 = vunpack.c.l.b16 %v3106
      %v3278 = vunpack.c.h.b16 %v3106
      %v3279 = vunpack.c.l.b16 %v3107
      %v3280 = vunpack.c.h.b16 %v3107
      %v3281 = vunpack.c.l.b16 %v3108
      %v3282 = vunpack.c.h.b16 %v3108
      %v3283 = vpack.c.b16 %v3253, %v3251
      %v3284 = vpack.c.b16 %v3254, %v3252
      %v3285 = vpack.c.b16 %v3257, %v3255
      %v3286 = vpack.c.b16 %v3258, %v3256
      %v3287 = vpack.c.b16 %v3261, %v3259
      %v3288 = vpack.c.b16 %v3262, %v3260
      %v3289 = vpack.c.b16 %v3265, %v3263
      %v3290 = vpack.c.b16 %v3266, %v3264
      %v3291 = vpack.c.b16 %v3269, %v3267
      %v3292 = vpack.c.b16 %v3270, %v3268
      %v3293 = vpack.c.b16 %v3273, %v3271
      %v3294 = vpack.c.b16 %v3274, %v3272
      %v3295 = vpack.c.b16 %v3277, %v3275
      %v3296 = vpack.c.b16 %v3278, %v3276
      %v3297 = vpack.c.b16 %v3281, %v3279
      %v3298 = vpack.c.b16 %v3282, %v3280
      %3315 = vmatprep.subr.bf16.mxu0 %v3298
      %3316 = vmatpush1.bf16.msra.mxu0 %v3297
      %3317 = vmatprep.subr.bf16.mxu0 %v3296
      %3318 = vmatpush1.bf16.msra.mxu0 %v3295
      %3319 = vmatprep.subr.bf16.mxu0 %v3294
      %3320 = vmatpush1.bf16.msra.mxu0 %v3293
      %3321 = vmatprep.subr.bf16.mxu0 %v3292
      %3322 = vmatpush1.bf16.msra.mxu0 %v3291
      %3323 = vmatprep.subr.bf16.mxu0 %v3290
      %3324 = vmatpush1.bf16.msra.mxu0 %v3289
      %3325 = vmatprep.subr.bf16.mxu0 %v3288
      %3326 = vmatpush1.bf16.msra.mxu0 %v3287
      %3327 = vmatprep.subr.bf16.mxu0 %v3286
      %3328 = vmatpush1.bf16.msra.mxu0 %v3285
      %3329 = vmatprep.subr.bf16.mxu0 %v3284
      %3330 = vmatpush1.bf16.msra.mxu0 %v3283
      %3331 = vmatprep.subr.bf16.mxu0 0
      %3332 = vmatpush2.bf16.msra.mxu0 0
      %3333 = vmatprep.subr.bf16.mxu0 0
      %3334 = vmatpush2.bf16.msra.mxu0 0
      %3335 = vmatprep.subr.bf16.mxu0 0
      %3336 = vmatpush2.bf16.msra.mxu0 0
      %3337 = vmatprep.subr.bf16.mxu0 0
      %3338 = vmatpush2.bf16.msra.mxu0 0
      %3339 = vmatprep.subr.bf16.mxu0 0
      %3340 = vmatpush2.bf16.msra.mxu0 0
      %3341 = vmatprep.subr.bf16.mxu0 0
      %3342 = vmatpush2.bf16.msra.mxu0 0
      %3343 = vmatprep.subr.bf16.mxu0 0
      %3344 = vmatpush2.bf16.msra.mxu0 0
      %3345 = vmatprep.subr.bf16.mxu0 0
      %3346 = vmatpush2.bf16.msra.mxu0 0
      %3347 = vmatprep.mubr.bf16.mxu0 0
      %3348 = vmatmul.mubr.bf16.gmra.mxu0 %v1735
      %v3349 = vpop.f32.mrf.mxu0
      %v3350 = vadd.f32 %v3157, %v3349
      %v3351 = vpop.f32.mrf.mxu0
      %v3352 = vadd.f32 %v3159, %v3351
      %v3353 = vpop.f32.mrf.mxu0
      %v3354 = vadd.f32 %v3161, %v3353
      %v3355 = vpop.f32.mrf.mxu0
      %v3356 = vadd.f32 %v3163, %v3355
      %3357 = vmatprep.mubr.bf16.mxu0 0
      %3358 = vmatmul.mubr.bf16.gmra.mxu0 %v1736
      %v3359 = vpop.f32.mrf.mxu0
      %v3360 = vadd.f32 %v3167, %v3359
      %v3361 = vpop.f32.mrf.mxu0
      %v3362 = vadd.f32 %v3169, %v3361
      %v3363 = vpop.f32.mrf.mxu0
      %v3364 = vadd.f32 %v3171, %v3363
      %v3365 = vpop.f32.mrf.mxu0
      %v3366 = vadd.f32 %v3173, %v3365
      %3367 = vmatprep.mubr.bf16.mxu0 0
      %3368 = vmatmul.mubr.bf16.gmra.mxu0 %v1737
      %v3369 = vpop.f32.mrf.mxu0
      %v3370 = vadd.f32 %v3177, %v3369
      %v3371 = vpop.f32.mrf.mxu0
      %v3372 = vadd.f32 %v3179, %v3371
      %v3373 = vpop.f32.mrf.mxu0
      %v3374 = vadd.f32 %v3181, %v3373
      %v3375 = vpop.f32.mrf.mxu0
      %v3376 = vadd.f32 %v3183, %v3375
      %3377 = vmatprep.mubr.bf16.mxu0 0
      %3378 = vmatmul.mubr.bf16.gmra.mxu0 %v1738
      %v3379 = vpop.f32.mrf.mxu0
      %v3380 = vadd.f32 %v3187, %v3379
      %v3381 = vpop.f32.mrf.mxu0
      %v3382 = vadd.f32 %v3189, %v3381
      %v3383 = vpop.f32.mrf.mxu0
      %v3384 = vadd.f32 %v3191, %v3383
      %v3385 = vpop.f32.mrf.mxu0
      %v3386 = vadd.f32 %v3193, %v3385
      %3387 = vmatprep.mubr.bf16.mxu0 0
      %3388 = vmatmul.mubr.bf16.gmra.mxu0 %v1739
      %v3389 = vpop.f32.mrf.mxu0
      %v3390 = vadd.f32 %v3197, %v3389
      %v3391 = vpop.f32.mrf.mxu0
      %v3392 = vadd.f32 %v3199, %v3391
      %v3393 = vpop.f32.mrf.mxu0
      %v3394 = vadd.f32 %v3201, %v3393
      %v3395 = vpop.f32.mrf.mxu0
      %v3396 = vadd.f32 %v3203, %v3395
      %3397 = vmatprep.mubr.bf16.mxu0 0
      %3398 = vmatmul.mubr.bf16.gmra.mxu0 %v1740
      %v3399 = vpop.f32.mrf.mxu0
      %v3400 = vadd.f32 %v3207, %v3399
      %v3401 = vpop.f32.mrf.mxu0
      %v3402 = vadd.f32 %v3209, %v3401
      %v3403 = vpop.f32.mrf.mxu0
      %v3404 = vadd.f32 %v3211, %v3403
      %v3405 = vpop.f32.mrf.mxu0
      %v3406 = vadd.f32 %v3213, %v3405
      %3407 = vmatprep.mubr.bf16.mxu0 0
      %3408 = vmatmul.mubr.bf16.gmra.mxu0 %v1741
      %v3409 = vpop.f32.mrf.mxu0
      %v3410 = vadd.f32 %v3217, %v3409
      %v3411 = vpop.f32.mrf.mxu0
      %v3412 = vadd.f32 %v3219, %v3411
      %v3413 = vpop.f32.mrf.mxu0
      %v3414 = vadd.f32 %v3221, %v3413
      %v3415 = vpop.f32.mrf.mxu0
      %v3416 = vadd.f32 %v3223, %v3415
      %3417 = vmatprep.mubr.bf16.mxu0 0
      %3418 = vmatmul.mubr.bf16.gmra.mxu0 %v1742
      %v3419 = vpop.f32.mrf.mxu0
      %v3420 = vadd.f32 %v3227, %v3419
      %v3421 = vpop.f32.mrf.mxu0
      %v3422 = vadd.f32 %v3229, %v3421
      %v3423 = vpop.f32.mrf.mxu0
      %v3424 = vadd.f32 %v3231, %v3423
      %v3425 = vpop.f32.mrf.mxu0
      %v3426 = vadd.f32 %v3233, %v3425
      %3427 = vdwg.mxu0
      %s3428 = scalar_lea.vmem %s17, 1
      %v3429 = vld [vmem:[%s3428] ss:$4 sm:$0x3]
      %v3431 = vlaneseq
      %v3432 = vshrl.u32 %v3431, 7
      %v3433 = vsub.s32 0, %v3432
      %v3434 = vrot.slane %v3429, %v3433
      %v3435 = vlaneseq
      %v3436 = vshrl.u32 %v3435, 7
      %v3437 = vsub.s32 1, %v3436
      %v3438 = vrot.slane %v3429, %v3437
      %v3441 = vadd.f32 %v3350, %v3434
      %v3442 = vadd.f32 %v3352, %v3438
      %v3443 = vadd.f32 %v3354, %v3434
      %v3444 = vadd.f32 %v3356, %v3438
      %v3445 = vadd.f32 %v3360, %v3434
      %v3446 = vadd.f32 %v3362, %v3438
      %v3447 = vadd.f32 %v3364, %v3434
      %v3448 = vadd.f32 %v3366, %v3438
      %v3449 = vadd.f32 %v3370, %v3434
      %v3450 = vadd.f32 %v3372, %v3438
      %v3451 = vadd.f32 %v3374, %v3434
      %v3452 = vadd.f32 %v3376, %v3438
      %v3453 = vadd.f32 %v3380, %v3434
      %v3454 = vadd.f32 %v3382, %v3438
      %v3455 = vadd.f32 %v3384, %v3434
      %v3456 = vadd.f32 %v3386, %v3438
      %v3457 = vadd.f32 %v3390, %v3434
      %v3458 = vadd.f32 %v3392, %v3438
      %v3459 = vadd.f32 %v3394, %v3434
      %v3460 = vadd.f32 %v3396, %v3438
      %v3461 = vadd.f32 %v3400, %v3434
      %v3462 = vadd.f32 %v3402, %v3438
      %v3463 = vadd.f32 %v3404, %v3434
      %v3464 = vadd.f32 %v3406, %v3438
      %v3465 = vadd.f32 %v3410, %v3434
      %v3466 = vadd.f32 %v3412, %v3438
      %v3467 = vadd.f32 %v3414, %v3434
      %v3468 = vadd.f32 %v3416, %v3438
      %v3469 = vadd.f32 %v3420, %v3434
      %v3470 = vadd.f32 %v3422, %v3438
      %v3471 = vadd.f32 %v3424, %v3434
      %v3472 = vadd.f32 %v3426, %v3438
      %v3473 = vmax.f32 %v3441, 0.0
      %v3474 = vmax.f32 %v3442, 0.0
      %v3475 = vmax.f32 %v3443, 0.0
      %v3476 = vmax.f32 %v3444, 0.0
      %v3477 = vmax.f32 %v3445, 0.0
      %v3478 = vmax.f32 %v3446, 0.0
      %v3479 = vmax.f32 %v3447, 0.0
      %v3480 = vmax.f32 %v3448, 0.0
      %v3481 = vmax.f32 %v3449, 0.0
      %v3482 = vmax.f32 %v3450, 0.0
      %v3483 = vmax.f32 %v3451, 0.0
      %v3484 = vmax.f32 %v3452, 0.0
      %v3485 = vmax.f32 %v3453, 0.0
      %v3486 = vmax.f32 %v3454, 0.0
      %v3487 = vmax.f32 %v3455, 0.0
      %v3488 = vmax.f32 %v3456, 0.0
      %v3489 = vmax.f32 %v3457, 0.0
      %v3490 = vmax.f32 %v3458, 0.0
      %v3491 = vmax.f32 %v3459, 0.0
      %v3492 = vmax.f32 %v3460, 0.0
      %v3493 = vmax.f32 %v3461, 0.0
      %v3494 = vmax.f32 %v3462, 0.0
      %v3495 = vmax.f32 %v3463, 0.0
      %v3496 = vmax.f32 %v3464, 0.0
      %v3497 = vmax.f32 %v3465, 0.0
      %v3498 = vmax.f32 %v3466, 0.0
      %v3499 = vmax.f32 %v3467, 0.0
      %v3500 = vmax.f32 %v3468, 0.0
      %v3501 = vmax.f32 %v3469, 0.0
      %v3502 = vmax.f32 %v3470, 0.0
      %v3503 = vmax.f32 %v3471, 0.0
      %v3504 = vmax.f32 %v3472, 0.0
      %v3505 = vpack.c.bf16 %v3475, %v3473
      %v3506 = vpack.c.bf16 %v3476, %v3474
      %v3507 = vpack.c.bf16 %v3479, %v3477
      %v3508 = vpack.c.bf16 %v3480, %v3478
      %v3509 = vpack.c.bf16 %v3483, %v3481
      %v3510 = vpack.c.bf16 %v3484, %v3482
      %v3511 = vpack.c.bf16 %v3487, %v3485
      %v3512 = vpack.c.bf16 %v3488, %v3486
      %v3513 = vpack.c.bf16 %v3491, %v3489
      %v3514 = vpack.c.bf16 %v3492, %v3490
      %v3515 = vpack.c.bf16 %v3495, %v3493
      %v3516 = vpack.c.bf16 %v3496, %v3494
      %v3517 = vpack.c.bf16 %v3499, %v3497
      %v3518 = vpack.c.bf16 %v3500, %v3498
      %v3519 = vpack.c.bf16 %v3503, %v3501
      %v3520 = vpack.c.bf16 %v3504, %v3502
      %s3521 = scalar_lea.vmem %s18, 128
      %v3522 = vld [vmem:[%s3521] sm:$0xf]
      %v3523 = vld [vmem:[%s3521 + $0x4] sm:$0xf]
      %v3524 = vld [vmem:[%s3521 + $0x8] sm:$0xf]
      %v3525 = vld [vmem:[%s3521 + $0xc] sm:$0xf]
      %v3526 = vld [vmem:[%s3521 + $0x10] sm:$0xf]
      %v3527 = vld [vmem:[%s3521 + $0x14] sm:$0xf]
      %v3528 = vld [vmem:[%s3521 + $0x18] sm:$0xf]
      %v3529 = vld [vmem:[%s3521 + $0x1c] sm:$0xf]
      %v3530 = vld [vmem:[%s3521 + $0x20] sm:$0xf]
      %v3531 = vld [vmem:[%s3521 + $0x24] sm:$0xf]
      %v3532 = vld [vmem:[%s3521 + $0x28] sm:$0xf]
      %v3533 = vld [vmem:[%s3521 + $0x2c] sm:$0xf]
      %v3534 = vld [vmem:[%s3521 + $0x30] sm:$0xf]
      %v3535 = vld [vmem:[%s3521 + $0x34] sm:$0xf]
      %v3536 = vld [vmem:[%s3521 + $0x38] sm:$0xf]
      %v3537 = vld [vmem:[%s3521 + $0x3c] sm:$0xf]
      %v3538 = vld [vmem:[%s3521 + $0x40] sm:$0xf]
      %v3539 = vld [vmem:[%s3521 + $0x44] sm:$0xf]
      %v3540 = vld [vmem:[%s3521 + $0x48] sm:$0xf]
      %v3541 = vld [vmem:[%s3521 + $0x4c] sm:$0xf]
      %v3542 = vld [vmem:[%s3521 + $0x50] sm:$0xf]
      %v3543 = vld [vmem:[%s3521 + $0x54] sm:$0xf]
      %v3544 = vld [vmem:[%s3521 + $0x58] sm:$0xf]
      %v3545 = vld [vmem:[%s3521 + $0x5c] sm:$0xf]
      %v3546 = vld [vmem:[%s3521 + $0x60] sm:$0xf]
      %v3547 = vld [vmem:[%s3521 + $0x64] sm:$0xf]
      %v3548 = vld [vmem:[%s3521 + $0x68] sm:$0xf]
      %v3549 = vld [vmem:[%s3521 + $0x6c] sm:$0xf]
      %v3550 = vld [vmem:[%s3521 + $0x70] sm:$0xf]
      %v3551 = vld [vmem:[%s3521 + $0x74] sm:$0xf]
      %v3552 = vld [vmem:[%s3521 + $0x78] sm:$0xf]
      %v3553 = vld [vmem:[%s3521 + $0x7c] sm:$0xf]
      %v3554 = vld [vmem:[%s19 + $0x1] sm:$0x1]
      %v3555 = vlaneseq
      %v3556 = vshrl.u32 %v3555, 7
      %v3557 = vsub.s32 0, %v3556
      %v3558 = vrot.slane %v3554, %v3557
      %v3591 = vunpack.c.l.b16 %v3522
      %v3592 = vunpack.c.l.b16 %v3523
      %v3593 = vunpack.c.l.b16 %v3524
      %v3594 = vunpack.c.l.b16 %v3525
      %v3595 = vunpack.c.l.b16 %v3526
      %v3596 = vunpack.c.l.b16 %v3527
      %v3597 = vunpack.c.l.b16 %v3528
      %v3598 = vunpack.c.l.b16 %v3529
      %v3599 = vunpack.c.l.b16 %v3530
      %v3600 = vunpack.c.l.b16 %v3531
      %v3601 = vunpack.c.l.b16 %v3532
      %v3602 = vunpack.c.l.b16 %v3533
      %v3603 = vunpack.c.l.b16 %v3534
      %v3604 = vunpack.c.l.b16 %v3535
      %v3605 = vunpack.c.l.b16 %v3536
      %v3606 = vunpack.c.l.b16 %v3537
      %v3607 = vunpack.c.l.b16 %v3538
      %v3608 = vunpack.c.l.b16 %v3539
      %v3609 = vunpack.c.l.b16 %v3540
      %v3610 = vunpack.c.l.b16 %v3541
      %v3611 = vunpack.c.l.b16 %v3542
      %v3612 = vunpack.c.l.b16 %v3543
      %v3613 = vunpack.c.l.b16 %v3544
      %v3614 = vunpack.c.l.b16 %v3545
      %v3615 = vunpack.c.l.b16 %v3546
      %v3616 = vunpack.c.l.b16 %v3547
      %v3617 = vunpack.c.l.b16 %v3548
      %v3618 = vunpack.c.l.b16 %v3549
      %v3619 = vunpack.c.l.b16 %v3550
      %v3620 = vunpack.c.l.b16 %v3551
      %v3621 = vunpack.c.l.b16 %v3552
      %v3622 = vunpack.c.l.b16 %v3553
      %v3623 = vpack.c.b16 %v3592, %v3591
      %v3624 = vpack.c.b16 %v3594, %v3593
      %v3625 = vpack.c.b16 %v3596, %v3595
      %v3626 = vpack.c.b16 %v3598, %v3597
      %v3627 = vpack.c.b16 %v3600, %v3599
      %v3628 = vpack.c.b16 %v3602, %v3601
      %v3629 = vpack.c.b16 %v3604, %v3603
      %v3630 = vpack.c.b16 %v3606, %v3605
      %v3631 = vpack.c.b16 %v3608, %v3607
      %v3632 = vpack.c.b16 %v3610, %v3609
      %v3633 = vpack.c.b16 %v3612, %v3611
      %v3634 = vpack.c.b16 %v3614, %v3613
      %v3635 = vpack.c.b16 %v3616, %v3615
      %v3636 = vpack.c.b16 %v3618, %v3617
      %v3637 = vpack.c.b16 %v3620, %v3619
      %v3638 = vpack.c.b16 %v3622, %v3621
      %3655 = vmatprep.subr.bf16.mxu0 0
      %3656 = vmatpush1.bf16.msra.mxu0 %v3630
      %3657 = vmatprep.subr.bf16.mxu0 0
      %3658 = vmatpush1.bf16.msra.mxu0 %v3629
      %3659 = vmatprep.subr.bf16.mxu0 0
      %3660 = vmatpush1.bf16.msra.mxu0 %v3628
      %3661 = vmatprep.subr.bf16.mxu0 0
      %3662 = vmatpush1.bf16.msra.mxu0 %v3627
      %3663 = vmatprep.subr.bf16.mxu0 0
      %3664 = vmatpush1.bf16.msra.mxu0 %v3626
      %3665 = vmatprep.subr.bf16.mxu0 0
      %3666 = vmatpush1.bf16.msra.mxu0 %v3625
      %3667 = vmatprep.subr.bf16.mxu0 0
      %3668 = vmatpush1.bf16.msra.mxu0 %v3624
      %3669 = vmatprep.subr.bf16.mxu0 0
      %3670 = vmatpush1.bf16.msra.mxu0 %v3623
      %3671 = vmatprep.subr.bf16.mxu0 0
      %3672 = vmatpush2.bf16.msra.mxu0 %v3638
      %3673 = vmatprep.subr.bf16.mxu0 0
      %3674 = vmatpush2.bf16.msra.mxu0 %v3637
      %3675 = vmatprep.subr.bf16.mxu0 0
      %3676 = vmatpush2.bf16.msra.mxu0 %v3636
      %3677 = vmatprep.subr.bf16.mxu0 0
      %3678 = vmatpush2.bf16.msra.mxu0 %v3635
      %3679 = vmatprep.subr.bf16.mxu0 0
      %3680 = vmatpush2.bf16.msra.mxu0 %v3634
      %3681 = vmatprep.subr.bf16.mxu0 0
      %3682 = vmatpush2.bf16.msra.mxu0 %v3633
      %3683 = vmatprep.subr.bf16.mxu0 0
      %3684 = vmatpush2.bf16.msra.mxu0 %v3632
      %3685 = vmatprep.subr.bf16.mxu0 0
      %3686 = vmatpush2.bf16.msra.mxu0 %v3631
      %3687 = vmatprep.mubr.bf16.mxu0 %v3506
      %3688 = vmatmul.mubr.bf16.gmra.mxu0 %v3505
      %v3689 = vpop.f32.mrf.mxu0
      %v3690 = vadd.f32 %v3558, %v3689
      %v3691 = vpop.f32.mrf.mxu0
      %v3692 = vpop.f32.mrf.mxu0
      %v3693 = vadd.f32 %v3558, %v3692
      %v3694 = vpop.f32.mrf.mxu0
      %3695 = vmatprep.mubr.bf16.mxu0 %v3508
      %3696 = vmatmul.mubr.bf16.gmra.mxu0 %v3507
      %v3697 = vpop.f32.mrf.mxu0
      %v3698 = vadd.f32 %v3558, %v3697
      %v3699 = vpop.f32.mrf.mxu0
      %v3700 = vpop.f32.mrf.mxu0
      %v3701 = vadd.f32 %v3558, %v3700
      %v3702 = vpop.f32.mrf.mxu0
      %3703 = vmatprep.mubr.bf16.mxu0 %v3510
      %3704 = vmatmul.mubr.bf16.gmra.mxu0 %v3509
      %v3705 = vpop.f32.mrf.mxu0
      %v3706 = vadd.f32 %v3558, %v3705
      %v3707 = vpop.f32.mrf.mxu0
      %v3708 = vpop.f32.mrf.mxu0
      %v3709 = vadd.f32 %v3558, %v3708
      %v3710 = vpop.f32.mrf.mxu0
      %3711 = vmatprep.mubr.bf16.mxu0 %v3512
      %3712 = vmatmul.mubr.bf16.gmra.mxu0 %v3511
      %v3713 = vpop.f32.mrf.mxu0
      %v3714 = vadd.f32 %v3558, %v3713
      %v3715 = vpop.f32.mrf.mxu0
      %v3716 = vpop.f32.mrf.mxu0
      %v3717 = vadd.f32 %v3558, %v3716
      %v3718 = vpop.f32.mrf.mxu0
      %3719 = vmatprep.mubr.bf16.mxu0 %v3514
      %3720 = vmatmul.mubr.bf16.gmra.mxu0 %v3513
      %v3721 = vpop.f32.mrf.mxu0
      %v3722 = vadd.f32 %v3558, %v3721
      %v3723 = vpop.f32.mrf.mxu0
      %v3724 = vpop.f32.mrf.mxu0
      %v3725 = vadd.f32 %v3558, %v3724
      %v3726 = vpop.f32.mrf.mxu0
      %3727 = vmatprep.mubr.bf16.mxu0 %v3516
      %3728 = vmatmul.mubr.bf16.gmra.mxu0 %v3515
      %v3729 = vpop.f32.mrf.mxu0
      %v3730 = vadd.f32 %v3558, %v3729
      %v3731 = vpop.f32.mrf.mxu0
      %v3732 = vpop.f32.mrf.mxu0
      %v3733 = vadd.f32 %v3558, %v3732
      %v3734 = vpop.f32.mrf.mxu0
      %3735 = vmatprep.mubr.bf16.mxu0 %v3518
      %3736 = vmatmul.mubr.bf16.gmra.mxu0 %v3517
      %v3737 = vpop.f32.mrf.mxu0
      %v3738 = vadd.f32 %v3558, %v3737
      %v3739 = vpop.f32.mrf.mxu0
      %v3740 = vpop.f32.mrf.mxu0
      %v3741 = vadd.f32 %v3558, %v3740
      %v3742 = vpop.f32.mrf.mxu0
      %3743 = vmatprep.mubr.bf16.mxu0 %v3520
      %3744 = vmatmul.mubr.bf16.gmra.mxu0 %v3519
      %v3745 = vpop.f32.mrf.mxu0
      %v3746 = vadd.f32 %v3558, %v3745
      %v3747 = vpop.f32.mrf.mxu0
      %v3748 = vpop.f32.mrf.mxu0
      %v3749 = vadd.f32 %v3558, %v3748
      %v3750 = vpop.f32.mrf.mxu0
      %3751 = vdwg.mxu0
      %v3752 = vmax.f32 %v3690, 0.0
      %v3753 = vmax.f32 %v3693, 0.0
      %v3754 = vmax.f32 %v3698, 0.0
      %v3755 = vmax.f32 %v3701, 0.0
      %v3756 = vmax.f32 %v3706, 0.0
      %v3757 = vmax.f32 %v3709, 0.0
      %v3758 = vmax.f32 %v3714, 0.0
      %v3759 = vmax.f32 %v3717, 0.0
      %v3760 = vmax.f32 %v3722, 0.0
      %v3761 = vmax.f32 %v3725, 0.0
      %v3762 = vmax.f32 %v3730, 0.0
      %v3763 = vmax.f32 %v3733, 0.0
      %v3764 = vmax.f32 %v3738, 0.0
      %v3765 = vmax.f32 %v3741, 0.0
      %v3766 = vmax.f32 %v3746, 0.0
      %v3767 = vmax.f32 %v3749, 0.0
      %v3768 = vpack.c.bf16 %v3753, %v3752
      %v3769 = vpack.c.bf16 %v3755, %v3754
      %v3770 = vpack.c.bf16 %v3757, %v3756
      %v3771 = vpack.c.bf16 %v3759, %v3758
      %v3772 = vpack.c.bf16 %v3761, %v3760
      %v3773 = vpack.c.bf16 %v3763, %v3762
      %v3774 = vpack.c.bf16 %v3765, %v3764
      %v3775 = vpack.c.bf16 %v3767, %v3766
      %s3776 = scalar_lea.vmem %s20, 64
      %v3777 = vld [vmem:[%s3776] sm:$0xf]
      %v3778 = vld [vmem:[%s3776 + $0x4] sm:$0xf]
      %v3779 = vld [vmem:[%s3776 + $0x8] sm:$0xf]
      %v3780 = vld [vmem:[%s3776 + $0xc] sm:$0xf]
      %v3781 = vld [vmem:[%s3776 + $0x10] sm:$0xf]
      %v3782 = vld [vmem:[%s3776 + $0x14] sm:$0xf]
      %v3783 = vld [vmem:[%s3776 + $0x18] sm:$0xf]
      %v3784 = vld [vmem:[%s3776 + $0x1c] sm:$0xf]
      %v3785 = vld [vmem:[%s3776 + $0x20] sm:$0xf]
      %v3786 = vld [vmem:[%s3776 + $0x24] sm:$0xf]
      %v3787 = vld [vmem:[%s3776 + $0x28] sm:$0xf]
      %v3788 = vld [vmem:[%s3776 + $0x2c] sm:$0xf]
      %v3789 = vld [vmem:[%s3776 + $0x30] sm:$0xf]
      %v3790 = vld [vmem:[%s3776 + $0x34] sm:$0xf]
      %v3791 = vld [vmem:[%s3776 + $0x38] sm:$0xf]
      %v3792 = vld [vmem:[%s3776 + $0x3c] sm:$0xf]
      %v3793 = vld [vmem:[%s21 + $0x1] sm:$0x1]
      %v3794 = vlaneseq
      %v3795 = vshrl.u32 %v3794, 7
      %v3796 = vsub.s32 0, %v3795
      %v3797 = vrot.slane %v3793, %v3796
      %v3814 = vunpack.c.l.b16 %v3777
      %v3815 = vunpack.c.l.b16 %v3778
      %v3816 = vunpack.c.l.b16 %v3779
      %v3817 = vunpack.c.l.b16 %v3780
      %v3818 = vunpack.c.l.b16 %v3781
      %v3819 = vunpack.c.l.b16 %v3782
      %v3820 = vunpack.c.l.b16 %v3783
      %v3821 = vunpack.c.l.b16 %v3784
      %v3822 = vunpack.c.l.b16 %v3785
      %v3823 = vunpack.c.l.b16 %v3786
      %v3824 = vunpack.c.l.b16 %v3787
      %v3825 = vunpack.c.l.b16 %v3788
      %v3826 = vunpack.c.l.b16 %v3789
      %v3827 = vunpack.c.l.b16 %v3790
      %v3828 = vunpack.c.l.b16 %v3791
      %v3829 = vunpack.c.l.b16 %v3792
      %v3830 = vpack.c.b16 %v3815, %v3814
      %v3831 = vpack.c.b16 %v3817, %v3816
      %v3832 = vpack.c.b16 %v3819, %v3818
      %v3833 = vpack.c.b16 %v3821, %v3820
      %v3834 = vpack.c.b16 %v3823, %v3822
      %v3835 = vpack.c.b16 %v3825, %v3824
      %v3836 = vpack.c.b16 %v3827, %v3826
      %v3837 = vpack.c.b16 %v3829, %v3828
      %3846 = vmatprep.subr.bf16.mxu0 0
      %3847 = vmatpush1.bf16.msra.mxu0 %v3837
      %3848 = vmatprep.subr.bf16.mxu0 0
      %3849 = vmatpush1.bf16.msra.mxu0 %v3836
      %3850 = vmatprep.subr.bf16.mxu0 0
      %3851 = vmatpush1.bf16.msra.mxu0 %v3835
      %3852 = vmatprep.subr.bf16.mxu0 0
      %3853 = vmatpush1.bf16.msra.mxu0 %v3834
      %3854 = vmatprep.subr.bf16.mxu0 0
      %3855 = vmatpush1.bf16.msra.mxu0 %v3833
      %3856 = vmatprep.subr.bf16.mxu0 0
      %3857 = vmatpush1.bf16.msra.mxu0 %v3832
      %3858 = vmatprep.subr.bf16.mxu0 0
      %3859 = vmatpush1.bf16.msra.mxu0 %v3831
      %3860 = vmatprep.subr.bf16.mxu0 0
      %3861 = vmatpush1.bf16.msra.mxu0 %v3830
      %3862 = vmatprep.subr.bf16.mxu0 0
      %3863 = vmatpush2.bf16.msra.mxu0 0
      %3864 = vmatprep.subr.bf16.mxu0 0
      %3865 = vmatpush2.bf16.msra.mxu0 0
      %3866 = vmatprep.subr.bf16.mxu0 0
      %3867 = vmatpush2.bf16.msra.mxu0 0
      %3868 = vmatprep.subr.bf16.mxu0 0
      %3869 = vmatpush2.bf16.msra.mxu0 0
      %3870 = vmatprep.subr.bf16.mxu0 0
      %3871 = vmatpush2.bf16.msra.mxu0 0
      %3872 = vmatprep.subr.bf16.mxu0 0
      %3873 = vmatpush2.bf16.msra.mxu0 0
      %3874 = vmatprep.subr.bf16.mxu0 0
      %3875 = vmatpush2.bf16.msra.mxu0 0
      %3876 = vmatprep.subr.bf16.mxu0 0
      %3877 = vmatpush2.bf16.msra.mxu0 0
      %3878 = vmatprep.mubr.bf16.mxu0 0
      %3879 = vmatmul.mubr.bf16.gmra.mxu0 %v3768
      %v3880 = vpop.f32.mrf.mxu0
      %v3881 = vadd.f32 %v3797, %v3880
      %v3882 = vpop.f32.mrf.mxu0
      %v3883 = vpop.f32.mrf.mxu0
      %v3884 = vadd.f32 %v3797, %v3883
      %v3885 = vpop.f32.mrf.mxu0
      %3886 = vmatprep.mubr.bf16.mxu0 0
      %3887 = vmatmul.mubr.bf16.gmra.mxu0 %v3769
      %v3888 = vpop.f32.mrf.mxu0
      %v3889 = vadd.f32 %v3797, %v3888
      %v3890 = vpop.f32.mrf.mxu0
      %v3891 = vpop.f32.mrf.mxu0
      %v3892 = vadd.f32 %v3797, %v3891
      %v3893 = vpop.f32.mrf.mxu0
      %3894 = vmatprep.mubr.bf16.mxu0 0
      %3895 = vmatmul.mubr.bf16.gmra.mxu0 %v3770
      %v3896 = vpop.f32.mrf.mxu0
      %v3897 = vadd.f32 %v3797, %v3896
      %v3898 = vpop.f32.mrf.mxu0
      %v3899 = vpop.f32.mrf.mxu0
      %v3900 = vadd.f32 %v3797, %v3899
      %v3901 = vpop.f32.mrf.mxu0
      %3902 = vmatprep.mubr.bf16.mxu0 0
      %3903 = vmatmul.mubr.bf16.gmra.mxu0 %v3771
      %v3904 = vpop.f32.mrf.mxu0
      %v3905 = vadd.f32 %v3797, %v3904
      %v3906 = vpop.f32.mrf.mxu0
      %v3907 = vpop.f32.mrf.mxu0
      %v3908 = vadd.f32 %v3797, %v3907
      %v3909 = vpop.f32.mrf.mxu0
      %3910 = vmatprep.mubr.bf16.mxu0 0
      %3911 = vmatmul.mubr.bf16.gmra.mxu0 %v3772
      %v3912 = vpop.f32.mrf.mxu0
      %v3913 = vadd.f32 %v3797, %v3912
      %v3914 = vpop.f32.mrf.mxu0
      %v3915 = vpop.f32.mrf.mxu0
      %v3916 = vadd.f32 %v3797, %v3915
      %v3917 = vpop.f32.mrf.mxu0
      %3918 = vmatprep.mubr.bf16.mxu0 0
      %3919 = vmatmul.mubr.bf16.gmra.mxu0 %v3773
      %v3920 = vpop.f32.mrf.mxu0
      %v3921 = vadd.f32 %v3797, %v3920
      %v3922 = vpop.f32.mrf.mxu0
      %v3923 = vpop.f32.mrf.mxu0
      %v3924 = vadd.f32 %v3797, %v3923
      %v3925 = vpop.f32.mrf.mxu0
      %3926 = vmatprep.mubr.bf16.mxu0 0
      %3927 = vmatmul.mubr.bf16.gmra.mxu0 %v3774
      %v3928 = vpop.f32.mrf.mxu0
      %v3929 = vadd.f32 %v3797, %v3928
      %v3930 = vpop.f32.mrf.mxu0
      %v3931 = vpop.f32.mrf.mxu0
      %v3932 = vadd.f32 %v3797, %v3931
      %v3933 = vpop.f32.mrf.mxu0
      %3934 = vmatprep.mubr.bf16.mxu0 0
      %3935 = vmatmul.mubr.bf16.gmra.mxu0 %v3775
      %v3936 = vpop.f32.mrf.mxu0
      %v3937 = vadd.f32 %v3797, %v3936
      %v3938 = vpop.f32.mrf.mxu0
      %v3939 = vpop.f32.mrf.mxu0
      %v3940 = vadd.f32 %v3797, %v3939
      %v3941 = vpop.f32.mrf.mxu0
      %3942 = vdwg.mxu0
      %v3943 = vmax.f32 %v3881, 0.0
      %v3944 = vmax.f32 %v3884, 0.0
      %v3945 = vmax.f32 %v3889, 0.0
      %v3946 = vmax.f32 %v3892, 0.0
      %v3947 = vmax.f32 %v3897, 0.0
      %v3948 = vmax.f32 %v3900, 0.0
      %v3949 = vmax.f32 %v3905, 0.0
      %v3950 = vmax.f32 %v3908, 0.0
      %v3951 = vmax.f32 %v3913, 0.0
      %v3952 = vmax.f32 %v3916, 0.0
      %v3953 = vmax.f32 %v3921, 0.0
      %v3954 = vmax.f32 %v3924, 0.0
      %v3955 = vmax.f32 %v3929, 0.0
      %v3956 = vmax.f32 %v3932, 0.0
      %v3957 = vmax.f32 %v3937, 0.0
      %v3958 = vmax.f32 %v3940, 0.0
      %v3959 = vmax.f32 %v3943, %v3947
      %v3960 = vmax.f32 %v3944, %v3948
      %v3961 = vmax.f32 %v3945, %v3949
      %v3962 = vmax.f32 %v3946, %v3950
      %v3963 = vmax.f32 %v3959, %v3951
      %v3964 = vmax.f32 %v3960, %v3952
      %v3965 = vmax.f32 %v3961, %v3953
      %v3966 = vmax.f32 %v3962, %v3954
      %v3967 = vmax.f32 %v3963, %v3955
      %v3968 = vmax.f32 %v3964, %v3956
      %v3969 = vmax.f32 %v3965, %v3957
      %v3970 = vmax.f32 %v3966, %v3958
      %v3971 = vmax.f32 %v3967, %v3968
      %v3972 = vmax.f32 %v3969, %v3970
      %v3973 = vmax.f32 %v3971, %v3972
      %v3974 = vrot.slane %v3973, 4
      %v3975 = vmax.f32 %v3973, %v3974
      %v3976 = vrot.slane %v3975, 2
      %v3977 = vmax.f32 %v3975, %v3976
      %v3978 = vrot.slane %v3977, 1
      %v3979 = vmax.f32 %v3977, %v3978
      %s3980 = scalar_lea.vmem %s14, 256
      %v3981 = vld [vmem:[%s3980] sm:$0xff]
      %v3982 = vld [vmem:[%s3980 + $0x8] sm:$0xff]
      %v3983 = vld [vmem:[%s3980 + $0x10] sm:$0xff]
      %v3984 = vld [vmem:[%s3980 + $0x18] sm:$0xff]
      %v3985 = vld [vmem:[%s3980 + $0x20] sm:$0xff]
      %v3986 = vld [vmem:[%s3980 + $0x28] sm:$0xff]
      %v3987 = vld [vmem:[%s3980 + $0x30] sm:$0xff]
      %v3988 = vld [vmem:[%s3980 + $0x38] sm:$0xff]
      %v3989 = vld [vmem:[%s3980 + $0x40] sm:$0xff]
      %v3990 = vld [vmem:[%s3980 + $0x48] sm:$0xff]
      %v3991 = vld [vmem:[%s3980 + $0x50] sm:$0xff]
      %v3992 = vld [vmem:[%s3980 + $0x58] sm:$0xff]
      %v3993 = vld [vmem:[%s3980 + $0x60] sm:$0xff]
      %v3994 = vld [vmem:[%s3980 + $0x68] sm:$0xff]
      %v3995 = vld [vmem:[%s3980 + $0x70] sm:$0xff]
      %v3996 = vld [vmem:[%s3980 + $0x78] sm:$0xff]
      %s3997 = scalar_lea.vmem %s15, 16
      %v3998 = vld [vmem:[%s3997] sm:$0x77]
      %v4000 = vunpack.c.l.b16 %v3998
      %v4001 = vunpack.c.h.b16 %v3998
      %v4002 = vpack.c.b16 %v4000, %v4000
      %v4003 = vpack.c.b16 %v4001, %v4001
      %v4005 = vsel %vm2230, %v4002, 0
      %v4008 = vsel %vm2230, %v4003, 0
      %4010 = vmatprep.subr.bf16.mxu0 0
      %4011 = vmatpush1.bf16.msra.mxu0 0
      %4012 = vmatprep.subr.bf16.mxu0 0
      %4013 = vmatpush1.bf16.msra.mxu0 0
      %4014 = vmatprep.subr.bf16.mxu0 0
      %4015 = vmatpush1.bf16.msra.mxu0 0
      %4016 = vmatprep.subr.bf16.mxu0 0
      %4017 = vmatpush1.bf16.msra.mxu0 0
      %4018 = vmatprep.subr.bf16.mxu0 0
      %4019 = vmatpush1.bf16.msra.mxu0 0
      %4020 = vmatprep.subr.bf16.mxu0 0
      %4021 = vmatpush1.bf16.msra.mxu0 0
      %4022 = vmatprep.subr.bf16.mxu0 0
      %4023 = vmatpush1.bf16.msra.mxu0 0
      %4024 = vmatprep.subr.bf16.mxu0 %v4008
      %4025 = vmatpush1.bf16.msra.mxu0 %v4005
      %4026 = vmatprep.subr.bf16.mxu0 0
      %4027 = vmatpush2.bf16.msra.mxu0 0
      %4028 = vmatprep.subr.bf16.mxu0 0
      %4029 = vmatpush2.bf16.msra.mxu0 0
      %4030 = vmatprep.subr.bf16.mxu0 0
      %4031 = vmatpush2.bf16.msra.mxu0 0
      %4032 = vmatprep.subr.bf16.mxu0 0
      %4033 = vmatpush2.bf16.msra.mxu0 0
      %4034 = vmatprep.subr.bf16.mxu0 0
      %4035 = vmatpush2.bf16.msra.mxu0 0
      %4036 = vmatprep.subr.bf16.mxu0 0
      %4037 = vmatpush2.bf16.msra.mxu0 0
      %4038 = vmatprep.subr.bf16.mxu0 0
      %4039 = vmatpush2.bf16.msra.mxu0 0
      %4040 = vmatprep.subr.bf16.mxu0 0
      %4041 = vmatpush2.bf16.msra.mxu0 0
      %4042 = vmatprep.mubr.bf16.mxu0 0
      %4043 = vmatmul.mubr.bf16.gmra.mxu0 %v2207
      %v4044 = vpop.f32.mrf.mxu0
      %v4045 = vadd.f32 0.0, %v4044
      %v4046 = vpop.f32.mrf.mxu0
      %v4047 = vadd.f32 0.0, %v4046
      %v4048 = vpop.f32.mrf.mxu0
      %v4049 = vadd.f32 0.0, %v4048
      %v4050 = vpop.f32.mrf.mxu0
      %v4051 = vadd.f32 0.0, %v4050
      %4052 = vmatprep.mubr.bf16.mxu0 0
      %4053 = vmatmul.mubr.bf16.gmra.mxu0 %v2210
      %v4054 = vpop.f32.mrf.mxu0
      %v4055 = vadd.f32 0.0, %v4054
      %v4056 = vpop.f32.mrf.mxu0
      %v4057 = vadd.f32 0.0, %v4056
      %v4058 = vpop.f32.mrf.mxu0
      %v4059 = vadd.f32 0.0, %v4058
      %v4060 = vpop.f32.mrf.mxu0
      %v4061 = vadd.f32 0.0, %v4060
      %4062 = vmatprep.mubr.bf16.mxu0 0
      %4063 = vmatmul.mubr.bf16.gmra.mxu0 %v2213
      %v4064 = vpop.f32.mrf.mxu0
      %v4065 = vadd.f32 0.0, %v4064
      %v4066 = vpop.f32.mrf.mxu0
      %v4067 = vadd.f32 0.0, %v4066
      %v4068 = vpop.f32.mrf.mxu0
      %v4069 = vadd.f32 0.0, %v4068
      %v4070 = vpop.f32.mrf.mxu0
      %v4071 = vadd.f32 0.0, %v4070
      %4072 = vmatprep.mubr.bf16.mxu0 0
      %4073 = vmatmul.mubr.bf16.gmra.mxu0 %v2216
      %v4074 = vpop.f32.mrf.mxu0
      %v4075 = vadd.f32 0.0, %v4074
      %v4076 = vpop.f32.mrf.mxu0
      %v4077 = vadd.f32 0.0, %v4076
      %v4078 = vpop.f32.mrf.mxu0
      %v4079 = vadd.f32 0.0, %v4078
      %v4080 = vpop.f32.mrf.mxu0
      %v4081 = vadd.f32 0.0, %v4080
      %4082 = vmatprep.mubr.bf16.mxu0 0
      %4083 = vmatmul.mubr.bf16.gmra.mxu0 %v2219
      %v4084 = vpop.f32.mrf.mxu0
      %v4085 = vadd.f32 0.0, %v4084
      %v4086 = vpop.f32.mrf.mxu0
      %v4087 = vadd.f32 0.0, %v4086
      %v4088 = vpop.f32.mrf.mxu0
      %v4089 = vadd.f32 0.0, %v4088
      %v4090 = vpop.f32.mrf.mxu0
      %v4091 = vadd.f32 0.0, %v4090
      %4092 = vmatprep.mubr.bf16.mxu0 0
      %4093 = vmatmul.mubr.bf16.gmra.mxu0 %v2222
      %v4094 = vpop.f32.mrf.mxu0
      %v4095 = vadd.f32 0.0, %v4094
      %v4096 = vpop.f32.mrf.mxu0
      %v4097 = vadd.f32 0.0, %v4096
      %v4098 = vpop.f32.mrf.mxu0
      %v4099 = vadd.f32 0.0, %v4098
      %v4100 = vpop.f32.mrf.mxu0
      %v4101 = vadd.f32 0.0, %v4100
      %4102 = vmatprep.mubr.bf16.mxu0 0
      %4103 = vmatmul.mubr.bf16.gmra.mxu0 %v2225
      %v4104 = vpop.f32.mrf.mxu0
      %v4105 = vadd.f32 0.0, %v4104
      %v4106 = vpop.f32.mrf.mxu0
      %v4107 = vadd.f32 0.0, %v4106
      %v4108 = vpop.f32.mrf.mxu0
      %v4109 = vadd.f32 0.0, %v4108
      %v4110 = vpop.f32.mrf.mxu0
      %v4111 = vadd.f32 0.0, %v4110
      %4112 = vmatprep.mubr.bf16.mxu0 0
      %4113 = vmatmul.mubr.bf16.gmra.mxu0 %v2228
      %v4114 = vpop.f32.mrf.mxu0
      %v4115 = vadd.f32 0.0, %v4114
      %v4116 = vpop.f32.mrf.mxu0
      %v4117 = vadd.f32 0.0, %v4116
      %v4118 = vpop.f32.mrf.mxu0
      %v4119 = vadd.f32 0.0, %v4118
      %v4120 = vpop.f32.mrf.mxu0
      %v4121 = vadd.f32 0.0, %v4120
      %4122 = vdwg.mxu0
      %v4139 = vunpack.c.l.b16 %v3981
      %v4140 = vunpack.c.h.b16 %v3981
      %v4141 = vunpack.c.l.b16 %v3982
      %v4142 = vunpack.c.h.b16 %v3982
      %v4143 = vunpack.c.l.b16 %v3983
      %v4144 = vunpack.c.h.b16 %v3983
      %v4145 = vunpack.c.l.b16 %v3984
      %v4146 = vunpack.c.h.b16 %v3984
      %v4147 = vunpack.c.l.b16 %v3985
      %v4148 = vunpack.c.h.b16 %v3985
      %v4149 = vunpack.c.l.b16 %v3986
      %v4150 = vunpack.c.h.b16 %v3986
      %v4151 = vunpack.c.l.b16 %v3987
      %v4152 = vunpack.c.h.b16 %v3987
      %v4153 = vunpack.c.l.b16 %v3988
      %v4154 = vunpack.c.h.b16 %v3988
      %v4155 = vunpack.c.l.b16 %v3989
      %v4156 = vunpack.c.h.b16 %v3989
      %v4157 = vunpack.c.l.b16 %v3990
      %v4158 = vunpack.c.h.b16 %v3990
      %v4159 = vunpack.c.l.b16 %v3991
      %v4160 = vunpack.c.h.b16 %v3991
      %v4161 = vunpack.c.l.b16 %v3992
      %v4162 = vunpack.c.h.b16 %v3992
      %v4163 = vunpack.c.l.b16 %v3993
      %v4164 = vunpack.c.h.b16 %v3993
      %v4165 = vunpack.c.l.b16 %v3994
      %v4166 = vunpack.c.h.b16 %v3994
      %v4167 = vunpack.c.l.b16 %v3995
      %v4168 = vunpack.c.h.b16 %v3995
      %v4169 = vunpack.c.l.b16 %v3996
      %v4170 = vunpack.c.h.b16 %v3996
      %v4171 = vpack.c.b16 %v4141, %v4139
      %v4172 = vpack.c.b16 %v4142, %v4140
      %v4173 = vpack.c.b16 %v4145, %v4143
      %v4174 = vpack.c.b16 %v4146, %v4144
      %v4175 = vpack.c.b16 %v4149, %v4147
      %v4176 = vpack.c.b16 %v4150, %v4148
      %v4177 = vpack.c.b16 %v4153, %v4151
      %v4178 = vpack.c.b16 %v4154, %v4152
      %v4179 = vpack.c.b16 %v4157, %v4155
      %v4180 = vpack.c.b16 %v4158, %v4156
      %v4181 = vpack.c.b16 %v4161, %v4159
      %v4182 = vpack.c.b16 %v4162, %v4160
      %v4183 = vpack.c.b16 %v4165, %v4163
      %v4184 = vpack.c.b16 %v4166, %v4164
      %v4185 = vpack.c.b16 %v4169, %v4167
      %v4186 = vpack.c.b16 %v4170, %v4168
      %4203 = vmatprep.subr.bf16.mxu0 %v4186
      %4204 = vmatpush1.bf16.msra.mxu0 %v4185
      %4205 = vmatprep.subr.bf16.mxu0 %v4184
      %4206 = vmatpush1.bf16.msra.mxu0 %v4183
      %4207 = vmatprep.subr.bf16.mxu0 %v4182
      %4208 = vmatpush1.bf16.msra.mxu0 %v4181
      %4209 = vmatprep.subr.bf16.mxu0 %v4180
      %4210 = vmatpush1.bf16.msra.mxu0 %v4179
      %4211 = vmatprep.subr.bf16.mxu0 %v4178
      %4212 = vmatpush1.bf16.msra.mxu0 %v4177
      %4213 = vmatprep.subr.bf16.mxu0 %v4176
      %4214 = vmatpush1.bf16.msra.mxu0 %v4175
      %4215 = vmatprep.subr.bf16.mxu0 %v4174
      %4216 = vmatpush1.bf16.msra.mxu0 %v4173
      %4217 = vmatprep.subr.bf16.mxu0 %v4172
      %4218 = vmatpush1.bf16.msra.mxu0 %v4171
      %4219 = vmatprep.subr.bf16.mxu0 0
      %4220 = vmatpush2.bf16.msra.mxu0 0
      %4221 = vmatprep.subr.bf16.mxu0 0
      %4222 = vmatpush2.bf16.msra.mxu0 0
      %4223 = vmatprep.subr.bf16.mxu0 0
      %4224 = vmatpush2.bf16.msra.mxu0 0
      %4225 = vmatprep.subr.bf16.mxu0 0
      %4226 = vmatpush2.bf16.msra.mxu0 0
      %4227 = vmatprep.subr.bf16.mxu0 0
      %4228 = vmatpush2.bf16.msra.mxu0 0
      %4229 = vmatprep.subr.bf16.mxu0 0
      %4230 = vmatpush2.bf16.msra.mxu0 0
      %4231 = vmatprep.subr.bf16.mxu0 0
      %4232 = vmatpush2.bf16.msra.mxu0 0
      %4233 = vmatprep.subr.bf16.mxu0 0
      %4234 = vmatpush2.bf16.msra.mxu0 0
      %4235 = vmatprep.mubr.bf16.mxu0 0
      %4236 = vmatmul.mubr.bf16.gmra.mxu0 %v1735
      %v4237 = vpop.f32.mrf.mxu0
      %v4238 = vadd.f32 %v4045, %v4237
      %v4239 = vpop.f32.mrf.mxu0
      %v4240 = vadd.f32 %v4047, %v4239
      %v4241 = vpop.f32.mrf.mxu0
      %v4242 = vadd.f32 %v4049, %v4241
      %v4243 = vpop.f32.mrf.mxu0
      %v4244 = vadd.f32 %v4051, %v4243
      %4245 = vmatprep.mubr.bf16.mxu0 0
      %4246 = vmatmul.mubr.bf16.gmra.mxu0 %v1736
      %v4247 = vpop.f32.mrf.mxu0
      %v4248 = vadd.f32 %v4055, %v4247
      %v4249 = vpop.f32.mrf.mxu0
      %v4250 = vadd.f32 %v4057, %v4249
      %v4251 = vpop.f32.mrf.mxu0
      %v4252 = vadd.f32 %v4059, %v4251
      %v4253 = vpop.f32.mrf.mxu0
      %v4254 = vadd.f32 %v4061, %v4253
      %4255 = vmatprep.mubr.bf16.mxu0 0
      %4256 = vmatmul.mubr.bf16.gmra.mxu0 %v1737
      %v4257 = vpop.f32.mrf.mxu0
      %v4258 = vadd.f32 %v4065, %v4257
      %v4259 = vpop.f32.mrf.mxu0
      %v4260 = vadd.f32 %v4067, %v4259
      %v4261 = vpop.f32.mrf.mxu0
      %v4262 = vadd.f32 %v4069, %v4261
      %v4263 = vpop.f32.mrf.mxu0
      %v4264 = vadd.f32 %v4071, %v4263
      %4265 = vmatprep.mubr.bf16.mxu0 0
      %4266 = vmatmul.mubr.bf16.gmra.mxu0 %v1738
      %v4267 = vpop.f32.mrf.mxu0
      %v4268 = vadd.f32 %v4075, %v4267
      %v4269 = vpop.f32.mrf.mxu0
      %v4270 = vadd.f32 %v4077, %v4269
      %v4271 = vpop.f32.mrf.mxu0
      %v4272 = vadd.f32 %v4079, %v4271
      %v4273 = vpop.f32.mrf.mxu0
      %v4274 = vadd.f32 %v4081, %v4273
      %4275 = vmatprep.mubr.bf16.mxu0 0
      %4276 = vmatmul.mubr.bf16.gmra.mxu0 %v1739
      %v4277 = vpop.f32.mrf.mxu0
      %v4278 = vadd.f32 %v4085, %v4277
      %v4279 = vpop.f32.mrf.mxu0
      %v4280 = vadd.f32 %v4087, %v4279
      %v4281 = vpop.f32.mrf.mxu0
      %v4282 = vadd.f32 %v4089, %v4281
      %v4283 = vpop.f32.mrf.mxu0
      %v4284 = vadd.f32 %v4091, %v4283
      %4285 = vmatprep.mubr.bf16.mxu0 0
      %4286 = vmatmul.mubr.bf16.gmra.mxu0 %v1740
      %v4287 = vpop.f32.mrf.mxu0
      %v4288 = vadd.f32 %v4095, %v4287
      %v4289 = vpop.f32.mrf.mxu0
      %v4290 = vadd.f32 %v4097, %v4289
      %v4291 = vpop.f32.mrf.mxu0
      %v4292 = vadd.f32 %v4099, %v4291
      %v4293 = vpop.f32.mrf.mxu0
      %v4294 = vadd.f32 %v4101, %v4293
      %4295 = vmatprep.mubr.bf16.mxu0 0
      %4296 = vmatmul.mubr.bf16.gmra.mxu0 %v1741
      %v4297 = vpop.f32.mrf.mxu0
      %v4298 = vadd.f32 %v4105, %v4297
      %v4299 = vpop.f32.mrf.mxu0
      %v4300 = vadd.f32 %v4107, %v4299
      %v4301 = vpop.f32.mrf.mxu0
      %v4302 = vadd.f32 %v4109, %v4301
      %v4303 = vpop.f32.mrf.mxu0
      %v4304 = vadd.f32 %v4111, %v4303
      %4305 = vmatprep.mubr.bf16.mxu0 0
      %4306 = vmatmul.mubr.bf16.gmra.mxu0 %v1742
      %v4307 = vpop.f32.mrf.mxu0
      %v4308 = vadd.f32 %v4115, %v4307
      %v4309 = vpop.f32.mrf.mxu0
      %v4310 = vadd.f32 %v4117, %v4309
      %v4311 = vpop.f32.mrf.mxu0
      %v4312 = vadd.f32 %v4119, %v4311
      %v4313 = vpop.f32.mrf.mxu0
      %v4314 = vadd.f32 %v4121, %v4313
      %4315 = vdwg.mxu0
      %v4316 = vld [vmem:[%s16] sm:$0xf]
      %v4319 = vunpack.c.l.s4 1983009808
      %v4320 = vunpack.c.0.s8 %v4319
      %v4321 = vlaneseq
      %v4322 = vshrl.u32 %v4321, 7
      %v4323 = vsub.s32 %v4320, %v4322
      %v4324 = vrot.slane %v4316, %v4323
      %v4325 = vcombine.high %v4324, %v4324
      %v4327 = vand.u32 %v4324, %v908
      %v4330 = vand.u32 %v4325, %v908
      %4332 = vmatprep.subr.bf16.mxu0 0
      %4333 = vmatpush1.bf16.msra.mxu0 0
      %4334 = vmatprep.subr.bf16.mxu0 0
      %4335 = vmatpush1.bf16.msra.mxu0 0
      %4336 = vmatprep.subr.bf16.mxu0 0
      %4337 = vmatpush1.bf16.msra.mxu0 0
      %4338 = vmatprep.subr.bf16.mxu0 0
      %4339 = vmatpush1.bf16.msra.mxu0 0
      %4340 = vmatprep.subr.bf16.mxu0 0
      %4341 = vmatpush1.bf16.msra.mxu0 0
      %4342 = vmatprep.subr.bf16.mxu0 0
      %4343 = vmatpush1.bf16.msra.mxu0 0
      %4344 = vmatprep.subr.bf16.mxu0 0
      %4345 = vmatpush1.bf16.msra.mxu0 0
      %4346 = vmatprep.subr.bf16.mxu0 %v4330
      %4347 = vmatpush1.bf16.msra.mxu0 %v4327
      %4348 = vmatprep.subr.bf16.mxu0 0
      %4349 = vmatpush2.bf16.msra.mxu0 0
      %4350 = vmatprep.subr.bf16.mxu0 0
      %4351 = vmatpush2.bf16.msra.mxu0 0
      %4352 = vmatprep.subr.bf16.mxu0 0
      %4353 = vmatpush2.bf16.msra.mxu0 0
      %4354 = vmatprep.subr.bf16.mxu0 0
      %4355 = vmatpush2.bf16.msra.mxu0 0
      %4356 = vmatprep.subr.bf16.mxu0 0
      %4357 = vmatpush2.bf16.msra.mxu0 0
      %4358 = vmatprep.subr.bf16.mxu0 0
      %4359 = vmatpush2.bf16.msra.mxu0 0
      %4360 = vmatprep.subr.bf16.mxu0 0
      %4361 = vmatpush2.bf16.msra.mxu0 0
      %4362 = vmatprep.subr.bf16.mxu0 0
      %4363 = vmatpush2.bf16.msra.mxu0 0
      %4364 = vmatprep.mubr.bf16.mxu0 0
      %4365 = vmatmul.mubr.bf16.gmra.mxu0 %v882
      %v4366 = vpop.f32.mrf.mxu0
      %v4367 = vadd.f32 0.0, %v4366
      %v4368 = vpop.f32.mrf.mxu0
      %v4369 = vadd.f32 0.0, %v4368
      %v4370 = vpop.f32.mrf.mxu0
      %v4371 = vadd.f32 0.0, %v4370
      %v4372 = vpop.f32.mrf.mxu0
      %v4373 = vadd.f32 0.0, %v4372
      %4374 = vmatprep.mubr.bf16.mxu0 0
      %4375 = vmatmul.mubr.bf16.gmra.mxu0 %v885
      %v4376 = vpop.f32.mrf.mxu0
      %v4377 = vadd.f32 0.0, %v4376
      %v4378 = vpop.f32.mrf.mxu0
      %v4379 = vadd.f32 0.0, %v4378
      %v4380 = vpop.f32.mrf.mxu0
      %v4381 = vadd.f32 0.0, %v4380
      %v4382 = vpop.f32.mrf.mxu0
      %v4383 = vadd.f32 0.0, %v4382
      %4384 = vmatprep.mubr.bf16.mxu0 0
      %4385 = vmatmul.mubr.bf16.gmra.mxu0 %v888
      %v4386 = vpop.f32.mrf.mxu0
      %v4387 = vadd.f32 0.0, %v4386
      %v4388 = vpop.f32.mrf.mxu0
      %v4389 = vadd.f32 0.0, %v4388
      %v4390 = vpop.f32.mrf.mxu0
      %v4391 = vadd.f32 0.0, %v4390
      %v4392 = vpop.f32.mrf.mxu0
      %v4393 = vadd.f32 0.0, %v4392
      %4394 = vmatprep.mubr.bf16.mxu0 0
      %4395 = vmatmul.mubr.bf16.gmra.mxu0 %v891
      %v4396 = vpop.f32.mrf.mxu0
      %v4397 = vadd.f32 0.0, %v4396
      %v4398 = vpop.f32.mrf.mxu0
      %v4399 = vadd.f32 0.0, %v4398
      %v4400 = vpop.f32.mrf.mxu0
      %v4401 = vadd.f32 0.0, %v4400
      %v4402 = vpop.f32.mrf.mxu0
      %v4403 = vadd.f32 0.0, %v4402
      %4404 = vmatprep.mubr.bf16.mxu0 0
      %4405 = vmatmul.mubr.bf16.gmra.mxu0 %v894
      %v4406 = vpop.f32.mrf.mxu0
      %v4407 = vadd.f32 0.0, %v4406
      %v4408 = vpop.f32.mrf.mxu0
      %v4409 = vadd.f32 0.0, %v4408
      %v4410 = vpop.f32.mrf.mxu0
      %v4411 = vadd.f32 0.0, %v4410
      %v4412 = vpop.f32.mrf.mxu0
      %v4413 = vadd.f32 0.0, %v4412
      %4414 = vmatprep.mubr.bf16.mxu0 0
      %4415 = vmatmul.mubr.bf16.gmra.mxu0 %v897
      %v4416 = vpop.f32.mrf.mxu0
      %v4417 = vadd.f32 0.0, %v4416
      %v4418 = vpop.f32.mrf.mxu0
      %v4419 = vadd.f32 0.0, %v4418
      %v4420 = vpop.f32.mrf.mxu0
      %v4421 = vadd.f32 0.0, %v4420
      %v4422 = vpop.f32.mrf.mxu0
      %v4423 = vadd.f32 0.0, %v4422
      %4424 = vmatprep.mubr.bf16.mxu0 0
      %4425 = vmatmul.mubr.bf16.gmra.mxu0 %v900
      %v4426 = vpop.f32.mrf.mxu0
      %v4427 = vadd.f32 0.0, %v4426
      %v4428 = vpop.f32.mrf.mxu0
      %v4429 = vadd.f32 0.0, %v4428
      %v4430 = vpop.f32.mrf.mxu0
      %v4431 = vadd.f32 0.0, %v4430
      %v4432 = vpop.f32.mrf.mxu0
      %v4433 = vadd.f32 0.0, %v4432
      %4434 = vmatprep.mubr.bf16.mxu0 0
      %4435 = vmatmul.mubr.bf16.gmra.mxu0 %v903
      %v4436 = vpop.f32.mrf.mxu0
      %v4437 = vadd.f32 0.0, %v4436
      %v4438 = vpop.f32.mrf.mxu0
      %v4439 = vadd.f32 0.0, %v4438
      %v4440 = vpop.f32.mrf.mxu0
      %v4441 = vadd.f32 0.0, %v4440
      %v4442 = vpop.f32.mrf.mxu0
      %v4443 = vadd.f32 0.0, %v4442
      %4444 = vdwg.mxu0
      %v4445 = vadd.f32 %v4238, %v4367
      %v4446 = vadd.f32 %v4240, %v4369
      %v4447 = vadd.f32 %v4242, %v4371
      %v4448 = vadd.f32 %v4244, %v4373
      %v4449 = vadd.f32 %v4248, %v4377
      %v4450 = vadd.f32 %v4250, %v4379
      %v4451 = vadd.f32 %v4252, %v4381
      %v4452 = vadd.f32 %v4254, %v4383
      %v4453 = vadd.f32 %v4258, %v4387
      %v4454 = vadd.f32 %v4260, %v4389
      %v4455 = vadd.f32 %v4262, %v4391
      %v4456 = vadd.f32 %v4264, %v4393
      %v4457 = vadd.f32 %v4268, %v4397
      %v4458 = vadd.f32 %v4270, %v4399
      %v4459 = vadd.f32 %v4272, %v4401
      %v4460 = vadd.f32 %v4274, %v4403
      %v4461 = vadd.f32 %v4278, %v4407
      %v4462 = vadd.f32 %v4280, %v4409
      %v4463 = vadd.f32 %v4282, %v4411
      %v4464 = vadd.f32 %v4284, %v4413
      %v4465 = vadd.f32 %v4288, %v4417
      %v4466 = vadd.f32 %v4290, %v4419
      %v4467 = vadd.f32 %v4292, %v4421
      %v4468 = vadd.f32 %v4294, %v4423
      %v4469 = vadd.f32 %v4298, %v4427
      %v4470 = vadd.f32 %v4300, %v4429
      %v4471 = vadd.f32 %v4302, %v4431
      %v4472 = vadd.f32 %v4304, %v4433
      %v4473 = vadd.f32 %v4308, %v4437
      %v4474 = vadd.f32 %v4310, %v4439
      %v4475 = vadd.f32 %v4312, %v4441
      %v4476 = vadd.f32 %v4314, %v4443
      %s4477 = scalar_lea.vmem %s17, 2
      %v4478 = vld [vmem:[%s4477] ss:$4 sm:$0x3]
      %v4480 = vlaneseq
      %v4481 = vshrl.u32 %v4480, 7
      %v4482 = vsub.s32 0, %v4481
      %v4483 = vrot.slane %v4478, %v4482
      %v4484 = vlaneseq
      %v4485 = vshrl.u32 %v4484, 7
      %v4486 = vsub.s32 1, %v4485
      %v4487 = vrot.slane %v4478, %v4486
      %v4490 = vadd.f32 %v4445, %v4483
      %v4491 = vadd.f32 %v4446, %v4487
      %v4492 = vadd.f32 %v4447, %v4483
      %v4493 = vadd.f32 %v4448, %v4487
      %v4494 = vadd.f32 %v4449, %v4483
      %v4495 = vadd.f32 %v4450, %v4487
      %v4496 = vadd.f32 %v4451, %v4483
      %v4497 = vadd.f32 %v4452, %v4487
      %v4498 = vadd.f32 %v4453, %v4483
      %v4499 = vadd.f32 %v4454, %v4487
      %v4500 = vadd.f32 %v4455, %v4483
      %v4501 = vadd.f32 %v4456, %v4487
      %v4502 = vadd.f32 %v4457, %v4483
      %v4503 = vadd.f32 %v4458, %v4487
      %v4504 = vadd.f32 %v4459, %v4483
      %v4505 = vadd.f32 %v4460, %v4487
      %v4506 = vadd.f32 %v4461, %v4483
      %v4507 = vadd.f32 %v4462, %v4487
      %v4508 = vadd.f32 %v4463, %v4483
      %v4509 = vadd.f32 %v4464, %v4487
      %v4510 = vadd.f32 %v4465, %v4483
      %v4511 = vadd.f32 %v4466, %v4487
      %v4512 = vadd.f32 %v4467, %v4483
      %v4513 = vadd.f32 %v4468, %v4487
      %v4514 = vadd.f32 %v4469, %v4483
      %v4515 = vadd.f32 %v4470, %v4487
      %v4516 = vadd.f32 %v4471, %v4483
      %v4517 = vadd.f32 %v4472, %v4487
      %v4518 = vadd.f32 %v4473, %v4483
      %v4519 = vadd.f32 %v4474, %v4487
      %v4520 = vadd.f32 %v4475, %v4483
      %v4521 = vadd.f32 %v4476, %v4487
      %v4522 = vmax.f32 %v4490, 0.0
      %v4523 = vmax.f32 %v4491, 0.0
      %v4524 = vmax.f32 %v4492, 0.0
      %v4525 = vmax.f32 %v4493, 0.0
      %v4526 = vmax.f32 %v4494, 0.0
      %v4527 = vmax.f32 %v4495, 0.0
      %v4528 = vmax.f32 %v4496, 0.0
      %v4529 = vmax.f32 %v4497, 0.0
      %v4530 = vmax.f32 %v4498, 0.0
      %v4531 = vmax.f32 %v4499, 0.0
      %v4532 = vmax.f32 %v4500, 0.0
      %v4533 = vmax.f32 %v4501, 0.0
      %v4534 = vmax.f32 %v4502, 0.0
      %v4535 = vmax.f32 %v4503, 0.0
      %v4536 = vmax.f32 %v4504, 0.0
      %v4537 = vmax.f32 %v4505, 0.0
      %v4538 = vmax.f32 %v4506, 0.0
      %v4539 = vmax.f32 %v4507, 0.0
      %v4540 = vmax.f32 %v4508, 0.0
      %v4541 = vmax.f32 %v4509, 0.0
      %v4542 = vmax.f32 %v4510, 0.0
      %v4543 = vmax.f32 %v4511, 0.0
      %v4544 = vmax.f32 %v4512, 0.0
      %v4545 = vmax.f32 %v4513, 0.0
      %v4546 = vmax.f32 %v4514, 0.0
      %v4547 = vmax.f32 %v4515, 0.0
      %v4548 = vmax.f32 %v4516, 0.0
      %v4549 = vmax.f32 %v4517, 0.0
      %v4550 = vmax.f32 %v4518, 0.0
      %v4551 = vmax.f32 %v4519, 0.0
      %v4552 = vmax.f32 %v4520, 0.0
      %v4553 = vmax.f32 %v4521, 0.0
      %v4554 = vpack.c.bf16 %v4524, %v4522
      %v4555 = vpack.c.bf16 %v4525, %v4523
      %v4556 = vpack.c.bf16 %v4528, %v4526
      %v4557 = vpack.c.bf16 %v4529, %v4527
      %v4558 = vpack.c.bf16 %v4532, %v4530
      %v4559 = vpack.c.bf16 %v4533, %v4531
      %v4560 = vpack.c.bf16 %v4536, %v4534
      %v4561 = vpack.c.bf16 %v4537, %v4535
      %v4562 = vpack.c.bf16 %v4540, %v4538
      %v4563 = vpack.c.bf16 %v4541, %v4539
      %v4564 = vpack.c.bf16 %v4544, %v4542
      %v4565 = vpack.c.bf16 %v4545, %v4543
      %v4566 = vpack.c.bf16 %v4548, %v4546
      %v4567 = vpack.c.bf16 %v4549, %v4547
      %v4568 = vpack.c.bf16 %v4552, %v4550
      %v4569 = vpack.c.bf16 %v4553, %v4551
      %s4570 = scalar_lea.vmem %s18, 256
      %v4571 = vld [vmem:[%s4570] sm:$0xf]
      %v4572 = vld [vmem:[%s4570 + $0x4] sm:$0xf]
      %v4573 = vld [vmem:[%s4570 + $0x8] sm:$0xf]
      %v4574 = vld [vmem:[%s4570 + $0xc] sm:$0xf]
      %v4575 = vld [vmem:[%s4570 + $0x10] sm:$0xf]
      %v4576 = vld [vmem:[%s4570 + $0x14] sm:$0xf]
      %v4577 = vld [vmem:[%s4570 + $0x18] sm:$0xf]
      %v4578 = vld [vmem:[%s4570 + $0x1c] sm:$0xf]
      %v4579 = vld [vmem:[%s4570 + $0x20] sm:$0xf]
      %v4580 = vld [vmem:[%s4570 + $0x24] sm:$0xf]
      %v4581 = vld [vmem:[%s4570 + $0x28] sm:$0xf]
      %v4582 = vld [vmem:[%s4570 + $0x2c] sm:$0xf]
      %v4583 = vld [vmem:[%s4570 + $0x30] sm:$0xf]
      %v4584 = vld [vmem:[%s4570 + $0x34] sm:$0xf]
      %v4585 = vld [vmem:[%s4570 + $0x38] sm:$0xf]
      %v4586 = vld [vmem:[%s4570 + $0x3c] sm:$0xf]
      %v4587 = vld [vmem:[%s4570 + $0x40] sm:$0xf]
      %v4588 = vld [vmem:[%s4570 + $0x44] sm:$0xf]
      %v4589 = vld [vmem:[%s4570 + $0x48] sm:$0xf]
      %v4590 = vld [vmem:[%s4570 + $0x4c] sm:$0xf]
      %v4591 = vld [vmem:[%s4570 + $0x50] sm:$0xf]
      %v4592 = vld [vmem:[%s4570 + $0x54] sm:$0xf]
      %v4593 = vld [vmem:[%s4570 + $0x58] sm:$0xf]
      %v4594 = vld [vmem:[%s4570 + $0x5c] sm:$0xf]
      %v4595 = vld [vmem:[%s4570 + $0x60] sm:$0xf]
      %v4596 = vld [vmem:[%s4570 + $0x64] sm:$0xf]
      %v4597 = vld [vmem:[%s4570 + $0x68] sm:$0xf]
      %v4598 = vld [vmem:[%s4570 + $0x6c] sm:$0xf]
      %v4599 = vld [vmem:[%s4570 + $0x70] sm:$0xf]
      %v4600 = vld [vmem:[%s4570 + $0x74] sm:$0xf]
      %v4601 = vld [vmem:[%s4570 + $0x78] sm:$0xf]
      %v4602 = vld [vmem:[%s4570 + $0x7c] sm:$0xf]
      %v4603 = vld [vmem:[%s19 + $0x2] sm:$0x1]
      %v4604 = vlaneseq
      %v4605 = vshrl.u32 %v4604, 7
      %v4606 = vsub.s32 0, %v4605
      %v4607 = vrot.slane %v4603, %v4606
      %v4640 = vunpack.c.l.b16 %v4571
      %v4641 = vunpack.c.l.b16 %v4572
      %v4642 = vunpack.c.l.b16 %v4573
      %v4643 = vunpack.c.l.b16 %v4574
      %v4644 = vunpack.c.l.b16 %v4575
      %v4645 = vunpack.c.l.b16 %v4576
      %v4646 = vunpack.c.l.b16 %v4577
      %v4647 = vunpack.c.l.b16 %v4578
      %v4648 = vunpack.c.l.b16 %v4579
      %v4649 = vunpack.c.l.b16 %v4580
      %v4650 = vunpack.c.l.b16 %v4581
      %v4651 = vunpack.c.l.b16 %v4582
      %v4652 = vunpack.c.l.b16 %v4583
      %v4653 = vunpack.c.l.b16 %v4584
      %v4654 = vunpack.c.l.b16 %v4585
      %v4655 = vunpack.c.l.b16 %v4586
      %v4656 = vunpack.c.l.b16 %v4587
      %v4657 = vunpack.c.l.b16 %v4588
      %v4658 = vunpack.c.l.b16 %v4589
      %v4659 = vunpack.c.l.b16 %v4590
      %v4660 = vunpack.c.l.b16 %v4591
      %v4661 = vunpack.c.l.b16 %v4592
      %v4662 = vunpack.c.l.b16 %v4593
      %v4663 = vunpack.c.l.b16 %v4594
      %v4664 = vunpack.c.l.b16 %v4595
      %v4665 = vunpack.c.l.b16 %v4596
      %v4666 = vunpack.c.l.b16 %v4597
      %v4667 = vunpack.c.l.b16 %v4598
      %v4668 = vunpack.c.l.b16 %v4599
      %v4669 = vunpack.c.l.b16 %v4600
      %v4670 = vunpack.c.l.b16 %v4601
      %v4671 = vunpack.c.l.b16 %v4602
      %v4672 = vpack.c.b16 %v4641, %v4640
      %v4673 = vpack.c.b16 %v4643, %v4642
      %v4674 = vpack.c.b16 %v4645, %v4644
      %v4675 = vpack.c.b16 %v4647, %v4646
      %v4676 = vpack.c.b16 %v4649, %v4648
      %v4677 = vpack.c.b16 %v4651, %v4650
      %v4678 = vpack.c.b16 %v4653, %v4652
      %v4679 = vpack.c.b16 %v4655, %v4654
      %v4680 = vpack.c.b16 %v4657, %v4656
      %v4681 = vpack.c.b16 %v4659, %v4658
      %v4682 = vpack.c.b16 %v4661, %v4660
      %v4683 = vpack.c.b16 %v4663, %v4662
      %v4684 = vpack.c.b16 %v4665, %v4664
      %v4685 = vpack.c.b16 %v4667, %v4666
      %v4686 = vpack.c.b16 %v4669, %v4668
      %v4687 = vpack.c.b16 %v4671, %v4670
      %4704 = vmatprep.subr.bf16.mxu0 0
      %4705 = vmatpush1.bf16.msra.mxu0 %v4679
      %4706 = vmatprep.subr.bf16.mxu0 0
      %4707 = vmatpush1.bf16.msra.mxu0 %v4678
      %4708 = vmatprep.subr.bf16.mxu0 0
      %4709 = vmatpush1.bf16.msra.mxu0 %v4677
      %4710 = vmatprep.subr.bf16.mxu0 0
      %4711 = vmatpush1.bf16.msra.mxu0 %v4676
      %4712 = vmatprep.subr.bf16.mxu0 0
      %4713 = vmatpush1.bf16.msra.mxu0 %v4675
      %4714 = vmatprep.subr.bf16.mxu0 0
      %4715 = vmatpush1.bf16.msra.mxu0 %v4674
      %4716 = vmatprep.subr.bf16.mxu0 0
      %4717 = vmatpush1.bf16.msra.mxu0 %v4673
      %4718 = vmatprep.subr.bf16.mxu0 0
      %4719 = vmatpush1.bf16.msra.mxu0 %v4672
      %4720 = vmatprep.subr.bf16.mxu0 0
      %4721 = vmatpush2.bf16.msra.mxu0 %v4687
      %4722 = vmatprep.subr.bf16.mxu0 0
      %4723 = vmatpush2.bf16.msra.mxu0 %v4686
      %4724 = vmatprep.subr.bf16.mxu0 0
      %4725 = vmatpush2.bf16.msra.mxu0 %v4685
      %4726 = vmatprep.subr.bf16.mxu0 0
      %4727 = vmatpush2.bf16.msra.mxu0 %v4684
      %4728 = vmatprep.subr.bf16.mxu0 0
      %4729 = vmatpush2.bf16.msra.mxu0 %v4683
      %4730 = vmatprep.subr.bf16.mxu0 0
      %4731 = vmatpush2.bf16.msra.mxu0 %v4682
      %4732 = vmatprep.subr.bf16.mxu0 0
      %4733 = vmatpush2.bf16.msra.mxu0 %v4681
      %4734 = vmatprep.subr.bf16.mxu0 0
      %4735 = vmatpush2.bf16.msra.mxu0 %v4680
      %4736 = vmatprep.mubr.bf16.mxu0 %v4555
      %4737 = vmatmul.mubr.bf16.gmra.mxu0 %v4554
      %v4738 = vpop.f32.mrf.mxu0
      %v4739 = vadd.f32 %v4607, %v4738
      %v4740 = vpop.f32.mrf.mxu0
      %v4741 = vpop.f32.mrf.mxu0
      %v4742 = vadd.f32 %v4607, %v4741
      %v4743 = vpop.f32.mrf.mxu0
      %4744 = vmatprep.mubr.bf16.mxu0 %v4557
      %4745 = vmatmul.mubr.bf16.gmra.mxu0 %v4556
      %v4746 = vpop.f32.mrf.mxu0
      %v4747 = vadd.f32 %v4607, %v4746
      %v4748 = vpop.f32.mrf.mxu0
      %v4749 = vpop.f32.mrf.mxu0
      %v4750 = vadd.f32 %v4607, %v4749
      %v4751 = vpop.f32.mrf.mxu0
      %4752 = vmatprep.mubr.bf16.mxu0 %v4559
      %4753 = vmatmul.mubr.bf16.gmra.mxu0 %v4558
      %v4754 = vpop.f32.mrf.mxu0
      %v4755 = vadd.f32 %v4607, %v4754
      %v4756 = vpop.f32.mrf.mxu0
      %v4757 = vpop.f32.mrf.mxu0
      %v4758 = vadd.f32 %v4607, %v4757
      %v4759 = vpop.f32.mrf.mxu0
      %4760 = vmatprep.mubr.bf16.mxu0 %v4561
      %4761 = vmatmul.mubr.bf16.gmra.mxu0 %v4560
      %v4762 = vpop.f32.mrf.mxu0
      %v4763 = vadd.f32 %v4607, %v4762
      %v4764 = vpop.f32.mrf.mxu0
      %v4765 = vpop.f32.mrf.mxu0
      %v4766 = vadd.f32 %v4607, %v4765
      %v4767 = vpop.f32.mrf.mxu0
      %4768 = vmatprep.mubr.bf16.mxu0 %v4563
      %4769 = vmatmul.mubr.bf16.gmra.mxu0 %v4562
      %v4770 = vpop.f32.mrf.mxu0
      %v4771 = vadd.f32 %v4607, %v4770
      %v4772 = vpop.f32.mrf.mxu0
      %v4773 = vpop.f32.mrf.mxu0
      %v4774 = vadd.f32 %v4607, %v4773
      %v4775 = vpop.f32.mrf.mxu0
      %4776 = vmatprep.mubr.bf16.mxu0 %v4565
      %4777 = vmatmul.mubr.bf16.gmra.mxu0 %v4564
      %v4778 = vpop.f32.mrf.mxu0
      %v4779 = vadd.f32 %v4607, %v4778
      %v4780 = vpop.f32.mrf.mxu0
      %v4781 = vpop.f32.mrf.mxu0
      %v4782 = vadd.f32 %v4607, %v4781
      %v4783 = vpop.f32.mrf.mxu0
      %4784 = vmatprep.mubr.bf16.mxu0 %v4567
      %4785 = vmatmul.mubr.bf16.gmra.mxu0 %v4566
      %v4786 = vpop.f32.mrf.mxu0
      %v4787 = vadd.f32 %v4607, %v4786
      %v4788 = vpop.f32.mrf.mxu0
      %v4789 = vpop.f32.mrf.mxu0
      %v4790 = vadd.f32 %v4607, %v4789
      %v4791 = vpop.f32.mrf.mxu0
      %4792 = vmatprep.mubr.bf16.mxu0 %v4569
      %4793 = vmatmul.mubr.bf16.gmra.mxu0 %v4568
      %v4794 = vpop.f32.mrf.mxu0
      %v4795 = vadd.f32 %v4607, %v4794
      %v4796 = vpop.f32.mrf.mxu0
      %v4797 = vpop.f32.mrf.mxu0
      %v4798 = vadd.f32 %v4607, %v4797
      %v4799 = vpop.f32.mrf.mxu0
      %4800 = vdwg.mxu0
      %v4801 = vmax.f32 %v4739, 0.0
      %v4802 = vmax.f32 %v4742, 0.0
      %v4803 = vmax.f32 %v4747, 0.0
      %v4804 = vmax.f32 %v4750, 0.0
      %v4805 = vmax.f32 %v4755, 0.0
      %v4806 = vmax.f32 %v4758, 0.0
      %v4807 = vmax.f32 %v4763, 0.0
      %v4808 = vmax.f32 %v4766, 0.0
      %v4809 = vmax.f32 %v4771, 0.0
      %v4810 = vmax.f32 %v4774, 0.0
      %v4811 = vmax.f32 %v4779, 0.0
      %v4812 = vmax.f32 %v4782, 0.0
      %v4813 = vmax.f32 %v4787, 0.0
      %v4814 = vmax.f32 %v4790, 0.0
      %v4815 = vmax.f32 %v4795, 0.0
      %v4816 = vmax.f32 %v4798, 0.0
      %v4817 = vpack.c.bf16 %v4802, %v4801
      %v4818 = vpack.c.bf16 %v4804, %v4803
      %v4819 = vpack.c.bf16 %v4806, %v4805
      %v4820 = vpack.c.bf16 %v4808, %v4807
      %v4821 = vpack.c.bf16 %v4810, %v4809
      %v4822 = vpack.c.bf16 %v4812, %v4811
      %v4823 = vpack.c.bf16 %v4814, %v4813
      %v4824 = vpack.c.bf16 %v4816, %v4815
      %s4825 = scalar_lea.vmem %s20, 128
      %v4826 = vld [vmem:[%s4825] sm:$0xf]
      %v4827 = vld [vmem:[%s4825 + $0x4] sm:$0xf]
      %v4828 = vld [vmem:[%s4825 + $0x8] sm:$0xf]
      %v4829 = vld [vmem:[%s4825 + $0xc] sm:$0xf]
      %v4830 = vld [vmem:[%s4825 + $0x10] sm:$0xf]
      %v4831 = vld [vmem:[%s4825 + $0x14] sm:$0xf]
      %v4832 = vld [vmem:[%s4825 + $0x18] sm:$0xf]
      %v4833 = vld [vmem:[%s4825 + $0x1c] sm:$0xf]
      %v4834 = vld [vmem:[%s4825 + $0x20] sm:$0xf]
      %v4835 = vld [vmem:[%s4825 + $0x24] sm:$0xf]
      %v4836 = vld [vmem:[%s4825 + $0x28] sm:$0xf]
      %v4837 = vld [vmem:[%s4825 + $0x2c] sm:$0xf]
      %v4838 = vld [vmem:[%s4825 + $0x30] sm:$0xf]
      %v4839 = vld [vmem:[%s4825 + $0x34] sm:$0xf]
      %v4840 = vld [vmem:[%s4825 + $0x38] sm:$0xf]
      %v4841 = vld [vmem:[%s4825 + $0x3c] sm:$0xf]
      %v4842 = vld [vmem:[%s21 + $0x2] sm:$0x1]
      %v4843 = vlaneseq
      %v4844 = vshrl.u32 %v4843, 7
      %v4845 = vsub.s32 0, %v4844
      %v4846 = vrot.slane %v4842, %v4845
      %v4863 = vunpack.c.l.b16 %v4826
      %v4864 = vunpack.c.l.b16 %v4827
      %v4865 = vunpack.c.l.b16 %v4828
      %v4866 = vunpack.c.l.b16 %v4829
      %v4867 = vunpack.c.l.b16 %v4830
      %v4868 = vunpack.c.l.b16 %v4831
      %v4869 = vunpack.c.l.b16 %v4832
      %v4870 = vunpack.c.l.b16 %v4833
      %v4871 = vunpack.c.l.b16 %v4834
      %v4872 = vunpack.c.l.b16 %v4835
      %v4873 = vunpack.c.l.b16 %v4836
      %v4874 = vunpack.c.l.b16 %v4837
      %v4875 = vunpack.c.l.b16 %v4838
      %v4876 = vunpack.c.l.b16 %v4839
      %v4877 = vunpack.c.l.b16 %v4840
      %v4878 = vunpack.c.l.b16 %v4841
      %v4879 = vpack.c.b16 %v4864, %v4863
      %v4880 = vpack.c.b16 %v4866, %v4865
      %v4881 = vpack.c.b16 %v4868, %v4867
      %v4882 = vpack.c.b16 %v4870, %v4869
      %v4883 = vpack.c.b16 %v4872, %v4871
      %v4884 = vpack.c.b16 %v4874, %v4873
      %v4885 = vpack.c.b16 %v4876, %v4875
      %v4886 = vpack.c.b16 %v4878, %v4877
      %4895 = vmatprep.subr.bf16.mxu0 0
      %4896 = vmatpush1.bf16.msra.mxu0 %v4886
      %4897 = vmatprep.subr.bf16.mxu0 0
      %4898 = vmatpush1.bf16.msra.mxu0 %v4885
      %4899 = vmatprep.subr.bf16.mxu0 0
      %4900 = vmatpush1.bf16.msra.mxu0 %v4884
      %4901 = vmatprep.subr.bf16.mxu0 0
      %4902 = vmatpush1.bf16.msra.mxu0 %v4883
      %4903 = vmatprep.subr.bf16.mxu0 0
      %4904 = vmatpush1.bf16.msra.mxu0 %v4882
      %4905 = vmatprep.subr.bf16.mxu0 0
      %4906 = vmatpush1.bf16.msra.mxu0 %v4881
      %4907 = vmatprep.subr.bf16.mxu0 0
      %4908 = vmatpush1.bf16.msra.mxu0 %v4880
      %4909 = vmatprep.subr.bf16.mxu0 0
      %4910 = vmatpush1.bf16.msra.mxu0 %v4879
      %4911 = vmatprep.subr.bf16.mxu0 0
      %4912 = vmatpush2.bf16.msra.mxu0 0
      %4913 = vmatprep.subr.bf16.mxu0 0
      %4914 = vmatpush2.bf16.msra.mxu0 0
      %4915 = vmatprep.subr.bf16.mxu0 0
      %4916 = vmatpush2.bf16.msra.mxu0 0
      %4917 = vmatprep.subr.bf16.mxu0 0
      %4918 = vmatpush2.bf16.msra.mxu0 0
      %4919 = vmatprep.subr.bf16.mxu0 0
      %4920 = vmatpush2.bf16.msra.mxu0 0
      %4921 = vmatprep.subr.bf16.mxu0 0
      %4922 = vmatpush2.bf16.msra.mxu0 0
      %4923 = vmatprep.subr.bf16.mxu0 0
      %4924 = vmatpush2.bf16.msra.mxu0 0
      %4925 = vmatprep.subr.bf16.mxu0 0
      %4926 = vmatpush2.bf16.msra.mxu0 0
      %4927 = vmatprep.mubr.bf16.mxu0 0
      %4928 = vmatmul.mubr.bf16.gmra.mxu0 %v4817
      %v4929 = vpop.f32.mrf.mxu0
      %v4930 = vadd.f32 %v4846, %v4929
      %v4931 = vpop.f32.mrf.mxu0
      %v4932 = vpop.f32.mrf.mxu0
      %v4933 = vadd.f32 %v4846, %v4932
      %v4934 = vpop.f32.mrf.mxu0
      %4935 = vmatprep.mubr.bf16.mxu0 0
      %4936 = vmatmul.mubr.bf16.gmra.mxu0 %v4818
      %v4937 = vpop.f32.mrf.mxu0
      %v4938 = vadd.f32 %v4846, %v4937
      %v4939 = vpop.f32.mrf.mxu0
      %v4940 = vpop.f32.mrf.mxu0
      %v4941 = vadd.f32 %v4846, %v4940
      %v4942 = vpop.f32.mrf.mxu0
      %4943 = vmatprep.mubr.bf16.mxu0 0
      %4944 = vmatmul.mubr.bf16.gmra.mxu0 %v4819
      %v4945 = vpop.f32.mrf.mxu0
      %v4946 = vadd.f32 %v4846, %v4945
      %v4947 = vpop.f32.mrf.mxu0
      %v4948 = vpop.f32.mrf.mxu0
      %v4949 = vadd.f32 %v4846, %v4948
      %v4950 = vpop.f32.mrf.mxu0
      %4951 = vmatprep.mubr.bf16.mxu0 0
      %4952 = vmatmul.mubr.bf16.gmra.mxu0 %v4820
      %v4953 = vpop.f32.mrf.mxu0
      %v4954 = vadd.f32 %v4846, %v4953
      %v4955 = vpop.f32.mrf.mxu0
      %v4956 = vpop.f32.mrf.mxu0
      %v4957 = vadd.f32 %v4846, %v4956
      %v4958 = vpop.f32.mrf.mxu0
      %4959 = vmatprep.mubr.bf16.mxu0 0
      %4960 = vmatmul.mubr.bf16.gmra.mxu0 %v4821
      %v4961 = vpop.f32.mrf.mxu0
      %v4962 = vadd.f32 %v4846, %v4961
      %v4963 = vpop.f32.mrf.mxu0
      %v4964 = vpop.f32.mrf.mxu0
      %v4965 = vadd.f32 %v4846, %v4964
      %v4966 = vpop.f32.mrf.mxu0
      %4967 = vmatprep.mubr.bf16.mxu0 0
      %4968 = vmatmul.mubr.bf16.gmra.mxu0 %v4822
      %v4969 = vpop.f32.mrf.mxu0
      %v4970 = vadd.f32 %v4846, %v4969
      %v4971 = vpop.f32.mrf.mxu0
      %v4972 = vpop.f32.mrf.mxu0
      %v4973 = vadd.f32 %v4846, %v4972
      %v4974 = vpop.f32.mrf.mxu0
      %4975 = vmatprep.mubr.bf16.mxu0 0
      %4976 = vmatmul.mubr.bf16.gmra.mxu0 %v4823
      %v4977 = vpop.f32.mrf.mxu0
      %v4978 = vadd.f32 %v4846, %v4977
      %v4979 = vpop.f32.mrf.mxu0
      %v4980 = vpop.f32.mrf.mxu0
      %v4981 = vadd.f32 %v4846, %v4980
      %v4982 = vpop.f32.mrf.mxu0
      %4983 = vmatprep.mubr.bf16.mxu0 0
      %4984 = vmatmul.mubr.bf16.gmra.mxu0 %v4824
      %v4985 = vpop.f32.mrf.mxu0
      %v4986 = vadd.f32 %v4846, %v4985
      %v4987 = vpop.f32.mrf.mxu0
      %v4988 = vpop.f32.mrf.mxu0
      %v4989 = vadd.f32 %v4846, %v4988
      %v4990 = vpop.f32.mrf.mxu0
      %4991 = vdwg.mxu0
      %v4992 = vmax.f32 %v4930, 0.0
      %v4993 = vmax.f32 %v4933, 0.0
      %v4994 = vmax.f32 %v4938, 0.0
      %v4995 = vmax.f32 %v4941, 0.0
      %v4996 = vmax.f32 %v4946, 0.0
      %v4997 = vmax.f32 %v4949, 0.0
      %v4998 = vmax.f32 %v4954, 0.0
      %v4999 = vmax.f32 %v4957, 0.0
      %v5000 = vmax.f32 %v4962, 0.0
      %v5001 = vmax.f32 %v4965, 0.0
      %v5002 = vmax.f32 %v4970, 0.0
      %v5003 = vmax.f32 %v4973, 0.0
      %v5004 = vmax.f32 %v4978, 0.0
      %v5005 = vmax.f32 %v4981, 0.0
      %v5006 = vmax.f32 %v4986, 0.0
      %v5007 = vmax.f32 %v4989, 0.0
      %v5008 = vmax.f32 %v4992, %v4996
      %v5009 = vmax.f32 %v4993, %v4997
      %v5010 = vmax.f32 %v4994, %v4998
      %v5011 = vmax.f32 %v4995, %v4999
      %v5012 = vmax.f32 %v5008, %v5000
      %v5013 = vmax.f32 %v5009, %v5001
      %v5014 = vmax.f32 %v5010, %v5002
      %v5015 = vmax.f32 %v5011, %v5003
      %v5016 = vmax.f32 %v5012, %v5004
      %v5017 = vmax.f32 %v5013, %v5005
      %v5018 = vmax.f32 %v5014, %v5006
      %v5019 = vmax.f32 %v5015, %v5007
      %v5020 = vmax.f32 %v5016, %v5017
      %v5021 = vmax.f32 %v5018, %v5019
      %v5022 = vmax.f32 %v5020, %v5021
      %v5023 = vrot.slane %v5022, 4
      %v5024 = vmax.f32 %v5022, %v5023
      %v5025 = vrot.slane %v5024, 2
      %v5026 = vmax.f32 %v5024, %v5025
      %v5027 = vrot.slane %v5026, 1
      %v5028 = vmax.f32 %v5026, %v5027
      %v5029 = vld [vmem:[%s813] sm:$0x7]
      %v5033 = vcombine.low %v3091, %v3979
      %v5035 = vunpack.c.l.s4 1966171168
      %v5036 = vunpack.c.0.s8 %v5035
      %v5037 = vlaneseq
      %v5038 = vshrl.u32 %v5037, 7
      %v5039 = vsub.s32 %v5036, %v5038
      %v5040 = vrot.slane %v5033, %v5039
      %v5042 = vunpack.c.l.s4 1966171168
      %v5043 = vunpack.c.0.s8 %v5042
      %v5044 = vlaneseq
      %v5045 = vshrl.u32 %v5044, 7
      %v5046 = vsub.s32 %v5043, %v5045
      %v5047 = vrot.slane %v5028, %v5046
      %v5048 = vcombine.low %v5040, %v5047
      %v5050 = vunpack.c.l.s4 1966171168
      %v5051 = vunpack.c.0.s8 %v5050
      %v5052 = vlaneseq
      %v5053 = vshrl.u32 %v5052, 7
      %v5054 = vsub.s32 %v5051, %v5053
      %v5055 = vrot.slane %v5048, %v5054
      %v5057 = vmax.f32 %v5029, %v5055
      %v5058 = vlaneseq
      %vm5059 = vcmp.ge.s32.totalorder %v5058, 0
      %vm5060 = vcmp.lt.s32.totalorder %v5058, 384
      %vm5061 = vmand %vm5059, %vm5060
      %5062 = vst.msk [vmem:[%s813] sm:$0x7] %vm5061, %v5057
      %s5063 = smul.u32 16, %s40
      %p5064 = scmp.lt.s32.totalorder %s39, 1
      %s5065 = scalar_select %p5064, %s39, 1
      %p5066 = scmp.lt.s32.totalorder %s5063, 15
      %s5067 = scalar_select %p5066, %s5063, 15
      %s5068 = smul.addr %s5065, 16
      %s5069 = sadd.s32 %s5067, %s5068
      %s5070 = smul.addr %s5069, 4
      %s5071 = scalar_lea.vmem %s22, %s5070
      %p5072 = scmp.lt.s32.totalorder %s39, 1
      %s5073 = scalar_select %p5072, %s39, 1
      %s5074 = smul.addr %s5073, 3
      %s5075 = scalar_lea.vmem %s23, %s5074
      // Predicated region
      $region113: #{posenet9d_forward.3} parent=107 // pred_check
        %p5076 = pneg %p548
      $region114: #{posenet9d_forward.3} parent=107 // pred_check_branch
        %5078 = sbr.rel (%p5076) target = $region116
      $region115: #{posenet9d_forward.3} parent=107 // pred_region
        %s5079 = smul.u32 16, %s40
      $region116: #{posenet9d_forward.3} parent=107 // pred_fallthru
        _
      // Predicated region
      $region117: #{posenet9d_forward.3} parent=107 // pred_check
        %p5080 = pneg %p574
      $region118: #{posenet9d_forward.3} parent=107 // pred_check_branch
        %5082 = sbr.rel (%p5080) target = $region120
      $region119: #{posenet9d_forward.3} parent=107 // pred_region
        _
      $region120: #{posenet9d_forward.3} parent=107 // pred_fallthru
        _
    $region108: #{posenet9d_forward.3} parent=5 // pred_fallthru
      _
    %p5083 = scmp.le.s32.totalorder 2, %s30
    // Predicated region
    $region121: #{posenet9d_forward.3} parent=5 // pred_check
      %p5084 = pneg %p5083
    $region122: #{posenet9d_forward.3} parent=5 // pred_check_branch
      %5086 = sbr.rel (%p5084) target = $region124
    $region123: #{posenet9d_forward.3} parent=5 // pred_region
      %s5087 = ssub.s32 %s30, 2
      // Predicated region
      $region125: #{posenet9d_forward.3} parent=123 // pred_check
        %p5088 = pneg %p554
      $region126: #{posenet9d_forward.3} parent=123 // pred_check_branch
        %5090 = sbr.rel (%p5088) target = $region128
      $region127: #{posenet9d_forward.3} parent=123 // pred_region
        %s5091 = smul.u32 16, %s42
        %p5092 = scmp.lt.s32.totalorder %s41, 1
        %s5093 = scalar_select %p5092, %s41, 1
        %p5094 = scmp.lt.s32.totalorder %s5091, 15
        %s5095 = scalar_select %p5094, %s5091, 15
        %s5096 = smul.addr %s5093, 16
        %s5097 = sadd.s32 %s5095, %s5096
        %s5098 = smul.addr %s5097, 4
        %s5099 = scalar_lea.vmem %s22, %s5098
      $region128: #{posenet9d_forward.3} parent=123 // pred_fallthru
        _
      // Predicated region
      $region129: #{posenet9d_forward.3} parent=123 // pred_check
        %p5100 = pneg %p580
      $region130: #{posenet9d_forward.3} parent=123 // pred_check_branch
        %5102 = sbr.rel (%p5100) target = $region132
      $region131: #{posenet9d_forward.3} parent=123 // pred_region
        %p5103 = scmp.lt.s32.totalorder %s41, 1
        %s5104 = scalar_select %p5103, %s41, 1
        %s5105 = smul.addr %s5104, 3
        %s5106 = scalar_lea.vmem %s23, %s5105
      $region132: #{posenet9d_forward.3} parent=123 // pred_fallthru
        _
    $region124: #{posenet9d_forward.3} parent=5 // pred_fallthru
      _
  $region6: #{posenet9d_forward.3} parent=0 // loop_footer
    %s34 = sadd.s32 1, %s30
  $region7: #{posenet9d_forward.3} parent=0 // loop_footer_branch
    %29 = sbr.rel target = $region3
  $region8: #{posenet9d_forward.3} parent=0 // loop_exit
    _

</llo_original>
